<compile_context>
chip_gen: v6e
topology: v6e:2x2x1
jax: 0.10.0
libtpu: 0.0.40
codegen_flags: <defaults>
</compile_context>

<pallas_src>
import jax
import jax.numpy as jnp
from jax.experimental import pallas as pl
from jax.experimental.pallas import tpu as pltpu

EPS = 1e-6                 # nn.BatchNorm2d(..., eps=1e-06) in the reference module
ACT_RADIUS = 3
K = 2 * ACT_RADIUS + 1     # depthwise kernel size = 7
LEAKY_SLOPE = 0.1


# ------------------------------ fused kernel ------------------------------- #

def _block_kernel(x_ref, w1_ref, t1_ref, w2_ref, t2_ref, dw_ref, ta_ref,
                  o_ref, pad_ref):
    """Fused Block forward for one batch element.

    x_ref  : (1, 4*S, Cin)   the four 2x2 pool-window offsets stacked along rows
    w1_ref : (Cin, Cin)      conv1 weight^T with BN1 scale folded in   (mxu dtype)
    t1_ref : (1, Cin)        BN1 additive term (f32)
    w2_ref : (Cin, Cout)     conv2 weight^T with BN2 scale folded in   (mxu dtype)
    t2_ref : (1, Cout)       BN2 additive term (f32)
    dw_ref : (K*K, 1, Cout)  depthwise taps with BN-alpha scale folded in (f32)
    ta_ref : (1, Cout)       BN-alpha additive term (f32)
    o_ref  : (1, Hp, Wp, Cout)  output (io dtype)
    pad_ref: (Hp+2r, Wp+2r, Cout) f32 VMEM scratch (zero-padded pooled map)
    """
    Hp, Wp, Cout = o_ref.shape[1], o_ref.shape[2], o_ref.shape[3]
    S = Hp * Wp
    r = ACT_RADIUS

    # ---- 1x1 convs (BN scales folded) + LeakyReLU: bf16 MXU, f32 accumulate --
    x = x_ref[0].astype(w1_ref.dtype)                               # (4S, Cin)
    h = jnp.dot(x, w1_ref[...], preferred_element_type=jnp.float32) + t1_ref[...]
    h = jnp.where(h > 0, h, LEAKY_SLOPE * h)                        # LeakyReLU(0.1), f32
    y = jnp.dot(h.astype(w2_ref.dtype), w2_ref[...],
                preferred_element_type=jnp.float32) + t2_ref[...]   # (4S, Cout), f32

    # ---- 2x2 / stride-2 max-pool: max over the 4 aligned offset row-blocks ---
    p = jnp.maximum(jnp.maximum(y[0:S], y[S:2 * S]),
                    jnp.maximum(y[2 * S:3 * S], y[3 * S:4 * S]))    # (S, Cout)
    p = jnp.maximum(p, 0.0)                                         # IWAct in-place ReLU

    # ---- stage pooled map into padded VMEM scratch (no HBM round trip) -------
    # Zero only the 3-wide border (interior is fully overwritten below); this is
    # correct under any dimension_semantics / core assignment.
    zr = jnp.zeros((r, Wp + 2 * r, Cout), jnp.float32)
    zc = jnp.zeros((Hp + 2 * r, r, Cout), jnp.float32)
    pad_ref[0:r, :, :] = zr                                         # top rows
    pad_ref[Hp + r:Hp + 2 * r, :, :] = zr                           # bottom rows
    pad_ref[:, 0:r, :] = zc                                         # left columns
    pad_ref[:, Wp + r:Wp + 2 * r, :] = zc                           # right columns
    pad_ref[r:r + Hp, r:r + Wp, :] = p.reshape(Hp, Wp, Cout)        # one bulk store

    # ---- depthwise KxK conv + BN (scale folded into the taps) ----------------
    xp = pad_ref[...]                                               # (Hp+2r, Wp+2r, Cout)
    taps = dw_ref[...]                                              # (K*K, 1, Cout)
    acc = None
    for kw in range(K):
        xs = xp[:, kw:kw + Wp, :]          # sublane shift hoisted: 7 slices, not 49
        for kh in range(K):
            term = xs[kh:kh + Hp] * taps[kh * K + kw]
            acc = term if acc is None else acc + term
    o_ref[0] = (acc + ta_ref[...]).astype(o_ref.dtype)


# --------------------------------- wrapper --------------------------------- #

def _bn_fold(gamma, beta, rm, rv):
    s = gamma / jnp.sqrt(rv + EPS)
    return s, beta - rm * s


def block_forward(x_nchw, params, io_dtype=jnp.bfloat16, mxu_dtype=jnp.bfloat16):
    """Block forward (NCHW in, NCHW out).

    io_dtype controls activation / output HBM traffic; mxu_dtype the matmul input
    precision (accumulation is always f32).  Defaults: bf16 I/O + bf16 MXU.
    """
    N, Cin, H, W = x_nchw.shape
    Cout = params["W2"].shape[0]
    assert H % 2 == 0 and W % 2 == 0, "stride-2 maxpool expects even spatial dims"
    Hp, Wp = H // 2, W // 2
    S = Hp * Wp
    r = ACT_RADIUS

    # fold BN scales into the conv / depthwise weights (zero runtime cost)
    s1, t1 = _bn_fold(params["g1"], params["b1"], params["rm1"], params["rv1"])
    s2, t2 = _bn_fold(params["g2"], params["b2"], params["rm2"], params["rv2"])
    sa, ta = _bn_fold(params["ga"], params["ba"], params["rma"], params["rva"])
    w1t = (params["W1"] * s1[:, None]).T.astype(mxu_dtype)          # (Cin, Cin)
    w2t = (params["W2"] * s2[:, None]).T.astype(mxu_dtype)          # (Cin, Cout)
    dwp = jnp.transpose(params["Wdw"][:, 0] * sa[:, None, None],
                        (1, 2, 0)).reshape(K * K, 1, Cout)          # (K*K, 1, Cout), f32

    # single wrapper-side relayout of x (same byte count as any NCHW->NHWC pass):
    #   NCHW -> (N, 4*S, Cin); row j*S + h*Wp + w holds x[n, :, 2h+dh, 2w+dw]
    #   with j = 2*dh + dw enumerating the 2x2 pool-window offsets.
    xt = jnp.transpose(x_nchw.astype(io_dtype), (0, 2, 3, 1))       # NHWC, io dtype
    xt = xt.reshape(N, Hp, 2, Wp, 2, Cin)
    xt = jnp.transpose(xt, (0, 2, 4, 1, 3, 5))                      # (N, 2, 2, Hp, Wp, Cin)
    x_r = xt.reshape(N, 4 * S, Cin)

    out_nhwc = pl.pallas_call(
        _block_kernel,
        out_shape=jax.ShapeDtypeStruct((N, Hp, Wp, Cout), io_dtype),
        grid=(N,),
        in_specs=[
            pl.BlockSpec((1, 4 * S, Cin), lambda n: (n, 0, 0)),
            pl.BlockSpec((Cin, Cin), lambda n: (0, 0)),
            pl.BlockSpec((1, Cin), lambda n: (0, 0)),
            pl.BlockSpec((Cin, Cout), lambda n: (0, 0)),
            pl.BlockSpec((1, Cout), lambda n: (0, 0)),
            pl.BlockSpec((K * K, 1, Cout), lambda n: (0, 0, 0)),
            pl.BlockSpec((1, Cout), lambda n: (0, 0)),
        ],
        out_specs=pl.BlockSpec((1, Hp, Wp, Cout), lambda n: (n, 0, 0, 0)),
        scratch_shapes=[pltpu.VMEM((Hp + 2 * r, Wp + 2 * r, Cout), jnp.float32)],
        compiler_params=pltpu.CompilerParams(
            dimension_semantics=("parallel",),
            vmem_limit_bytes=64 * 1024 * 1024),
    )(x_r, w1t, t1.reshape(1, Cin).astype(jnp.float32),
      w2t, t2.reshape(1, Cout).astype(jnp.float32),
      dwp.astype(jnp.float32), ta.reshape(1, Cout).astype(jnp.float32))

    # PyTorch layout; consumers that accept NHWC can use `out_nhwc` directly.
    return jnp.transpose(out_nhwc, (0, 3, 1, 2))


# -------------------------- deterministic params ---------------------------- #

def init_params(key, in_ch, out_ch):
    ks = jax.random.split(key, 16)
    uni = lambda k, sh, lo, hi: jax.random.uniform(k, sh, jnp.float32, lo, hi)
    nrm = lambda k, sh, s: jax.random.normal(k, sh, jnp.float32) * s
    return {
        # conv1 (in_ch -> in_ch, 1x1, no bias) + BatchNorm2d(in_ch, eps=1e-6)
        "W1": nrm(ks[0], (in_ch, in_ch), 0.3),
        "g1": uni(ks[1], (in_ch,), 0.5, 1.5), "b1": nrm(ks[2], (in_ch,), 0.1),
        "rm1": nrm(ks[3], (in_ch,), 0.1), "rv1": uni(ks[4], (in_ch,), 0.5, 1.5),
        # conv2 (in_ch -> out_ch, 1x1, no bias) + BatchNorm2d(out_ch, eps=1e-6)
        "W2": nrm(ks[5], (out_ch, in_ch), 0.3),
        "g2": uni(ks[6], (out_ch,), 0.5, 1.5), "b2": nrm(ks[7], (out_ch,), 0.1),
        "rm2": nrm(ks[8], (out_ch,), 0.1), "rv2": uni(ks[9], (out_ch,), 0.5, 1.5),
        # IWAct depthwise weight (out_ch, 1, 7, 7) + BatchNorm2d(out_ch, eps=1e-6)
        "Wdw": nrm(ks[10], (out_ch, 1, K, K), 0.02),
        "ga": uni(ks[11], (out_ch,), 0.5, 1.5), "ba": nrm(ks[12], (out_ch,), 0.1),
        "rma": nrm(ks[13], (out_ch,), 0.1), "rva": uni(ks[14], (out_ch,), 0.5, 1.5),
    }


# ---------------------------- pure-JAX reference ---------------------------- #

def reference_forward(x, p):
    def bn(y, g, b, rm, rv):
        s = g / jnp.sqrt(rv + EPS)
        return y * s[None, :, None, None] + (b - rm * s)[None, :, None, None]
    y = jnp.einsum("oc,nchw->nohw", p["W1"], x)
    y = bn(y, p["g1"], p["b1"], p["rm1"], p["rv1"])
    y = jnp.where(y > 0, y, LEAKY_SLOPE * y)
    y = jnp.einsum("oc,nchw->nohw", p["W2"], y)
    y = bn(y, p["g2"], p["b2"], p["rm2"], p["rv2"])
    y = jax.lax.reduce_window(y, -jnp.inf, jax.lax.max, (1, 1, 2, 2), (1, 1, 2, 2), "VALID")
    y = jnp.maximum(y, 0.0)
    y = jax.lax.conv_general_dilated(
        y, p["Wdw"], (1, 1), ((ACT_RADIUS, ACT_RADIUS), (ACT_RADIUS, ACT_RADIUS)),
        dimension_numbers=("NCHW", "OIHW", "NCHW"), feature_group_count=y.shape[1])
    y = bn(y, p["ga"], p["ba"], p["rma"], p["rva"])
    return y


if __name__ == "__main__":
    key = jax.random.PRNGKey(0)
    kx, kp = jax.random.split(key)
    N, in_ch, out_ch, H, W = 2, 4, 8, 16, 16
    x = jax.random.normal(kx, (N, in_ch, H, W), jnp.float32)
    params = init_params(kp, in_ch, out_ch)

    ref = reference_forward(x, params)

    # all-f32 path: exact up to summation order -> tight tolerance.
    out_f32 = jax.block_until_ready(
        block_forward(x, params, io_dtype=jnp.float32, mxu_dtype=jnp.float32))
    assert out_f32.shape == (N, out_ch, H // 2, W // 2), out_f32.shape
    err = float(jnp.max(jnp.abs(out_f32 - ref)))
    assert err <= 1e-4, f"f32 path max abs err {err}"

    # default path: bf16 I/O + bf16 MXU inputs (f32 accumulation / element-wise).
    out = jax.block_until_ready(block_forward(x, params))
    assert out.shape == (N, out_ch, H // 2, W // 2), out.shape
    err_bf16 = float(jnp.max(jnp.abs(out.astype(jnp.float32) - ref)))
    tol_bf16 = 5e-2 * (1.0 + float(jnp.max(jnp.abs(ref))))
    assert err_bf16 <= tol_bf16, (err_bf16, tol_bf16)

    print("KERNEL_OK")
</pallas_src>

<mosaic_0001>
module attributes {stable_mosaic.version = 11 : i64} {
  func.func @_block_kernel(%arg0: i32, %arg1: memref<1x256x4xf32, #tpu.memory_space<vmem>>, %arg2: memref<4x4xf32, #tpu.memory_space<vmem>>, %arg3: memref<1x4xf32, #tpu.memory_space<vmem>>, %arg4: memref<4x8xf32, #tpu.memory_space<vmem>>, %arg5: memref<1x8xf32, #tpu.memory_space<vmem>>, %arg6: memref<49x1x8xf32, #tpu.memory_space<vmem>>, %arg7: memref<1x8xf32, #tpu.memory_space<vmem>>, %arg8: memref<1x8x8x8xf32, #tpu.memory_space<vmem>>, %arg9: memref<14x14x8xf32, #tpu.memory_space<vmem>>) attributes {dimension_semantics = [#tpu.dimension_semantics<parallel>], iteration_bounds = array<i64: 2>, scalar_prefetch = 0 : i64, scratch_operands = 1 : i64, tpu.core_type = #tpu.core_type<tc>, window_params = [{transform_indices = @transform_0, window_bounds = array<i64: 1, 256, 4>}, {pipeline_mode = #tpu.pipeline_mode<synchronous>, transform_indices = @transform_1, window_bounds = array<i64: 4, 4>}, {pipeline_mode = #tpu.pipeline_mode<synchronous>, transform_indices = @transform_2, window_bounds = array<i64: 1, 4>}, {pipeline_mode = #tpu.pipeline_mode<synchronous>, transform_indices = @transform_3, window_bounds = array<i64: 4, 8>}, {pipeline_mode = #tpu.pipeline_mode<synchronous>, transform_indices = @transform_4, window_bounds = array<i64: 1, 8>}, {pipeline_mode = #tpu.pipeline_mode<synchronous>, transform_indices = @transform_5, window_bounds = array<i64: 49, 1, 8>}, {pipeline_mode = #tpu.pipeline_mode<synchronous>, transform_indices = @transform_6, window_bounds = array<i64: 1, 8>}, {transform_indices = @transform_7, window_bounds = array<i64: 1, 8, 8, 8>}]} {
    %c0 = arith.constant 0 : index
    %c0_0 = arith.constant 0 : index
    %c0_1 = arith.constant 0 : index
    %0 = vector.load %arg1[%c0, %c0_0, %c0_1] : memref<1x256x4xf32, #tpu.memory_space<vmem>>, vector<1x256x4xf32>
    %1 = vector.shape_cast %0 : vector<1x256x4xf32> to vector<256x4xf32>
    %c0_2 = arith.constant 0 : index
    %c0_3 = arith.constant 0 : index
    %2 = vector.load %arg2[%c0_2, %c0_3] : memref<4x4xf32, #tpu.memory_space<vmem>>, vector<4x4xf32>
    %cst = arith.constant dense<0.000000e+00> : vector<256x4xf32>
    %3 = tpu.matmul %1, %2, %cst {dimension_numbers = #tpu.dot_dimension_numbers<[1], [0], [0], [1], [0, 0, 1, 1], [], []>} : vector<256x4xf32>, vector<4x4xf32>, vector<256x4xf32> -> vector<256x4xf32>
    %c0_4 = arith.constant 0 : index
    %c0_5 = arith.constant 0 : index
    %4 = vector.load %arg3[%c0_4, %c0_5] : memref<1x4xf32, #tpu.memory_space<vmem>>, vector<1x4xf32>
    %5 = vector.broadcast %4 : vector<1x4xf32> to vector<256x4xf32>
    %6 = arith.addf %3, %5 : vector<256x4xf32>
    %cst_6 = arith.constant 0.000000e+00 : f32
    %7 = vector.broadcast %cst_6 : f32 to vector<256x4xf32>
    %8 = arith.cmpf ogt, %6, %7 : vector<256x4xf32>
    %cst_7 = arith.constant 1.000000e-01 : f32
    %9 = vector.broadcast %cst_7 : f32 to vector<256x4xf32>
    %10 = arith.mulf %9, %6 : vector<256x4xf32>
    %11 = arith.select %8, %6, %10 : vector<256x4xi1>, vector<256x4xf32>
    %c0_8 = arith.constant 0 : index
    %c0_9 = arith.constant 0 : index
    %12 = vector.load %arg4[%c0_8, %c0_9] : memref<4x8xf32, #tpu.memory_space<vmem>>, vector<4x8xf32>
    %cst_10 = arith.constant dense<0.000000e+00> : vector<256x8xf32>
    %13 = tpu.matmul %11, %12, %cst_10 {dimension_numbers = #tpu.dot_dimension_numbers<[1], [0], [0], [1], [0, 0, 1, 1], [], []>} : vector<256x4xf32>, vector<4x8xf32>, vector<256x8xf32> -> vector<256x8xf32>
    %c0_11 = arith.constant 0 : index
    %c0_12 = arith.constant 0 : index
    %14 = vector.load %arg5[%c0_11, %c0_12] : memref<1x8xf32, #tpu.memory_space<vmem>>, vector<1x8xf32>
    %15 = vector.broadcast %14 : vector<1x8xf32> to vector<256x8xf32>
    %16 = arith.addf %13, %15 : vector<256x8xf32>
    %17 = vector.extract_strided_slice %16 {offsets = [0, 0], sizes = [64, 8], strides = [1, 1]} : vector<256x8xf32> to vector<64x8xf32>
    %18 = vector.extract_strided_slice %16 {offsets = [64, 0], sizes = [64, 8], strides = [1, 1]} : vector<256x8xf32> to vector<64x8xf32>
    %19 = arith.maximumf %17, %18 : vector<64x8xf32>
    %20 = vector.extract_strided_slice %16 {offsets = [128, 0], sizes = [64, 8], strides = [1, 1]} : vector<256x8xf32> to vector<64x8xf32>
    %21 = vector.extract_strided_slice %16 {offsets = [192, 0], sizes = [64, 8], strides = [1, 1]} : vector<256x8xf32> to vector<64x8xf32>
    %22 = arith.maximumf %20, %21 : vector<64x8xf32>
    %23 = arith.maximumf %19, %22 : vector<64x8xf32>
    %cst_13 = arith.constant 0.000000e+00 : f32
    %24 = vector.broadcast %cst_13 : f32 to vector<64x8xf32>
    %25 = arith.maximumf %23, %24 : vector<64x8xf32>
    %cst_14 = arith.constant 0.000000e+00 : f32
    %26 = vector.broadcast %cst_14 : f32 to vector<3x14x8xf32>
    %cst_15 = arith.constant 0.000000e+00 : f32
    %27 = vector.broadcast %cst_15 : f32 to vector<14x3x8xf32>
    %c0_16 = arith.constant 0 : index
    %c0_17 = arith.constant 0 : index
    %c0_18 = arith.constant 0 : index
    %28 = vector.load %arg9[%c0_16, %c0_17, %c0_18] : memref<14x14x8xf32, #tpu.memory_space<vmem>>, vector<3x14x8xf32>
    tpu.vector_store %arg9[%c0_16, %c0_17, %c0_18], %26 {strides = array<i32>} : memref<14x14x8xf32, #tpu.memory_space<vmem>>, vector<3x14x8xf32>,
    %c11 = arith.constant 11 : index
    %c0_19 = arith.constant 0 : index
    %c0_20 = arith.constant 0 : index
    %29 = vector.load %arg9[%c11, %c0_19, %c0_20] : memref<14x14x8xf32, #tpu.memory_space<vmem>>, vector<3x14x8xf32>
    tpu.vector_store %arg9[%c11, %c0_19, %c0_20], %26 {strides = array<i32>} : memref<14x14x8xf32, #tpu.memory_space<vmem>>, vector<3x14x8xf32>,
    %c0_21 = arith.constant 0 : index
    %c0_22 = arith.constant 0 : index
    %c0_23 = arith.constant 0 : index
    %30 = vector.load %arg9[%c0_21, %c0_22, %c0_23] : memref<14x14x8xf32, #tpu.memory_space<vmem>>, vector<14x3x8xf32>
    tpu.vector_store %arg9[%c0_21, %c0_22, %c0_23], %27 {strides = array<i32>} : memref<14x14x8xf32, #tpu.memory_space<vmem>>, vector<14x3x8xf32>,
    %c0_24 = arith.constant 0 : index
    %c11_25 = arith.constant 11 : index
    %c0_26 = arith.constant 0 : index
    %31 = vector.load %arg9[%c0_24, %c11_25, %c0_26] : memref<14x14x8xf32, #tpu.memory_space<vmem>>, vector<14x3x8xf32>
    tpu.vector_store %arg9[%c0_24, %c11_25, %c0_26], %27 {strides = array<i32>} : memref<14x14x8xf32, #tpu.memory_space<vmem>>, vector<14x3x8xf32>,
    %32 = vector.shape_cast %25 : vector<64x8xf32> to vector<8x8x8xf32>
    %c3 = arith.constant 3 : index
    %c3_27 = arith.constant 3 : index
    %c0_28 = arith.constant 0 : index
    %33 = vector.load %arg9[%c3, %c3_27, %c0_28] : memref<14x14x8xf32, #tpu.memory_space<vmem>>, vector<8x8x8xf32>
    tpu.vector_store %arg9[%c3, %c3_27, %c0_28], %32 {strides = array<i32>} : memref<14x14x8xf32, #tpu.memory_space<vmem>>, vector<8x8x8xf32>,
    %c0_29 = arith.constant 0 : index
    %c0_30 = arith.constant 0 : index
    %c0_31 = arith.constant 0 : index
    %34 = vector.load %arg9[%c0_29, %c0_30, %c0_31] : memref<14x14x8xf32, #tpu.memory_space<vmem>>, vector<14x14x8xf32>
    %c0_32 = arith.constant 0 : index
    %c0_33 = arith.constant 0 : index
    %c0_34 = arith.constant 0 : index
    %35 = vector.load %arg6[%c0_32, %c0_33, %c0_34] : memref<49x1x8xf32, #tpu.memory_space<vmem>>, vector<49x1x8xf32>
    %36 = vector.extract_strided_slice %34 {offsets = [0, 0, 0], sizes = [14, 8, 8], strides = [1, 1, 1]} : vector<14x14x8xf32> to vector<14x8x8xf32>
    %37 = vector.extract_strided_slice %36 {offsets = [0, 0, 0], sizes = [8, 8, 8], strides = [1, 1, 1]} : vector<14x8x8xf32> to vector<8x8x8xf32>
    %38 = vector.extract_strided_slice %35 {offsets = [0, 0, 0], sizes = [1, 1, 8], strides = [1, 1, 1]} : vector<49x1x8xf32> to vector<1x1x8xf32>
    %39 = vector.shape_cast %38 : vector<1x1x8xf32> to vector<1x8xf32>
    %40 = vector.shape_cast %39 : vector<1x8xf32> to vector<1x1x8xf32>
    %41 = vector.broadcast %40 : vector<1x1x8xf32> to vector<8x8x8xf32>
    %42 = arith.mulf %37, %41 : vector<8x8x8xf32>
    %43 = vector.extract_strided_slice %36 {offsets = [1, 0, 0], sizes = [8, 8, 8], strides = [1, 1, 1]} : vector<14x8x8xf32> to vector<8x8x8xf32>
    %44 = vector.extract_strided_slice %35 {offsets = [7, 0, 0], sizes = [1, 1, 8], strides = [1, 1, 1]} : vector<49x1x8xf32> to vector<1x1x8xf32>
    %45 = vector.shape_cast %44 : vector<1x1x8xf32> to vector<1x8xf32>
    %46 = vector.shape_cast %45 : vector<1x8xf32> to vector<1x1x8xf32>
    %47 = vector.broadcast %46 : vector<1x1x8xf32> to vector<8x8x8xf32>
    %48 = arith.mulf %43, %47 : vector<8x8x8xf32>
    %49 = arith.addf %42, %48 : vector<8x8x8xf32>
    %50 = vector.extract_strided_slice %36 {offsets = [2, 0, 0], sizes = [8, 8, 8], strides = [1, 1, 1]} : vector<14x8x8xf32> to vector<8x8x8xf32>
    %51 = vector.extract_strided_slice %35 {offsets = [14, 0, 0], sizes = [1, 1, 8], strides = [1, 1, 1]} : vector<49x1x8xf32> to vector<1x1x8xf32>
    %52 = vector.shape_cast %51 : vector<1x1x8xf32> to vector<1x8xf32>
    %53 = vector.shape_cast %52 : vector<1x8xf32> to vector<1x1x8xf32>
    %54 = vector.broadcast %53 : vector<1x1x8xf32> to vector<8x8x8xf32>
    %55 = arith.mulf %50, %54 : vector<8x8x8xf32>
    %56 = arith.addf %49, %55 : vector<8x8x8xf32>
    %57 = vector.extract_strided_slice %36 {offsets = [3, 0, 0], sizes = [8, 8, 8], strides = [1, 1, 1]} : vector<14x8x8xf32> to vector<8x8x8xf32>
    %58 = vector.extract_strided_slice %35 {offsets = [21, 0, 0], sizes = [1, 1, 8], strides = [1, 1, 1]} : vector<49x1x8xf32> to vector<1x1x8xf32>
    %59 = vector.shape_cast %58 : vector<1x1x8xf32> to vector<1x8xf32>
    %60 = vector.shape_cast %59 : vector<1x8xf32> to vector<1x1x8xf32>
    %61 = vector.broadcast %60 : vector<1x1x8xf32> to vector<8x8x8xf32>
    %62 = arith.mulf %57, %61 : vector<8x8x8xf32>
    %63 = arith.addf %56, %62 : vector<8x8x8xf32>
    %64 = vector.extract_strided_slice %36 {offsets = [4, 0, 0], sizes = [8, 8, 8], strides = [1, 1, 1]} : vector<14x8x8xf32> to vector<8x8x8xf32>
    %65 = vector.extract_strided_slice %35 {offsets = [28, 0, 0], sizes = [1, 1, 8], strides = [1, 1, 1]} : vector<49x1x8xf32> to vector<1x1x8xf32>
    %66 = vector.shape_cast %65 : vector<1x1x8xf32> to vector<1x8xf32>
    %67 = vector.shape_cast %66 : vector<1x8xf32> to vector<1x1x8xf32>
    %68 = vector.broadcast %67 : vector<1x1x8xf32> to vector<8x8x8xf32>
    %69 = arith.mulf %64, %68 : vector<8x8x8xf32>
    %70 = arith.addf %63, %69 : vector<8x8x8xf32>
    %71 = vector.extract_strided_slice %36 {offsets = [5, 0, 0], sizes = [8, 8, 8], strides = [1, 1, 1]} : vector<14x8x8xf32> to vector<8x8x8xf32>
    %72 = vector.extract_strided_slice %35 {offsets = [35, 0, 0], sizes = [1, 1, 8], strides = [1, 1, 1]} : vector<49x1x8xf32> to vector<1x1x8xf32>
    %73 = vector.shape_cast %72 : vector<1x1x8xf32> to vector<1x8xf32>
    %74 = vector.shape_cast %73 : vector<1x8xf32> to vector<1x1x8xf32>
    %75 = vector.broadcast %74 : vector<1x1x8xf32> to vector<8x8x8xf32>
    %76 = arith.mulf %71, %75 : vector<8x8x8xf32>
    %77 = arith.addf %70, %76 : vector<8x8x8xf32>
    %78 = vector.extract_strided_slice %36 {offsets = [6, 0, 0], sizes = [8, 8, 8], strides = [1, 1, 1]} : vector<14x8x8xf32> to vector<8x8x8xf32>
    %79 = vector.extract_strided_slice %35 {offsets = [42, 0, 0], sizes = [1, 1, 8], strides = [1, 1, 1]} : vector<49x1x8xf32> to vector<1x1x8xf32>
    %80 = vector.shape_cast %79 : vector<1x1x8xf32> to vector<1x8xf32>
    %81 = vector.shape_cast %80 : vector<1x8xf32> to vector<1x1x8xf32>
    %82 = vector.broadcast %81 : vector<1x1x8xf32> to vector<8x8x8xf32>
    %83 = arith.mulf %78, %82 : vector<8x8x8xf32>
    %84 = arith.addf %77, %83 : vector<8x8x8xf32>
    %85 = vector.extract_strided_slice %34 {offsets = [0, 1, 0], sizes = [14, 8, 8], strides = [1, 1, 1]} : vector<14x14x8xf32> to vector<14x8x8xf32>
    %86 = vector.extract_strided_slice %85 {offsets = [0, 0, 0], sizes = [8, 8, 8], strides = [1, 1, 1]} : vector<14x8x8xf32> to vector<8x8x8xf32>
    %87 = vector.extract_strided_slice %35 {offsets = [1, 0, 0], sizes = [1, 1, 8], strides = [1, 1, 1]} : vector<49x1x8xf32> to vector<1x1x8xf32>
    %88 = vector.shape_cast %87 : vector<1x1x8xf32> to vector<1x8xf32>
    %89 = vector.shape_cast %88 : vector<1x8xf32> to vector<1x1x8xf32>
    %90 = vector.broadcast %89 : vector<1x1x8xf32> to vector<8x8x8xf32>
    %91 = arith.mulf %86, %90 : vector<8x8x8xf32>
    %92 = arith.addf %84, %91 : vector<8x8x8xf32>
    %93 = vector.extract_strided_slice %85 {offsets = [1, 0, 0], sizes = [8, 8, 8], strides = [1, 1, 1]} : vector<14x8x8xf32> to vector<8x8x8xf32>
    %94 = vector.extract_strided_slice %35 {offsets = [8, 0, 0], sizes = [1, 1, 8], strides = [1, 1, 1]} : vector<49x1x8xf32> to vector<1x1x8xf32>
    %95 = vector.shape_cast %94 : vector<1x1x8xf32> to vector<1x8xf32>
    %96 = vector.shape_cast %95 : vector<1x8xf32> to vector<1x1x8xf32>
    %97 = vector.broadcast %96 : vector<1x1x8xf32> to vector<8x8x8xf32>
    %98 = arith.mulf %93, %97 : vector<8x8x8xf32>
    %99 = arith.addf %92, %98 : vector<8x8x8xf32>
    %100 = vector.extract_strided_slice %85 {offsets = [2, 0, 0], sizes = [8, 8, 8], strides = [1, 1, 1]} : vector<14x8x8xf32> to vector<8x8x8xf32>
    %101 = vector.extract_strided_slice %35 {offsets = [15, 0, 0], sizes = [1, 1, 8], strides = [1, 1, 1]} : vector<49x1x8xf32> to vector<1x1x8xf32>
    %102 = vector.shape_cast %101 : vector<1x1x8xf32> to vector<1x8xf32>
    %103 = vector.shape_cast %102 : vector<1x8xf32> to vector<1x1x8xf32>
    %104 = vector.broadcast %103 : vector<1x1x8xf32> to vector<8x8x8xf32>
    %105 = arith.mulf %100, %104 : vector<8x8x8xf32>
    %106 = arith.addf %99, %105 : vector<8x8x8xf32>
    %107 = vector.extract_strided_slice %85 {offsets = [3, 0, 0], sizes = [8, 8, 8], strides = [1, 1, 1]} : vector<14x8x8xf32> to vector<8x8x8xf32>
    %108 = vector.extract_strided_slice %35 {offsets = [22, 0, 0], sizes = [1, 1, 8], strides = [1, 1, 1]} : vector<49x1x8xf32> to vector<1x1x8xf32>
    %109 = vector.shape_cast %108 : vector<1x1x8xf32> to vector<1x8xf32>
    %110 = vector.shape_cast %109 : vector<1x8xf32> to vector<1x1x8xf32>
    %111 = vector.broadcast %110 : vector<1x1x8xf32> to vector<8x8x8xf32>
    %112 = arith.mulf %107, %111 : vector<8x8x8xf32>
    %113 = arith.addf %106, %112 : vector<8x8x8xf32>
    %114 = vector.extract_strided_slice %85 {offsets = [4, 0, 0], sizes = [8, 8, 8], strides = [1, 1, 1]} : vector<14x8x8xf32> to vector<8x8x8xf32>
    %115 = vector.extract_strided_slice %35 {offsets = [29, 0, 0], sizes = [1, 1, 8], strides = [1, 1, 1]} : vector<49x1x8xf32> to vector<1x1x8xf32>
    %116 = vector.shape_cast %115 : vector<1x1x8xf32> to vector<1x8xf32>
    %117 = vector.shape_cast %116 : vector<1x8xf32> to vector<1x1x8xf32>
    %118 = vector.broadcast %117 : vector<1x1x8xf32> to vector<8x8x8xf32>
    %119 = arith.mulf %114, %118 : vector<8x8x8xf32>
    %120 = arith.addf %113, %119 : vector<8x8x8xf32>
    %121 = vector.extract_strided_slice %85 {offsets = [5, 0, 0], sizes = [8, 8, 8], strides = [1, 1, 1]} : vector<14x8x8xf32> to vector<8x8x8xf32>
    %122 = vector.extract_strided_slice %35 {offsets = [36, 0, 0], sizes = [1, 1, 8], strides = [1, 1, 1]} : vector<49x1x8xf32> to vector<1x1x8xf32>
    %123 = vector.shape_cast %122 : vector<1x1x8xf32> to vector<1x8xf32>
    %124 = vector.shape_cast %123 : vector<1x8xf32> to vector<1x1x8xf32>
    %125 = vector.broadcast %124 : vector<1x1x8xf32> to vector<8x8x8xf32>
    %126 = arith.mulf %121, %125 : vector<8x8x8xf32>
    %127 = arith.addf %120, %126 : vector<8x8x8xf32>
    %128 = vector.extract_strided_slice %85 {offsets = [6, 0, 0], sizes = [8, 8, 8], strides = [1, 1, 1]} : vector<14x8x8xf32> to vector<8x8x8xf32>
    %129 = vector.extract_strided_slice %35 {offsets = [43, 0, 0], sizes = [1, 1, 8], strides = [1, 1, 1]} : vector<49x1x8xf32> to vector<1x1x8xf32>
    %130 = vector.shape_cast %129 : vector<1x1x8xf32> to vector<1x8xf32>
    %131 = vector.shape_cast %130 : vector<1x8xf32> to vector<1x1x8xf32>
    %132 = vector.broadcast %131 : vector<1x1x8xf32> to vector<8x8x8xf32>
    %133 = arith.mulf %128, %132 : vector<8x8x8xf32>
    %134 = arith.addf %127, %133 : vector<8x8x8xf32>
    %135 = vector.extract_strided_slice %34 {offsets = [0, 2, 0], sizes = [14, 8, 8], strides = [1, 1, 1]} : vector<14x14x8xf32> to vector<14x8x8xf32>
    %136 = vector.extract_strided_slice %135 {offsets = [0, 0, 0], sizes = [8, 8, 8], strides = [1, 1, 1]} : vector<14x8x8xf32> to vector<8x8x8xf32>
    %137 = vector.extract_strided_slice %35 {offsets = [2, 0, 0], sizes = [1, 1, 8], strides = [1, 1, 1]} : vector<49x1x8xf32> to vector<1x1x8xf32>
    %138 = vector.shape_cast %137 : vector<1x1x8xf32> to vector<1x8xf32>
    %139 = vector.shape_cast %138 : vector<1x8xf32> to vector<1x1x8xf32>
    %140 = vector.broadcast %139 : vector<1x1x8xf32> to vector<8x8x8xf32>
    %141 = arith.mulf %136, %140 : vector<8x8x8xf32>
    %142 = arith.addf %134, %141 : vector<8x8x8xf32>
    %143 = vector.extract_strided_slice %135 {offsets = [1, 0, 0], sizes = [8, 8, 8], strides = [1, 1, 1]} : vector<14x8x8xf32> to vector<8x8x8xf32>
    %144 = vector.extract_strided_slice %35 {offsets = [9, 0, 0], sizes = [1, 1, 8], strides = [1, 1, 1]} : vector<49x1x8xf32> to vector<1x1x8xf32>
    %145 = vector.shape_cast %144 : vector<1x1x8xf32> to vector<1x8xf32>
    %146 = vector.shape_cast %145 : vector<1x8xf32> to vector<1x1x8xf32>
    %147 = vector.broadcast %146 : vector<1x1x8xf32> to vector<8x8x8xf32>
    %148 = arith.mulf %143, %147 : vector<8x8x8xf32>
    %149 = arith.addf %142, %148 : vector<8x8x8xf32>
    %150 = vector.extract_strided_slice %135 {offsets = [2, 0, 0], sizes = [8, 8, 8], strides = [1, 1, 1]} : vector<14x8x8xf32> to vector<8x8x8xf32>
    %151 = vector.extract_strided_slice %35 {offsets = [16, 0, 0], sizes = [1, 1, 8], strides = [1, 1, 1]} : vector<49x1x8xf32> to vector<1x1x8xf32>
    %152 = vector.shape_cast %151 : vector<1x1x8xf32> to vector<1x8xf32>
    %153 = vector.shape_cast %152 : vector<1x8xf32> to vector<1x1x8xf32>
    %154 = vector.broadcast %153 : vector<1x1x8xf32> to vector<8x8x8xf32>
    %155 = arith.mulf %150, %154 : vector<8x8x8xf32>
    %156 = arith.addf %149, %155 : vector<8x8x8xf32>
    %157 = vector.extract_strided_slice %135 {offsets = [3, 0, 0], sizes = [8, 8, 8], strides = [1, 1, 1]} : vector<14x8x8xf32> to vector<8x8x8xf32>
    %158 = vector.extract_strided_slice %35 {offsets = [23, 0, 0], sizes = [1, 1, 8], strides = [1, 1, 1]} : vector<49x1x8xf32> to vector<1x1x8xf32>
    %159 = vector.shape_cast %158 : vector<1x1x8xf32> to vector<1x8xf32>
    %160 = vector.shape_cast %159 : vector<1x8xf32> to vector<1x1x8xf32>
    %161 = vector.broadcast %160 : vector<1x1x8xf32> to vector<8x8x8xf32>
    %162 = arith.mulf %157, %161 : vector<8x8x8xf32>
    %163 = arith.addf %156, %162 : vector<8x8x8xf32>
    %164 = vector.extract_strided_slice %135 {offsets = [4, 0, 0], sizes = [8, 8, 8], strides = [1, 1, 1]} : vector<14x8x8xf32> to vector<8x8x8xf32>
    %165 = vector.extract_strided_slice %35 {offsets = [30, 0, 0], sizes = [1, 1, 8], strides = [1, 1, 1]} : vector<49x1x8xf32> to vector<1x1x8xf32>
    %166 = vector.shape_cast %165 : vector<1x1x8xf32> to vector<1x8xf32>
    %167 = vector.shape_cast %166 : vector<1x8xf32> to vector<1x1x8xf32>
    %168 = vector.broadcast %167 : vector<1x1x8xf32> to vector<8x8x8xf32>
    %169 = arith.mulf %164, %168 : vector<8x8x8xf32>
    %170 = arith.addf %163, %169 : vector<8x8x8xf32>
    %171 = vector.extract_strided_slice %135 {offsets = [5, 0, 0], sizes = [8, 8, 8], strides = [1, 1, 1]} : vector<14x8x8xf32> to vector<8x8x8xf32>
    %172 = vector.extract_strided_slice %35 {offsets = [37, 0, 0], sizes = [1, 1, 8], strides = [1, 1, 1]} : vector<49x1x8xf32> to vector<1x1x8xf32>
    %173 = vector.shape_cast %172 : vector<1x1x8xf32> to vector<1x8xf32>
    %174 = vector.shape_cast %173 : vector<1x8xf32> to vector<1x1x8xf32>
    %175 = vector.broadcast %174 : vector<1x1x8xf32> to vector<8x8x8xf32>
    %176 = arith.mulf %171, %175 : vector<8x8x8xf32>
    %177 = arith.addf %170, %176 : vector<8x8x8xf32>
    %178 = vector.extract_strided_slice %135 {offsets = [6, 0, 0], sizes = [8, 8, 8], strides = [1, 1, 1]} : vector<14x8x8xf32> to vector<8x8x8xf32>
    %179 = vector.extract_strided_slice %35 {offsets = [44, 0, 0], sizes = [1, 1, 8], strides = [1, 1, 1]} : vector<49x1x8xf32> to vector<1x1x8xf32>
    %180 = vector.shape_cast %179 : vector<1x1x8xf32> to vector<1x8xf32>
    %181 = vector.shape_cast %180 : vector<1x8xf32> to vector<1x1x8xf32>
    %182 = vector.broadcast %181 : vector<1x1x8xf32> to vector<8x8x8xf32>
    %183 = arith.mulf %178, %182 : vector<8x8x8xf32>
    %184 = arith.addf %177, %183 : vector<8x8x8xf32>
    %185 = vector.extract_strided_slice %34 {offsets = [0, 3, 0], sizes = [14, 8, 8], strides = [1, 1, 1]} : vector<14x14x8xf32> to vector<14x8x8xf32>
    %186 = vector.extract_strided_slice %185 {offsets = [0, 0, 0], sizes = [8, 8, 8], strides = [1, 1, 1]} : vector<14x8x8xf32> to vector<8x8x8xf32>
    %187 = vector.extract_strided_slice %35 {offsets = [3, 0, 0], sizes = [1, 1, 8], strides = [1, 1, 1]} : vector<49x1x8xf32> to vector<1x1x8xf32>
    %188 = vector.shape_cast %187 : vector<1x1x8xf32> to vector<1x8xf32>
    %189 = vector.shape_cast %188 : vector<1x8xf32> to vector<1x1x8xf32>
    %190 = vector.broadcast %189 : vector<1x1x8xf32> to vector<8x8x8xf32>
    %191 = arith.mulf %186, %190 : vector<8x8x8xf32>
    %192 = arith.addf %184, %191 : vector<8x8x8xf32>
    %193 = vector.extract_strided_slice %185 {offsets = [1, 0, 0], sizes = [8, 8, 8], strides = [1, 1, 1]} : vector<14x8x8xf32> to vector<8x8x8xf32>
    %194 = vector.extract_strided_slice %35 {offsets = [10, 0, 0], sizes = [1, 1, 8], strides = [1, 1, 1]} : vector<49x1x8xf32> to vector<1x1x8xf32>
    %195 = vector.shape_cast %194 : vector<1x1x8xf32> to vector<1x8xf32>
    %196 = vector.shape_cast %195 : vector<1x8xf32> to vector<1x1x8xf32>
    %197 = vector.broadcast %196 : vector<1x1x8xf32> to vector<8x8x8xf32>
    %198 = arith.mulf %193, %197 : vector<8x8x8xf32>
    %199 = arith.addf %192, %198 : vector<8x8x8xf32>
    %200 = vector.extract_strided_slice %185 {offsets = [2, 0, 0], sizes = [8, 8, 8], strides = [1, 1, 1]} : vector<14x8x8xf32> to vector<8x8x8xf32>
    %201 = vector.extract_strided_slice %35 {offsets = [17, 0, 0], sizes = [1, 1, 8], strides = [1, 1, 1]} : vector<49x1x8xf32> to vector<1x1x8xf32>
    %202 = vector.shape_cast %201 : vector<1x1x8xf32> to vector<1x8xf32>
    %203 = vector.shape_cast %202 : vector<1x8xf32> to vector<1x1x8xf32>
    %204 = vector.broadcast %203 : vector<1x1x8xf32> to vector<8x8x8xf32>
    %205 = arith.mulf %200, %204 : vector<8x8x8xf32>
    %206 = arith.addf %199, %205 : vector<8x8x8xf32>
    %207 = vector.extract_strided_slice %185 {offsets = [3, 0, 0], sizes = [8, 8, 8], strides = [1, 1, 1]} : vector<14x8x8xf32> to vector<8x8x8xf32>
    %208 = vector.extract_strided_slice %35 {offsets = [24, 0, 0], sizes = [1, 1, 8], strides = [1, 1, 1]} : vector<49x1x8xf32> to vector<1x1x8xf32>
    %209 = vector.shape_cast %208 : vector<1x1x8xf32> to vector<1x8xf32>
    %210 = vector.shape_cast %209 : vector<1x8xf32> to vector<1x1x8xf32>
    %211 = vector.broadcast %210 : vector<1x1x8xf32> to vector<8x8x8xf32>
    %212 = arith.mulf %207, %211 : vector<8x8x8xf32>
    %213 = arith.addf %206, %212 : vector<8x8x8xf32>
    %214 = vector.extract_strided_slice %185 {offsets = [4, 0, 0], sizes = [8, 8, 8], strides = [1, 1, 1]} : vector<14x8x8xf32> to vector<8x8x8xf32>
    %215 = vector.extract_strided_slice %35 {offsets = [31, 0, 0], sizes = [1, 1, 8], strides = [1, 1, 1]} : vector<49x1x8xf32> to vector<1x1x8xf32>
    %216 = vector.shape_cast %215 : vector<1x1x8xf32> to vector<1x8xf32>
    %217 = vector.shape_cast %216 : vector<1x8xf32> to vector<1x1x8xf32>
    %218 = vector.broadcast %217 : vector<1x1x8xf32> to vector<8x8x8xf32>
    %219 = arith.mulf %214, %218 : vector<8x8x8xf32>
    %220 = arith.addf %213, %219 : vector<8x8x8xf32>
    %221 = vector.extract_strided_slice %185 {offsets = [5, 0, 0], sizes = [8, 8, 8], strides = [1, 1, 1]} : vector<14x8x8xf32> to vector<8x8x8xf32>
    %222 = vector.extract_strided_slice %35 {offsets = [38, 0, 0], sizes = [1, 1, 8], strides = [1, 1, 1]} : vector<49x1x8xf32> to vector<1x1x8xf32>
    %223 = vector.shape_cast %222 : vector<1x1x8xf32> to vector<1x8xf32>
    %224 = vector.shape_cast %223 : vector<1x8xf32> to vector<1x1x8xf32>
    %225 = vector.broadcast %224 : vector<1x1x8xf32> to vector<8x8x8xf32>
    %226 = arith.mulf %221, %225 : vector<8x8x8xf32>
    %227 = arith.addf %220, %226 : vector<8x8x8xf32>
    %228 = vector.extract_strided_slice %185 {offsets = [6, 0, 0], sizes = [8, 8, 8], strides = [1, 1, 1]} : vector<14x8x8xf32> to vector<8x8x8xf32>
    %229 = vector.extract_strided_slice %35 {offsets = [45, 0, 0], sizes = [1, 1, 8], strides = [1, 1, 1]} : vector<49x1x8xf32> to vector<1x1x8xf32>
    %230 = vector.shape_cast %229 : vector<1x1x8xf32> to vector<1x8xf32>
    %231 = vector.shape_cast %230 : vector<1x8xf32> to vector<1x1x8xf32>
    %232 = vector.broadcast %231 : vector<1x1x8xf32> to vector<8x8x8xf32>
    %233 = arith.mulf %228, %232 : vector<8x8x8xf32>
    %234 = arith.addf %227, %233 : vector<8x8x8xf32>
    %235 = vector.extract_strided_slice %34 {offsets = [0, 4, 0], sizes = [14, 8, 8], strides = [1, 1, 1]} : vector<14x14x8xf32> to vector<14x8x8xf32>
    %236 = vector.extract_strided_slice %235 {offsets = [0, 0, 0], sizes = [8, 8, 8], strides = [1, 1, 1]} : vector<14x8x8xf32> to vector<8x8x8xf32>
    %237 = vector.extract_strided_slice %35 {offsets = [4, 0, 0], sizes = [1, 1, 8], strides = [1, 1, 1]} : vector<49x1x8xf32> to vector<1x1x8xf32>
    %238 = vector.shape_cast %237 : vector<1x1x8xf32> to vector<1x8xf32>
    %239 = vector.shape_cast %238 : vector<1x8xf32> to vector<1x1x8xf32>
    %240 = vector.broadcast %239 : vector<1x1x8xf32> to vector<8x8x8xf32>
    %241 = arith.mulf %236, %240 : vector<8x8x8xf32>
    %242 = arith.addf %234, %241 : vector<8x8x8xf32>
    %243 = vector.extract_strided_slice %235 {offsets = [1, 0, 0], sizes = [8, 8, 8], strides = [1, 1, 1]} : vector<14x8x8xf32> to vector<8x8x8xf32>
    %244 = vector.extract_strided_slice %35 {offsets = [11, 0, 0], sizes = [1, 1, 8], strides = [1, 1, 1]} : vector<49x1x8xf32> to vector<1x1x8xf32>
    %245 = vector.shape_cast %244 : vector<1x1x8xf32> to vector<1x8xf32>
    %246 = vector.shape_cast %245 : vector<1x8xf32> to vector<1x1x8xf32>
    %247 = vector.broadcast %246 : vector<1x1x8xf32> to vector<8x8x8xf32>
    %248 = arith.mulf %243, %247 : vector<8x8x8xf32>
    %249 = arith.addf %242, %248 : vector<8x8x8xf32>
    %250 = vector.extract_strided_slice %235 {offsets = [2, 0, 0], sizes = [8, 8, 8], strides = [1, 1, 1]} : vector<14x8x8xf32> to vector<8x8x8xf32>
    %251 = vector.extract_strided_slice %35 {offsets = [18, 0, 0], sizes = [1, 1, 8], strides = [1, 1, 1]} : vector<49x1x8xf32> to vector<1x1x8xf32>
    %252 = vector.shape_cast %251 : vector<1x1x8xf32> to vector<1x8xf32>
    %253 = vector.shape_cast %252 : vector<1x8xf32> to vector<1x1x8xf32>
    %254 = vector.broadcast %253 : vector<1x1x8xf32> to vector<8x8x8xf32>
    %255 = arith.mulf %250, %254 : vector<8x8x8xf32>
    %256 = arith.addf %249, %255 : vector<8x8x8xf32>
    %257 = vector.extract_strided_slice %235 {offsets = [3, 0, 0], sizes = [8, 8, 8], strides = [1, 1, 1]} : vector<14x8x8xf32> to vector<8x8x8xf32>
    %258 = vector.extract_strided_slice %35 {offsets = [25, 0, 0], sizes = [1, 1, 8], strides = [1, 1, 1]} : vector<49x1x8xf32> to vector<1x1x8xf32>
    %259 = vector.shape_cast %258 : vector<1x1x8xf32> to vector<1x8xf32>
    %260 = vector.shape_cast %259 : vector<1x8xf32> to vector<1x1x8xf32>
    %261 = vector.broadcast %260 : vector<1x1x8xf32> to vector<8x8x8xf32>
    %262 = arith.mulf %257, %261 : vector<8x8x8xf32>
    %263 = arith.addf %256, %262 : vector<8x8x8xf32>
    %264 = vector.extract_strided_slice %235 {offsets = [4, 0, 0], sizes = [8, 8, 8], strides = [1, 1, 1]} : vector<14x8x8xf32> to vector<8x8x8xf32>
    %265 = vector.extract_strided_slice %35 {offsets = [32, 0, 0], sizes = [1, 1, 8], strides = [1, 1, 1]} : vector<49x1x8xf32> to vector<1x1x8xf32>
    %266 = vector.shape_cast %265 : vector<1x1x8xf32> to vector<1x8xf32>
    %267 = vector.shape_cast %266 : vector<1x8xf32> to vector<1x1x8xf32>
    %268 = vector.broadcast %267 : vector<1x1x8xf32> to vector<8x8x8xf32>
    %269 = arith.mulf %264, %268 : vector<8x8x8xf32>
    %270 = arith.addf %263, %269 : vector<8x8x8xf32>
    %271 = vector.extract_strided_slice %235 {offsets = [5, 0, 0], sizes = [8, 8, 8], strides = [1, 1, 1]} : vector<14x8x8xf32> to vector<8x8x8xf32>
    %272 = vector.extract_strided_slice %35 {offsets = [39, 0, 0], sizes = [1, 1, 8], strides = [1, 1, 1]} : vector<49x1x8xf32> to vector<1x1x8xf32>
    %273 = vector.shape_cast %272 : vector<1x1x8xf32> to vector<1x8xf32>
    %274 = vector.shape_cast %273 : vector<1x8xf32> to vector<1x1x8xf32>
    %275 = vector.broadcast %274 : vector<1x1x8xf32> to vector<8x8x8xf32>
    %276 = arith.mulf %271, %275 : vector<8x8x8xf32>
    %277 = arith.addf %270, %276 : vector<8x8x8xf32>
    %278 = vector.extract_strided_slice %235 {offsets = [6, 0, 0], sizes = [8, 8, 8], strides = [1, 1, 1]} : vector<14x8x8xf32> to vector<8x8x8xf32>
    %279 = vector.extract_strided_slice %35 {offsets = [46, 0, 0], sizes = [1, 1, 8], strides = [1, 1, 1]} : vector<49x1x8xf32> to vector<1x1x8xf32>
    %280 = vector.shape_cast %279 : vector<1x1x8xf32> to vector<1x8xf32>
    %281 = vector.shape_cast %280 : vector<1x8xf32> to vector<1x1x8xf32>
    %282 = vector.broadcast %281 : vector<1x1x8xf32> to vector<8x8x8xf32>
    %283 = arith.mulf %278, %282 : vector<8x8x8xf32>
    %284 = arith.addf %277, %283 : vector<8x8x8xf32>
    %285 = vector.extract_strided_slice %34 {offsets = [0, 5, 0], sizes = [14, 8, 8], strides = [1, 1, 1]} : vector<14x14x8xf32> to vector<14x8x8xf32>
    %286 = vector.extract_strided_slice %285 {offsets = [0, 0, 0], sizes = [8, 8, 8], strides = [1, 1, 1]} : vector<14x8x8xf32> to vector<8x8x8xf32>
    %287 = vector.extract_strided_slice %35 {offsets = [5, 0, 0], sizes = [1, 1, 8], strides = [1, 1, 1]} : vector<49x1x8xf32> to vector<1x1x8xf32>
    %288 = vector.shape_cast %287 : vector<1x1x8xf32> to vector<1x8xf32>
    %289 = vector.shape_cast %288 : vector<1x8xf32> to vector<1x1x8xf32>
    %290 = vector.broadcast %289 : vector<1x1x8xf32> to vector<8x8x8xf32>
    %291 = arith.mulf %286, %290 : vector<8x8x8xf32>
    %292 = arith.addf %284, %291 : vector<8x8x8xf32>
    %293 = vector.extract_strided_slice %285 {offsets = [1, 0, 0], sizes = [8, 8, 8], strides = [1, 1, 1]} : vector<14x8x8xf32> to vector<8x8x8xf32>
    %294 = vector.extract_strided_slice %35 {offsets = [12, 0, 0], sizes = [1, 1, 8], strides = [1, 1, 1]} : vector<49x1x8xf32> to vector<1x1x8xf32>
    %295 = vector.shape_cast %294 : vector<1x1x8xf32> to vector<1x8xf32>
    %296 = vector.shape_cast %295 : vector<1x8xf32> to vector<1x1x8xf32>
    %297 = vector.broadcast %296 : vector<1x1x8xf32> to vector<8x8x8xf32>
    %298 = arith.mulf %293, %297 : vector<8x8x8xf32>
    %299 = arith.addf %292, %298 : vector<8x8x8xf32>
    %300 = vector.extract_strided_slice %285 {offsets = [2, 0, 0], sizes = [8, 8, 8], strides = [1, 1, 1]} : vector<14x8x8xf32> to vector<8x8x8xf32>
    %301 = vector.extract_strided_slice %35 {offsets = [19, 0, 0], sizes = [1, 1, 8], strides = [1, 1, 1]} : vector<49x1x8xf32> to vector<1x1x8xf32>
    %302 = vector.shape_cast %301 : vector<1x1x8xf32> to vector<1x8xf32>
    %303 = vector.shape_cast %302 : vector<1x8xf32> to vector<1x1x8xf32>
    %304 = vector.broadcast %303 : vector<1x1x8xf32> to vector<8x8x8xf32>
    %305 = arith.mulf %300, %304 : vector<8x8x8xf32>
    %306 = arith.addf %299, %305 : vector<8x8x8xf32>
    %307 = vector.extract_strided_slice %285 {offsets = [3, 0, 0], sizes = [8, 8, 8], strides = [1, 1, 1]} : vector<14x8x8xf32> to vector<8x8x8xf32>
    %308 = vector.extract_strided_slice %35 {offsets = [26, 0, 0], sizes = [1, 1, 8], strides = [1, 1, 1]} : vector<49x1x8xf32> to vector<1x1x8xf32>
    %309 = vector.shape_cast %308 : vector<1x1x8xf32> to vector<1x8xf32>
    %310 = vector.shape_cast %309 : vector<1x8xf32> to vector<1x1x8xf32>
    %311 = vector.broadcast %310 : vector<1x1x8xf32> to vector<8x8x8xf32>
    %312 = arith.mulf %307, %311 : vector<8x8x8xf32>
    %313 = arith.addf %306, %312 : vector<8x8x8xf32>
    %314 = vector.extract_strided_slice %285 {offsets = [4, 0, 0], sizes = [8, 8, 8], strides = [1, 1, 1]} : vector<14x8x8xf32> to vector<8x8x8xf32>
    %315 = vector.extract_strided_slice %35 {offsets = [33, 0, 0], sizes = [1, 1, 8], strides = [1, 1, 1]} : vector<49x1x8xf32> to vector<1x1x8xf32>
    %316 = vector.shape_cast %315 : vector<1x1x8xf32> to vector<1x8xf32>
    %317 = vector.shape_cast %316 : vector<1x8xf32> to vector<1x1x8xf32>
    %318 = vector.broadcast %317 : vector<1x1x8xf32> to vector<8x8x8xf32>
    %319 = arith.mulf %314, %318 : vector<8x8x8xf32>
    %320 = arith.addf %313, %319 : vector<8x8x8xf32>
    %321 = vector.extract_strided_slice %285 {offsets = [5, 0, 0], sizes = [8, 8, 8], strides = [1, 1, 1]} : vector<14x8x8xf32> to vector<8x8x8xf32>
    %322 = vector.extract_strided_slice %35 {offsets = [40, 0, 0], sizes = [1, 1, 8], strides = [1, 1, 1]} : vector<49x1x8xf32> to vector<1x1x8xf32>
    %323 = vector.shape_cast %322 : vector<1x1x8xf32> to vector<1x8xf32>
    %324 = vector.shape_cast %323 : vector<1x8xf32> to vector<1x1x8xf32>
    %325 = vector.broadcast %324 : vector<1x1x8xf32> to vector<8x8x8xf32>
    %326 = arith.mulf %321, %325 : vector<8x8x8xf32>
    %327 = arith.addf %320, %326 : vector<8x8x8xf32>
    %328 = vector.extract_strided_slice %285 {offsets = [6, 0, 0], sizes = [8, 8, 8], strides = [1, 1, 1]} : vector<14x8x8xf32> to vector<8x8x8xf32>
    %329 = vector.extract_strided_slice %35 {offsets = [47, 0, 0], sizes = [1, 1, 8], strides = [1, 1, 1]} : vector<49x1x8xf32> to vector<1x1x8xf32>
    %330 = vector.shape_cast %329 : vector<1x1x8xf32> to vector<1x8xf32>
    %331 = vector.shape_cast %330 : vector<1x8xf32> to vector<1x1x8xf32>
    %332 = vector.broadcast %331 : vector<1x1x8xf32> to vector<8x8x8xf32>
    %333 = arith.mulf %328, %332 : vector<8x8x8xf32>
    %334 = arith.addf %327, %333 : vector<8x8x8xf32>
    %335 = vector.extract_strided_slice %34 {offsets = [0, 6, 0], sizes = [14, 8, 8], strides = [1, 1, 1]} : vector<14x14x8xf32> to vector<14x8x8xf32>
    %336 = vector.extract_strided_slice %335 {offsets = [0, 0, 0], sizes = [8, 8, 8], strides = [1, 1, 1]} : vector<14x8x8xf32> to vector<8x8x8xf32>
    %337 = vector.extract_strided_slice %35 {offsets = [6, 0, 0], sizes = [1, 1, 8], strides = [1, 1, 1]} : vector<49x1x8xf32> to vector<1x1x8xf32>
    %338 = vector.shape_cast %337 : vector<1x1x8xf32> to vector<1x8xf32>
    %339 = vector.shape_cast %338 : vector<1x8xf32> to vector<1x1x8xf32>
    %340 = vector.broadcast %339 : vector<1x1x8xf32> to vector<8x8x8xf32>
    %341 = arith.mulf %336, %340 : vector<8x8x8xf32>
    %342 = arith.addf %334, %341 : vector<8x8x8xf32>
    %343 = vector.extract_strided_slice %335 {offsets = [1, 0, 0], sizes = [8, 8, 8], strides = [1, 1, 1]} : vector<14x8x8xf32> to vector<8x8x8xf32>
    %344 = vector.extract_strided_slice %35 {offsets = [13, 0, 0], sizes = [1, 1, 8], strides = [1, 1, 1]} : vector<49x1x8xf32> to vector<1x1x8xf32>
    %345 = vector.shape_cast %344 : vector<1x1x8xf32> to vector<1x8xf32>
    %346 = vector.shape_cast %345 : vector<1x8xf32> to vector<1x1x8xf32>
    %347 = vector.broadcast %346 : vector<1x1x8xf32> to vector<8x8x8xf32>
    %348 = arith.mulf %343, %347 : vector<8x8x8xf32>
    %349 = arith.addf %342, %348 : vector<8x8x8xf32>
    %350 = vector.extract_strided_slice %335 {offsets = [2, 0, 0], sizes = [8, 8, 8], strides = [1, 1, 1]} : vector<14x8x8xf32> to vector<8x8x8xf32>
    %351 = vector.extract_strided_slice %35 {offsets = [20, 0, 0], sizes = [1, 1, 8], strides = [1, 1, 1]} : vector<49x1x8xf32> to vector<1x1x8xf32>
    %352 = vector.shape_cast %351 : vector<1x1x8xf32> to vector<1x8xf32>
    %353 = vector.shape_cast %352 : vector<1x8xf32> to vector<1x1x8xf32>
    %354 = vector.broadcast %353 : vector<1x1x8xf32> to vector<8x8x8xf32>
    %355 = arith.mulf %350, %354 : vector<8x8x8xf32>
    %356 = arith.addf %349, %355 : vector<8x8x8xf32>
    %357 = vector.extract_strided_slice %335 {offsets = [3, 0, 0], sizes = [8, 8, 8], strides = [1, 1, 1]} : vector<14x8x8xf32> to vector<8x8x8xf32>
    %358 = vector.extract_strided_slice %35 {offsets = [27, 0, 0], sizes = [1, 1, 8], strides = [1, 1, 1]} : vector<49x1x8xf32> to vector<1x1x8xf32>
    %359 = vector.shape_cast %358 : vector<1x1x8xf32> to vector<1x8xf32>
    %360 = vector.shape_cast %359 : vector<1x8xf32> to vector<1x1x8xf32>
    %361 = vector.broadcast %360 : vector<1x1x8xf32> to vector<8x8x8xf32>
    %362 = arith.mulf %357, %361 : vector<8x8x8xf32>
    %363 = arith.addf %356, %362 : vector<8x8x8xf32>
    %364 = vector.extract_strided_slice %335 {offsets = [4, 0, 0], sizes = [8, 8, 8], strides = [1, 1, 1]} : vector<14x8x8xf32> to vector<8x8x8xf32>
    %365 = vector.extract_strided_slice %35 {offsets = [34, 0, 0], sizes = [1, 1, 8], strides = [1, 1, 1]} : vector<49x1x8xf32> to vector<1x1x8xf32>
    %366 = vector.shape_cast %365 : vector<1x1x8xf32> to vector<1x8xf32>
    %367 = vector.shape_cast %366 : vector<1x8xf32> to vector<1x1x8xf32>
    %368 = vector.broadcast %367 : vector<1x1x8xf32> to vector<8x8x8xf32>
    %369 = arith.mulf %364, %368 : vector<8x8x8xf32>
    %370 = arith.addf %363, %369 : vector<8x8x8xf32>
    %371 = vector.extract_strided_slice %335 {offsets = [5, 0, 0], sizes = [8, 8, 8], strides = [1, 1, 1]} : vector<14x8x8xf32> to vector<8x8x8xf32>
    %372 = vector.extract_strided_slice %35 {offsets = [41, 0, 0], sizes = [1, 1, 8], strides = [1, 1, 1]} : vector<49x1x8xf32> to vector<1x1x8xf32>
    %373 = vector.shape_cast %372 : vector<1x1x8xf32> to vector<1x8xf32>
    %374 = vector.shape_cast %373 : vector<1x8xf32> to vector<1x1x8xf32>
    %375 = vector.broadcast %374 : vector<1x1x8xf32> to vector<8x8x8xf32>
    %376 = arith.mulf %371, %375 : vector<8x8x8xf32>
    %377 = arith.addf %370, %376 : vector<8x8x8xf32>
    %378 = vector.extract_strided_slice %335 {offsets = [6, 0, 0], sizes = [8, 8, 8], strides = [1, 1, 1]} : vector<14x8x8xf32> to vector<8x8x8xf32>
    %379 = vector.extract_strided_slice %35 {offsets = [48, 0, 0], sizes = [1, 1, 8], strides = [1, 1, 1]} : vector<49x1x8xf32> to vector<1x1x8xf32>
    %380 = vector.shape_cast %379 : vector<1x1x8xf32> to vector<1x8xf32>
    %381 = vector.shape_cast %380 : vector<1x8xf32> to vector<1x1x8xf32>
    %382 = vector.broadcast %381 : vector<1x1x8xf32> to vector<8x8x8xf32>
    %383 = arith.mulf %378, %382 : vector<8x8x8xf32>
    %384 = arith.addf %377, %383 : vector<8x8x8xf32>
    %c0_35 = arith.constant 0 : index
    %c0_36 = arith.constant 0 : index
    %385 = vector.load %arg7[%c0_35, %c0_36] : memref<1x8xf32, #tpu.memory_space<vmem>>, vector<1x8xf32>
    %386 = vector.shape_cast %385 : vector<1x8xf32> to vector<1x1x8xf32>
    %387 = vector.broadcast %386 : vector<1x1x8xf32> to vector<8x8x8xf32>
    %388 = arith.addf %384, %387 : vector<8x8x8xf32>
    %c0_37 = arith.constant 0 : index
    %c0_38 = arith.constant 0 : index
    %c0_39 = arith.constant 0 : index
    %c0_40 = arith.constant 0 : index
    %389 = vector.load %arg8[%c0_37, %c0_38, %c0_39, %c0_40] : memref<1x8x8x8xf32, #tpu.memory_space<vmem>>, vector<1x8x8x8xf32>
    %390 = vector.shape_cast %389 : vector<1x8x8x8xf32> to vector<8x8x8xf32>
    %391 = vector.shape_cast %388 : vector<8x8x8xf32> to vector<1x8x8x8xf32>
    tpu.vector_store %arg8[%c0_37, %c0_38, %c0_39, %c0_40], %391 {strides = array<i32>} : memref<1x8x8x8xf32, #tpu.memory_space<vmem>>, vector<1x8x8x8xf32>,
    return
  }
  func.func @transform_0(%arg0: i32) -> (i32, i32, i32) {
    %c0_i32 = arith.constant 0 : i32
    %c0_i32_0 = arith.constant 0 : i32
    %c0_i32_1 = arith.constant 0 : i32
    return %arg0, %c0_i32, %c0_i32_0 : i32, i32, i32
  }
  func.func @transform_1(%arg0: i32) -> (i32, i32) {
    %c0_i32 = arith.constant 0 : i32
    %c0_i32_0 = arith.constant 0 : i32
    %c0_i32_1 = arith.constant 0 : i32
    return %c0_i32, %c0_i32_0 : i32, i32
  }
  func.func @transform_2(%arg0: i32) -> (i32, i32) {
    %c0_i32 = arith.constant 0 : i32
    %c0_i32_0 = arith.constant 0 : i32
    %c0_i32_1 = arith.constant 0 : i32
    return %c0_i32, %c0_i32_0 : i32, i32
  }
  func.func @transform_3(%arg0: i32) -> (i32, i32) {
    %c0_i32 = arith.constant 0 : i32
    %c0_i32_0 = arith.constant 0 : i32
    %c0_i32_1 = arith.constant 0 : i32
    return %c0_i32, %c0_i32_0 : i32, i32
  }
  func.func @transform_4(%arg0: i32) -> (i32, i32) {
    %c0_i32 = arith.constant 0 : i32
    %c0_i32_0 = arith.constant 0 : i32
    %c0_i32_1 = arith.constant 0 : i32
    return %c0_i32, %c0_i32_0 : i32, i32
  }
  func.func @transform_5(%arg0: i32) -> (i32, i32, i32) {
    %c0_i32 = arith.constant 0 : i32
    %c0_i32_0 = arith.constant 0 : i32
    %c0_i32_1 = arith.constant 0 : i32
    %c0_i32_2 = arith.constant 0 : i32
    return %c0_i32, %c0_i32_0, %c0_i32_1 : i32, i32, i32
  }
  func.func @transform_6(%arg0: i32) -> (i32, i32) {
    %c0_i32 = arith.constant 0 : i32
    %c0_i32_0 = arith.constant 0 : i32
    %c0_i32_1 = arith.constant 0 : i32
    return %c0_i32, %c0_i32_0 : i32, i32
  }
  func.func @transform_7(%arg0: i32) -> (i32, i32, i32, i32) {
    %c0_i32 = arith.constant 0 : i32
    %c0_i32_0 = arith.constant 0 : i32
    %c0_i32_1 = arith.constant 0 : i32
    %c0_i32_2 = arith.constant 0 : i32
    return %arg0, %c0_i32, %c0_i32_0, %c0_i32_1 : i32, i32, i32, i32
  }
}

</mosaic_0001>

<llo_original>
// kernel: tpu_custom_call.1
$region0: #{tpu_custom_call.1}
  #allocation0 [shape = 'u32[]', space=smem, size = 0x4, offset = 0x4, fixed_abs, tag = 'smem constant byte address 0x4 - core index']
  #allocation1 [shape = 'u32[144,128]{1,0:T(1,128)}', space=vmem, size = 0x12000, scoped, tag = 'internal scratch']
  #allocation2 [shape = 'f32[14,14,8]{2,1,0:T(8,128)}', space=vmem, size = 0x1c000, scoped, tag = 'scratch operand']
  %s0 = inlined_call_operand.vmem [shape: f32[2,256,4], index: 0, kind: input, shape index: {}]
  %s1 = inlined_call_operand.vmem [shape: f32[4,4], index: 1, kind: input, shape index: {}]
  %s2 = inlined_call_operand.vmem [shape: f32[1,4], index: 2, kind: input, shape index: {}]
  %s3 = inlined_call_operand.vmem [shape: f32[4,8], index: 3, kind: input, shape index: {}]
  %s4 = inlined_call_operand.vmem [shape: f32[1,8], index: 4, kind: input, shape index: {}]
  %s5 = inlined_call_operand.vmem [shape: f32[49,1,8], index: 5, kind: input, shape index: {}]
  %s6 = inlined_call_operand.vmem [shape: f32[1,8], index: 6, kind: input, shape index: {}]
  %s7 = inlined_call_operand.hbm [shape: f32[2,8,8,8], index: 7, kind: output, shape index: {}]
  %s8 = sld [smem:[#allocation0]]
  $region61: #{tpu_custom_call.1} parent=0
    _
  %s10 = ssub.s32 1, %s8
  %s11 = scalar_select 0, %s10, %s8
  $region1: #{tpu_custom_call.1} parent=0
    #allocation3 [shape = 'u8[65536]{0}', space=vmem, size = 0x10000, scoped, tag = 'output window, operand 0']
    #allocation4 [shape = 's32[2]{0}', space=sflag, size = 0x8, scoped, tag = 'scoped memory for tpu_custom_call.1']
    %12 = vsyncpa [#allocation4], 0
    %s13 = scalar_lea.sflag [#allocation4], 1
    %14 = vsyncpa %s13, 0
    loop: start=0, step=1, limit=4
    $region2: #{tpu_custom_call.1} parent=1 // loop_pre_header
      _
    $region3: #{tpu_custom_call.1} parent=1 // loop_header
      %s16 = sphi 0, %s20
      %p17 = scmp.ge.s32.totalorder %s16, 4
      %s26 = sphi 0, %s28
      %s29 = sphi 0, %s26
      %s30 = sphi 0, %s29
      %s46 = sphi 0, %s30
      %s50 = sphi 0, %s50
      %s52 = sphi 0, %s50
      %s53 = sphi 0, %s52
      %s67 = sphi 0, %s53
      %s71 = sphi 0, %s71
      %s73 = sphi 0, %s71
      %s74 = sphi 0, %s73
      %s88 = sphi 0, %s74
      %s92 = sphi 0, %s92
      %s94 = sphi 0, %s92
      %s95 = sphi 0, %s94
      %s109 = sphi 0, %s95
      %s113 = sphi 0, %s113
      %s115 = sphi 0, %s113
      %s116 = sphi 0, %s115
      %s130 = sphi 0, %s116
      %s134 = sphi 0, %s134
      %s136 = sphi 0, %s134
      %s137 = sphi 0, %s136
      %s151 = sphi 0, %s137
      %s155 = sphi 0, %s155
      %s157 = sphi 0, %s155
      %s158 = sphi 0, %s157
      %s172 = sphi 0, %s158
      %s178 = sphi 0, %s180
      %s181 = sphi 0, %s178
      %s182 = sphi 0, %s181
      %s198 = sphi 0, %s182
    $region4: #{tpu_custom_call.1} parent=1 // loop_header_branch
      %19 = sbr.rel (%p17) target = $region8
    $region5: #{tpu_custom_call.1} parent=1 // loop_body
      %s21 = ssub.s32 %s16, 1
      %s22 = ssub.s32 %s16, 2
      %s23 = sadd.s32 %s16, 1
      %s24 = ssub.s32 %s16, %s23
      %p25 = scmp.eq.s32.totalorder %s24, 0
      %s27 = sadd.s32 %s26, 1
      %s28 = scalar_select %p25, %s26, %s27
      %p31 = pneg %p25
      %p32 = scmp.eq.s32.totalorder %s16, 1
      %p33 = por %p31, %p32
      %p34 = scmp.ne.s32.totalorder %s26, %s29
      %p35 = scmp.eq.s32.totalorder %s16, 0
      %p36 = por %p34, %p35
      %p37 = scmp.ne.s32.totalorder %s26, %s29
      %p38 = scmp.eq.s32.totalorder %s21, 1
      %p39 = por %p37, %p38
      %p40 = scmp.ne.s32.totalorder %s29, %s30
      %p41 = scmp.eq.s32.totalorder %s21, 0
      %p42 = por %p40, %p41
      %p43 = scmp.ne.s32.totalorder %s29, %s30
      %p44 = scmp.eq.s32.totalorder %s22, 1
      %p45 = por %p43, %p44
      %p47 = scmp.ne.s32.totalorder %s30, %s46
      %p48 = scmp.eq.s32.totalorder %s22, 0
      %p49 = por %p47, %p48
      %s51 = sadd.s32 %s50, 1
      %p54 = scmp.eq.s32.totalorder %s16, 1
      %p55 = scmp.ne.s32.totalorder %s50, %s52
      %p56 = scmp.eq.s32.totalorder %s16, 0
      %p57 = por %p55, %p56
      %p58 = scmp.ne.s32.totalorder %s50, %s52
      %p59 = scmp.eq.s32.totalorder %s21, 1
      %p60 = por %p58, %p59
      %p61 = scmp.ne.s32.totalorder %s52, %s53
      %p62 = scmp.eq.s32.totalorder %s21, 0
      %p63 = por %p61, %p62
      %p64 = scmp.ne.s32.totalorder %s52, %s53
      %p65 = scmp.eq.s32.totalorder %s22, 1
      %p66 = por %p64, %p65
      %p68 = scmp.ne.s32.totalorder %s53, %s67
      %p69 = scmp.eq.s32.totalorder %s22, 0
      %p70 = por %p68, %p69
      %s72 = sadd.s32 %s71, 1
      %p75 = scmp.eq.s32.totalorder %s16, 1
      %p76 = scmp.ne.s32.totalorder %s71, %s73
      %p77 = scmp.eq.s32.totalorder %s16, 0
      %p78 = por %p76, %p77
      %p79 = scmp.ne.s32.totalorder %s71, %s73
      %p80 = scmp.eq.s32.totalorder %s21, 1
      %p81 = por %p79, %p80
      %p82 = scmp.ne.s32.totalorder %s73, %s74
      %p83 = scmp.eq.s32.totalorder %s21, 0
      %p84 = por %p82, %p83
      %p85 = scmp.ne.s32.totalorder %s73, %s74
      %p86 = scmp.eq.s32.totalorder %s22, 1
      %p87 = por %p85, %p86
      %p89 = scmp.ne.s32.totalorder %s74, %s88
      %p90 = scmp.eq.s32.totalorder %s22, 0
      %p91 = por %p89, %p90
      %s93 = sadd.s32 %s92, 1
      %p96 = scmp.eq.s32.totalorder %s16, 1
      %p97 = scmp.ne.s32.totalorder %s92, %s94
      %p98 = scmp.eq.s32.totalorder %s16, 0
      %p99 = por %p97, %p98
      %p100 = scmp.ne.s32.totalorder %s92, %s94
      %p101 = scmp.eq.s32.totalorder %s21, 1
      %p102 = por %p100, %p101
      %p103 = scmp.ne.s32.totalorder %s94, %s95
      %p104 = scmp.eq.s32.totalorder %s21, 0
      %p105 = por %p103, %p104
      %p106 = scmp.ne.s32.totalorder %s94, %s95
      %p107 = scmp.eq.s32.totalorder %s22, 1
      %p108 = por %p106, %p107
      %p110 = scmp.ne.s32.totalorder %s95, %s109
      %p111 = scmp.eq.s32.totalorder %s22, 0
      %p112 = por %p110, %p111
      %s114 = sadd.s32 %s113, 1
      %p117 = scmp.eq.s32.totalorder %s16, 1
      %p118 = scmp.ne.s32.totalorder %s113, %s115
      %p119 = scmp.eq.s32.totalorder %s16, 0
      %p120 = por %p118, %p119
      %p121 = scmp.ne.s32.totalorder %s113, %s115
      %p122 = scmp.eq.s32.totalorder %s21, 1
      %p123 = por %p121, %p122
      %p124 = scmp.ne.s32.totalorder %s115, %s116
      %p125 = scmp.eq.s32.totalorder %s21, 0
      %p126 = por %p124, %p125
      %p127 = scmp.ne.s32.totalorder %s115, %s116
      %p128 = scmp.eq.s32.totalorder %s22, 1
      %p129 = por %p127, %p128
      %p131 = scmp.ne.s32.totalorder %s116, %s130
      %p132 = scmp.eq.s32.totalorder %s22, 0
      %p133 = por %p131, %p132
      %s135 = sadd.s32 %s134, 1
      %p138 = scmp.eq.s32.totalorder %s16, 1
      %p139 = scmp.ne.s32.totalorder %s134, %s136
      %p140 = scmp.eq.s32.totalorder %s16, 0
      %p141 = por %p139, %p140
      %p142 = scmp.ne.s32.totalorder %s134, %s136
      %p143 = scmp.eq.s32.totalorder %s21, 1
      %p144 = por %p142, %p143
      %p145 = scmp.ne.s32.totalorder %s136, %s137
      %p146 = scmp.eq.s32.totalorder %s21, 0
      %p147 = por %p145, %p146
      %p148 = scmp.ne.s32.totalorder %s136, %s137
      %p149 = scmp.eq.s32.totalorder %s22, 1
      %p150 = por %p148, %p149
      %p152 = scmp.ne.s32.totalorder %s137, %s151
      %p153 = scmp.eq.s32.totalorder %s22, 0
      %p154 = por %p152, %p153
      %s156 = sadd.s32 %s155, 1
      %p159 = scmp.eq.s32.totalorder %s16, 1
      %p160 = scmp.ne.s32.totalorder %s155, %s157
      %p161 = scmp.eq.s32.totalorder %s16, 0
      %p162 = por %p160, %p161
      %p163 = scmp.ne.s32.totalorder %s155, %s157
      %p164 = scmp.eq.s32.totalorder %s21, 1
      %p165 = por %p163, %p164
      %p166 = scmp.ne.s32.totalorder %s157, %s158
      %p167 = scmp.eq.s32.totalorder %s21, 0
      %p168 = por %p166, %p167
      %p169 = scmp.ne.s32.totalorder %s157, %s158
      %p170 = scmp.eq.s32.totalorder %s22, 1
      %p171 = por %p169, %p170
      %p173 = scmp.ne.s32.totalorder %s158, %s172
      %p174 = scmp.eq.s32.totalorder %s22, 0
      %p175 = por %p173, %p174
      %s176 = ssub.s32 %s16, %s23
      %p177 = scmp.eq.s32.totalorder %s176, 0
      %s179 = sadd.s32 %s178, 1
      %s180 = scalar_select %p177, %s178, %s179
      %p183 = pneg %p177
      %p184 = scmp.eq.s32.totalorder %s16, 1
      %p185 = por %p183, %p184
      %p186 = scmp.ne.s32.totalorder %s178, %s181
      %p187 = scmp.eq.s32.totalorder %s16, 0
      %p188 = por %p186, %p187
      %p189 = scmp.ne.s32.totalorder %s178, %s181
      %p190 = scmp.eq.s32.totalorder %s21, 1
      %p191 = por %p189, %p190
      %p192 = scmp.ne.s32.totalorder %s181, %s182
      %p193 = scmp.eq.s32.totalorder %s21, 0
      %p194 = por %p192, %p193
      %p195 = scmp.ne.s32.totalorder %s181, %s182
      %p196 = scmp.eq.s32.totalorder %s22, 1
      %p197 = por %p195, %p196
      %p199 = scmp.ne.s32.totalorder %s182, %s198
      %p200 = scmp.eq.s32.totalorder %s22, 0
      %p201 = por %p199, %p200
      %p202 = scmp.le.s32.totalorder 1, %s16
      %p203 = scmp.lt.s32.totalorder %s16, 3
      %p204 = pnand %p202, %p203
      %p205 = pneg %p204
      // Predicated region
      $region9: #{tpu_custom_call.1} parent=5 // pred_check
        _
      $region10: #{tpu_custom_call.1} parent=5 // pred_check_branch
        %207 = sbr.rel (%p204) target = $region12
      $region11: #{tpu_custom_call.1} parent=5 // pred_region
        %s208 = ssub.s32 %s16, 1
        // Predicated region
        $region13: #{tpu_custom_call.1} parent=11 // pred_check
          %p209 = pneg %p63
        $region14: #{tpu_custom_call.1} parent=11 // pred_check_branch
          %211 = sbr.rel (%p209) target = $region16
        $region15: #{tpu_custom_call.1} parent=11 // pred_region
          _
        $region16: #{tpu_custom_call.1} parent=11 // pred_fallthru
          _
        // Predicated region
        $region17: #{tpu_custom_call.1} parent=11 // pred_check
          %p212 = pneg %p84
        $region18: #{tpu_custom_call.1} parent=11 // pred_check_branch
          %214 = sbr.rel (%p212) target = $region20
        $region19: #{tpu_custom_call.1} parent=11 // pred_region
          _
        $region20: #{tpu_custom_call.1} parent=11 // pred_fallthru
          _
        // Predicated region
        $region21: #{tpu_custom_call.1} parent=11 // pred_check
          %p215 = pneg %p105
        $region22: #{tpu_custom_call.1} parent=11 // pred_check_branch
          %217 = sbr.rel (%p215) target = $region24
        $region23: #{tpu_custom_call.1} parent=11 // pred_region
          _
        $region24: #{tpu_custom_call.1} parent=11 // pred_fallthru
          _
        // Predicated region
        $region25: #{tpu_custom_call.1} parent=11 // pred_check
          %p218 = pneg %p126
        $region26: #{tpu_custom_call.1} parent=11 // pred_check_branch
          %220 = sbr.rel (%p218) target = $region28
        $region27: #{tpu_custom_call.1} parent=11 // pred_region
          _
        $region28: #{tpu_custom_call.1} parent=11 // pred_fallthru
          _
        // Predicated region
        $region29: #{tpu_custom_call.1} parent=11 // pred_check
          %p221 = pneg %p147
        $region30: #{tpu_custom_call.1} parent=11 // pred_check_branch
          %223 = sbr.rel (%p221) target = $region32
        $region31: #{tpu_custom_call.1} parent=11 // pred_region
          _
        $region32: #{tpu_custom_call.1} parent=11 // pred_fallthru
          _
        // Predicated region
        $region33: #{tpu_custom_call.1} parent=11 // pred_check
          %p224 = pneg %p168
        $region34: #{tpu_custom_call.1} parent=11 // pred_check_branch
          %226 = sbr.rel (%p224) target = $region36
        $region35: #{tpu_custom_call.1} parent=11 // pred_region
          _
        $region36: #{tpu_custom_call.1} parent=11 // pred_fallthru
          _
      $region12: #{tpu_custom_call.1} parent=5 // pred_fallthru
        _
      %p227 = scmp.lt.s32.totalorder %s16, 2
      // Predicated region
      $region37: #{tpu_custom_call.1} parent=5 // pred_check
        %p228 = pneg %p227
      $region38: #{tpu_custom_call.1} parent=5 // pred_check_branch
        %230 = sbr.rel (%p228) target = $region40
      $region39: #{tpu_custom_call.1} parent=5 // pred_region
        // Predicated region
        $region41: #{tpu_custom_call.1} parent=39 // pred_check
          %p231 = pneg %p36
        $region42: #{tpu_custom_call.1} parent=39 // pred_check_branch
          %233 = sbr.rel (%p231) target = $region44
        $region43: #{tpu_custom_call.1} parent=39 // pred_region
          %p234 = scmp.lt.s32.totalorder %s16, 1
          %s235 = scalar_select %p234, %s16, 1
          %s236 = smul.addr %s235, 32
          %s237 = smul.addr %s236, 8
          %s238 = scalar_lea.vmem %s0, %s237
        $region44: #{tpu_custom_call.1} parent=39 // pred_fallthru
          _
      $region40: #{tpu_custom_call.1} parent=5 // pred_fallthru
        _
      %p239 = scmp.le.s32.totalorder 1, %s16
      %p240 = scmp.lt.s32.totalorder %s16, 3
      %p241 = pnand %p239, %p240
      %p242 = pneg %p241
      // Predicated region
      $region45: #{tpu_custom_call.1} parent=5 // pred_check
        _
      $region46: #{tpu_custom_call.1} parent=5 // pred_check_branch
        %244 = sbr.rel (%p241) target = $region48
      $region47: #{tpu_custom_call.1} parent=5 // pred_region
        %s245 = ssub.s32 %s16, 1
        %p246 = scmp.lt.s32.totalorder %s21, 1
        %s247 = scalar_select %p246, %s21, 1
        %s248 = smul.addr %s247, 32
        %s249 = smul.addr %s248, 8
        %s250 = scalar_lea.vmem %s0, %s249
        %p251 = pneg %p42
        %p252 = pneg %p39
        %p253 = pneg %p63
        %p254 = pneg %p60
        %p255 = pneg %p84
        %p256 = pneg %p81
        %p257 = pneg %p105
        %p258 = pneg %p102
        %p259 = pneg %p126
        %p260 = pneg %p123
        %p261 = pneg %p147
        %p262 = pneg %p144
        %p263 = pneg %p168
        %p264 = pneg %p165
        %p265 = pneg %p194
        %p266 = pneg %p191
        %s267 = sand.u32 %s181, 1
        %s268 = scalar_lea.sflag [#allocation4], %s267
        %s269 = sand.u32 %s181, 1
        %s270 = smul.addr %s269, 64
        %s271 = scalar_lea.vmem [#allocation3], %s270
        %p272 = scmp.lt.s32.totalorder %s21, 1
        %s273 = scalar_select %p272, %s21, 1
        %s274 = smul.addr %s273, 32
        %s275 = smul.addr %s274, 8
        %s276 = scalar_lea.vmem %s0, %s275
        %v277 = vld [vmem:[%s276] sm:$0xff]
        %v278 = vld [vmem:[%s276 + $0x8] sm:$0xff]
        %v279 = vld [vmem:[%s276 + $0x10] sm:$0xff]
        %v280 = vld [vmem:[%s276 + $0x18] sm:$0xff]
        %v281 = vld [vmem:[%s276 + $0x20] sm:$0xff]
        %v282 = vld [vmem:[%s276 + $0x28] sm:$0xff]
        %v283 = vld [vmem:[%s276 + $0x30] sm:$0xff]
        %v284 = vld [vmem:[%s276 + $0x38] sm:$0xff]
        %v285 = vld [vmem:[%s276 + $0x40] sm:$0xff]
        %v286 = vld [vmem:[%s276 + $0x48] sm:$0xff]
        %v287 = vld [vmem:[%s276 + $0x50] sm:$0xff]
        %v288 = vld [vmem:[%s276 + $0x58] sm:$0xff]
        %v289 = vld [vmem:[%s276 + $0x60] sm:$0xff]
        %v290 = vld [vmem:[%s276 + $0x68] sm:$0xff]
        %v291 = vld [vmem:[%s276 + $0x70] sm:$0xff]
        %v292 = vld [vmem:[%s276 + $0x78] sm:$0xff]
        %v293 = vld [vmem:[%s276 + $0x80] sm:$0xff]
        %v294 = vld [vmem:[%s276 + $0x88] sm:$0xff]
        %v295 = vld [vmem:[%s276 + $0x90] sm:$0xff]
        %v296 = vld [vmem:[%s276 + $0x98] sm:$0xff]
        %v297 = vld [vmem:[%s276 + $0xa0] sm:$0xff]
        %v298 = vld [vmem:[%s276 + $0xa8] sm:$0xff]
        %v299 = vld [vmem:[%s276 + $0xb0] sm:$0xff]
        %v300 = vld [vmem:[%s276 + $0xb8] sm:$0xff]
        %v301 = vld [vmem:[%s276 + $0xc0] sm:$0xff]
        %v302 = vld [vmem:[%s276 + $0xc8] sm:$0xff]
        %v303 = vld [vmem:[%s276 + $0xd0] sm:$0xff]
        %v304 = vld [vmem:[%s276 + $0xd8] sm:$0xff]
        %v305 = vld [vmem:[%s276 + $0xe0] sm:$0xff]
        %v306 = vld [vmem:[%s276 + $0xe8] sm:$0xff]
        %v307 = vld [vmem:[%s276 + $0xf0] sm:$0xff]
        %v308 = vld [vmem:[%s276 + $0xf8] sm:$0xff]
        %v309 = vld [vmem:[%s1] sm:$0xf]
        %v310 = vld [vmem:[%s2] sm:$0x1]
        %v312 = vlaneseq
        %v313 = vshrl.u32 %v312, 7
        %v314 = vsub.s32 0, %v313
        %v315 = vrot.slane %v310, %v314
        %vm317 = vcmask 31744
        %v319 = vsel %vm317, %v277, 0
        %v322 = vsel %vm317, %v278, 0
        %v325 = vsel %vm317, %v279, 0
        %v328 = vsel %vm317, %v280, 0
        %v331 = vsel %vm317, %v281, 0
        %v334 = vsel %vm317, %v282, 0
        %v337 = vsel %vm317, %v283, 0
        %v340 = vsel %vm317, %v284, 0
        %v343 = vsel %vm317, %v285, 0
        %v346 = vsel %vm317, %v286, 0
        %v349 = vsel %vm317, %v287, 0
        %v352 = vsel %vm317, %v288, 0
        %v355 = vsel %vm317, %v289, 0
        %v358 = vsel %vm317, %v290, 0
        %v361 = vsel %vm317, %v291, 0
        %v364 = vsel %vm317, %v292, 0
        %v367 = vsel %vm317, %v293, 0
        %v370 = vsel %vm317, %v294, 0
        %v373 = vsel %vm317, %v295, 0
        %v376 = vsel %vm317, %v296, 0
        %v379 = vsel %vm317, %v297, 0
        %v382 = vsel %vm317, %v298, 0
        %v385 = vsel %vm317, %v299, 0
        %v388 = vsel %vm317, %v300, 0
        %v391 = vsel %vm317, %v301, 0
        %v394 = vsel %vm317, %v302, 0
        %v397 = vsel %vm317, %v303, 0
        %v400 = vsel %vm317, %v304, 0
        %v403 = vsel %vm317, %v305, 0
        %v406 = vsel %vm317, %v306, 0
        %v409 = vsel %vm317, %v307, 0
        %v412 = vsel %vm317, %v308, 0
        %vm414 = vcmask 1043456
        %v416 = vsel %vm414, %v309, 0
        %418 = vmatprep.subr.mxu0 0.0
        %419 = vmatpush1.msra.mxu0 0.0
        %420 = vmatprep.subr.mxu0 0.0
        %421 = vmatpush1.msra.mxu0 0.0
        %422 = vmatprep.subr.mxu0 0.0
        %423 = vmatpush1.msra.mxu0 0.0
        %424 = vmatprep.subr.mxu0 0.0
        %425 = vmatpush1.msra.mxu0 0.0
        %426 = vmatprep.subr.mxu0 0.0
        %427 = vmatpush1.msra.mxu0 0.0
        %428 = vmatprep.subr.mxu0 0.0
        %429 = vmatpush1.msra.mxu0 0.0
        %430 = vmatprep.subr.mxu0 0.0
        %431 = vmatpush1.msra.mxu0 0.0
        %432 = vmatprep.subr.mxu0 0.0
        %433 = vmatpush1.msra.mxu0 0.0
        %434 = vmatprep.subr.mxu0 0.0
        %435 = vmatpush1.msra.mxu0 0.0
        %436 = vmatprep.subr.mxu0 0.0
        %437 = vmatpush1.msra.mxu0 0.0
        %438 = vmatprep.subr.mxu0 0.0
        %439 = vmatpush1.msra.mxu0 0.0
        %440 = vmatprep.subr.mxu0 0.0
        %441 = vmatpush1.msra.mxu0 0.0
        %442 = vmatprep.subr.mxu0 0.0
        %443 = vmatpush1.msra.mxu0 0.0
        %444 = vmatprep.subr.mxu0 0.0
        %445 = vmatpush1.msra.mxu0 0.0
        %446 = vmatprep.subr.mxu0 0.0
        %447 = vmatpush1.msra.mxu0 0.0
        %448 = vmatprep.subr.mxu0 0.0
        %449 = vmatpush1.msra.mxu0 %v416
        %450 = vmatprep.subr.mxu0 0.0
        %451 = vmatpush2.msra.mxu0 0.0
        %452 = vmatprep.subr.mxu0 0.0
        %453 = vmatpush2.msra.mxu0 0.0
        %454 = vmatprep.subr.mxu0 0.0
        %455 = vmatpush2.msra.mxu0 0.0
        %456 = vmatprep.subr.mxu0 0.0
        %457 = vmatpush2.msra.mxu0 0.0
        %458 = vmatprep.subr.mxu0 0.0
        %459 = vmatpush2.msra.mxu0 0.0
        %460 = vmatprep.subr.mxu0 0.0
        %461 = vmatpush2.msra.mxu0 0.0
        %462 = vmatprep.subr.mxu0 0.0
        %463 = vmatpush2.msra.mxu0 0.0
        %464 = vmatprep.subr.mxu0 0.0
        %465 = vmatpush2.msra.mxu0 0.0
        %466 = vmatprep.subr.mxu0 0.0
        %467 = vmatpush2.msra.mxu0 0.0
        %468 = vmatprep.subr.mxu0 0.0
        %469 = vmatpush2.msra.mxu0 0.0
        %470 = vmatprep.subr.mxu0 0.0
        %471 = vmatpush2.msra.mxu0 0.0
        %472 = vmatprep.subr.mxu0 0.0
        %473 = vmatpush2.msra.mxu0 0.0
        %474 = vmatprep.subr.mxu0 0.0
        %475 = vmatpush2.msra.mxu0 0.0
        %476 = vmatprep.subr.mxu0 0.0
        %477 = vmatpush2.msra.mxu0 0.0
        %478 = vmatprep.subr.mxu0 0.0
        %479 = vmatpush2.msra.mxu0 0.0
        %480 = vmatprep.subr.mxu0 0.0
        %481 = vmatpush2.msra.mxu0 0.0
        %482 = vmatprep.mubr.f32.mxu0 0.0
        %483 = vmatmul.mubr.f32.gmra.mxu0 %v319
        %v484 = vpop.f32.mrf.mxu0
        %v485 = vadd.f32 %v315, %v484
        %v486 = vpop.f32.mrf.mxu0
        %487 = vmatprep.mubr.f32.mxu0 0.0
        %488 = vmatmul.mubr.f32.gmra.mxu0 %v322
        %v489 = vpop.f32.mrf.mxu0
        %v490 = vadd.f32 %v315, %v489
        %v491 = vpop.f32.mrf.mxu0
        %492 = vmatprep.mubr.f32.mxu0 0.0
        %493 = vmatmul.mubr.f32.gmra.mxu0 %v325
        %v494 = vpop.f32.mrf.mxu0
        %v495 = vadd.f32 %v315, %v494
        %v496 = vpop.f32.mrf.mxu0
        %497 = vmatprep.mubr.f32.mxu0 0.0
        %498 = vmatmul.mubr.f32.gmra.mxu0 %v328
        %v499 = vpop.f32.mrf.mxu0
        %v500 = vadd.f32 %v315, %v499
        %v501 = vpop.f32.mrf.mxu0
        %502 = vmatprep.mubr.f32.mxu0 0.0
        %503 = vmatmul.mubr.f32.gmra.mxu0 %v331
        %v504 = vpop.f32.mrf.mxu0
        %v505 = vadd.f32 %v315, %v504
        %v506 = vpop.f32.mrf.mxu0
        %507 = vmatprep.mubr.f32.mxu0 0.0
        %508 = vmatmul.mubr.f32.gmra.mxu0 %v334
        %v509 = vpop.f32.mrf.mxu0
        %v510 = vadd.f32 %v315, %v509
        %v511 = vpop.f32.mrf.mxu0
        %512 = vmatprep.mubr.f32.mxu0 0.0
        %513 = vmatmul.mubr.f32.gmra.mxu0 %v337
        %v514 = vpop.f32.mrf.mxu0
        %v515 = vadd.f32 %v315, %v514
        %v516 = vpop.f32.mrf.mxu0
        %517 = vmatprep.mubr.f32.mxu0 0.0
        %518 = vmatmul.mubr.f32.gmra.mxu0 %v340
        %v519 = vpop.f32.mrf.mxu0
        %v520 = vadd.f32 %v315, %v519
        %v521 = vpop.f32.mrf.mxu0
        %522 = vmatprep.mubr.f32.mxu0 0.0
        %523 = vmatmul.mubr.f32.gmra.mxu0 %v343
        %v524 = vpop.f32.mrf.mxu0
        %v525 = vadd.f32 %v315, %v524
        %v526 = vpop.f32.mrf.mxu0
        %527 = vmatprep.mubr.f32.mxu0 0.0
        %528 = vmatmul.mubr.f32.gmra.mxu0 %v346
        %v529 = vpop.f32.mrf.mxu0
        %v530 = vadd.f32 %v315, %v529
        %v531 = vpop.f32.mrf.mxu0
        %532 = vmatprep.mubr.f32.mxu0 0.0
        %533 = vmatmul.mubr.f32.gmra.mxu0 %v349
        %v534 = vpop.f32.mrf.mxu0
        %v535 = vadd.f32 %v315, %v534
        %v536 = vpop.f32.mrf.mxu0
        %537 = vmatprep.mubr.f32.mxu0 0.0
        %538 = vmatmul.mubr.f32.gmra.mxu0 %v352
        %v539 = vpop.f32.mrf.mxu0
        %v540 = vadd.f32 %v315, %v539
        %v541 = vpop.f32.mrf.mxu0
        %542 = vmatprep.mubr.f32.mxu0 0.0
        %543 = vmatmul.mubr.f32.gmra.mxu0 %v355
        %v544 = vpop.f32.mrf.mxu0
        %v545 = vadd.f32 %v315, %v544
        %v546 = vpop.f32.mrf.mxu0
        %547 = vmatprep.mubr.f32.mxu0 0.0
        %548 = vmatmul.mubr.f32.gmra.mxu0 %v358
        %v549 = vpop.f32.mrf.mxu0
        %v550 = vadd.f32 %v315, %v549
        %v551 = vpop.f32.mrf.mxu0
        %552 = vmatprep.mubr.f32.mxu0 0.0
        %553 = vmatmul.mubr.f32.gmra.mxu0 %v361
        %v554 = vpop.f32.mrf.mxu0
        %v555 = vadd.f32 %v315, %v554
        %v556 = vpop.f32.mrf.mxu0
        %557 = vmatprep.mubr.f32.mxu0 0.0
        %558 = vmatmul.mubr.f32.gmra.mxu0 %v364
        %v559 = vpop.f32.mrf.mxu0
        %v560 = vadd.f32 %v315, %v559
        %v561 = vpop.f32.mrf.mxu0
        %562 = vmatprep.mubr.f32.mxu0 0.0
        %563 = vmatmul.mubr.f32.gmra.mxu0 %v367
        %v564 = vpop.f32.mrf.mxu0
        %v565 = vadd.f32 %v315, %v564
        %v566 = vpop.f32.mrf.mxu0
        %567 = vmatprep.mubr.f32.mxu0 0.0
        %568 = vmatmul.mubr.f32.gmra.mxu0 %v370
        %v569 = vpop.f32.mrf.mxu0
        %v570 = vadd.f32 %v315, %v569
        %v571 = vpop.f32.mrf.mxu0
        %572 = vmatprep.mubr.f32.mxu0 0.0
        %573 = vmatmul.mubr.f32.gmra.mxu0 %v373
        %v574 = vpop.f32.mrf.mxu0
        %v575 = vadd.f32 %v315, %v574
        %v576 = vpop.f32.mrf.mxu0
        %577 = vmatprep.mubr.f32.mxu0 0.0
        %578 = vmatmul.mubr.f32.gmra.mxu0 %v376
        %v579 = vpop.f32.mrf.mxu0
        %v580 = vadd.f32 %v315, %v579
        %v581 = vpop.f32.mrf.mxu0
        %582 = vmatprep.mubr.f32.mxu0 0.0
        %583 = vmatmul.mubr.f32.gmra.mxu0 %v379
        %v584 = vpop.f32.mrf.mxu0
        %v585 = vadd.f32 %v315, %v584
        %v586 = vpop.f32.mrf.mxu0
        %587 = vmatprep.mubr.f32.mxu0 0.0
        %588 = vmatmul.mubr.f32.gmra.mxu0 %v382
        %v589 = vpop.f32.mrf.mxu0
        %v590 = vadd.f32 %v315, %v589
        %v591 = vpop.f32.mrf.mxu0
        %592 = vmatprep.mubr.f32.mxu0 0.0
        %593 = vmatmul.mubr.f32.gmra.mxu0 %v385
        %v594 = vpop.f32.mrf.mxu0
        %v595 = vadd.f32 %v315, %v594
        %v596 = vpop.f32.mrf.mxu0
        %597 = vmatprep.mubr.f32.mxu0 0.0
        %598 = vmatmul.mubr.f32.gmra.mxu0 %v388
        %v599 = vpop.f32.mrf.mxu0
        %v600 = vadd.f32 %v315, %v599
        %v601 = vpop.f32.mrf.mxu0
        %602 = vmatprep.mubr.f32.mxu0 0.0
        %603 = vmatmul.mubr.f32.gmra.mxu0 %v391
        %v604 = vpop.f32.mrf.mxu0
        %v605 = vadd.f32 %v315, %v604
        %v606 = vpop.f32.mrf.mxu0
        %607 = vmatprep.mubr.f32.mxu0 0.0
        %608 = vmatmul.mubr.f32.gmra.mxu0 %v394
        %v609 = vpop.f32.mrf.mxu0
        %v610 = vadd.f32 %v315, %v609
        %v611 = vpop.f32.mrf.mxu0
        %612 = vmatprep.mubr.f32.mxu0 0.0
        %613 = vmatmul.mubr.f32.gmra.mxu0 %v397
        %v614 = vpop.f32.mrf.mxu0
        %v615 = vadd.f32 %v315, %v614
        %v616 = vpop.f32.mrf.mxu0
        %617 = vmatprep.mubr.f32.mxu0 0.0
        %618 = vmatmul.mubr.f32.gmra.mxu0 %v400
        %v619 = vpop.f32.mrf.mxu0
        %v620 = vadd.f32 %v315, %v619
        %v621 = vpop.f32.mrf.mxu0
        %622 = vmatprep.mubr.f32.mxu0 0.0
        %623 = vmatmul.mubr.f32.gmra.mxu0 %v403
        %v624 = vpop.f32.mrf.mxu0
        %v625 = vadd.f32 %v315, %v624
        %v626 = vpop.f32.mrf.mxu0
        %627 = vmatprep.mubr.f32.mxu0 0.0
        %628 = vmatmul.mubr.f32.gmra.mxu0 %v406
        %v629 = vpop.f32.mrf.mxu0
        %v630 = vadd.f32 %v315, %v629
        %v631 = vpop.f32.mrf.mxu0
        %632 = vmatprep.mubr.f32.mxu0 0.0
        %633 = vmatmul.mubr.f32.gmra.mxu0 %v409
        %v634 = vpop.f32.mrf.mxu0
        %v635 = vadd.f32 %v315, %v634
        %v636 = vpop.f32.mrf.mxu0
        %637 = vmatprep.mubr.f32.mxu0 0.0
        %638 = vmatmul.mubr.f32.gmra.mxu0 %v412
        %v639 = vpop.f32.mrf.mxu0
        %v640 = vadd.f32 %v315, %v639
        %v641 = vpop.f32.mrf.mxu0
        %642 = vdwg.mxu0
        %vm643 = vcmp.gt.f32.partialorder %v485, 0.0
        %vm644 = vcmp.gt.f32.partialorder %v490, 0.0
        %vm645 = vcmp.gt.f32.partialorder %v495, 0.0
        %vm646 = vcmp.gt.f32.partialorder %v500, 0.0
        %vm647 = vcmp.gt.f32.partialorder %v505, 0.0
        %vm648 = vcmp.gt.f32.partialorder %v510, 0.0
        %vm649 = vcmp.gt.f32.partialorder %v515, 0.0
        %vm650 = vcmp.gt.f32.partialorder %v520, 0.0
        %vm651 = vcmp.gt.f32.partialorder %v525, 0.0
        %vm652 = vcmp.gt.f32.partialorder %v530, 0.0
        %vm653 = vcmp.gt.f32.partialorder %v535, 0.0
        %vm654 = vcmp.gt.f32.partialorder %v540, 0.0
        %vm655 = vcmp.gt.f32.partialorder %v545, 0.0
        %vm656 = vcmp.gt.f32.partialorder %v550, 0.0
        %vm657 = vcmp.gt.f32.partialorder %v555, 0.0
        %vm658 = vcmp.gt.f32.partialorder %v560, 0.0
        %vm659 = vcmp.gt.f32.partialorder %v565, 0.0
        %vm660 = vcmp.gt.f32.partialorder %v570, 0.0
        %vm661 = vcmp.gt.f32.partialorder %v575, 0.0
        %vm662 = vcmp.gt.f32.partialorder %v580, 0.0
        %vm663 = vcmp.gt.f32.partialorder %v585, 0.0
        %vm664 = vcmp.gt.f32.partialorder %v590, 0.0
        %vm665 = vcmp.gt.f32.partialorder %v595, 0.0
        %vm666 = vcmp.gt.f32.partialorder %v600, 0.0
        %vm667 = vcmp.gt.f32.partialorder %v605, 0.0
        %vm668 = vcmp.gt.f32.partialorder %v610, 0.0
        %vm669 = vcmp.gt.f32.partialorder %v615, 0.0
        %vm670 = vcmp.gt.f32.partialorder %v620, 0.0
        %vm671 = vcmp.gt.f32.partialorder %v625, 0.0
        %vm672 = vcmp.gt.f32.partialorder %v630, 0.0
        %vm673 = vcmp.gt.f32.partialorder %v635, 0.0
        %vm674 = vcmp.gt.f32.partialorder %v640, 0.0
        %v675 = vmul.f32 %v485, 0.1
        %v676 = vmul.f32 %v490, 0.1
        %v677 = vmul.f32 %v495, 0.1
        %v678 = vmul.f32 %v500, 0.1
        %v679 = vmul.f32 %v505, 0.1
        %v680 = vmul.f32 %v510, 0.1
        %v681 = vmul.f32 %v515, 0.1
        %v682 = vmul.f32 %v520, 0.1
        %v683 = vmul.f32 %v525, 0.1
        %v684 = vmul.f32 %v530, 0.1
        %v685 = vmul.f32 %v535, 0.1
        %v686 = vmul.f32 %v540, 0.1
        %v687 = vmul.f32 %v545, 0.1
        %v688 = vmul.f32 %v550, 0.1
        %v689 = vmul.f32 %v555, 0.1
        %v690 = vmul.f32 %v560, 0.1
        %v691 = vmul.f32 %v565, 0.1
        %v692 = vmul.f32 %v570, 0.1
        %v693 = vmul.f32 %v575, 0.1
        %v694 = vmul.f32 %v580, 0.1
        %v695 = vmul.f32 %v585, 0.1
        %v696 = vmul.f32 %v590, 0.1
        %v697 = vmul.f32 %v595, 0.1
        %v698 = vmul.f32 %v600, 0.1
        %v699 = vmul.f32 %v605, 0.1
        %v700 = vmul.f32 %v610, 0.1
        %v701 = vmul.f32 %v615, 0.1
        %v702 = vmul.f32 %v620, 0.1
        %v703 = vmul.f32 %v625, 0.1
        %v704 = vmul.f32 %v630, 0.1
        %v705 = vmul.f32 %v635, 0.1
        %v706 = vmul.f32 %v640, 0.1
        %v707 = vsel %vm643, %v485, %v675
        %v708 = vsel %vm644, %v490, %v676
        %v709 = vsel %vm645, %v495, %v677
        %v710 = vsel %vm646, %v500, %v678
        %v711 = vsel %vm647, %v505, %v679
        %v712 = vsel %vm648, %v510, %v680
        %v713 = vsel %vm649, %v515, %v681
        %v714 = vsel %vm650, %v520, %v682
        %v715 = vsel %vm651, %v525, %v683
        %v716 = vsel %vm652, %v530, %v684
        %v717 = vsel %vm653, %v535, %v685
        %v718 = vsel %vm654, %v540, %v686
        %v719 = vsel %vm655, %v545, %v687
        %v720 = vsel %vm656, %v550, %v688
        %v721 = vsel %vm657, %v555, %v689
        %v722 = vsel %vm658, %v560, %v690
        %v723 = vsel %vm659, %v565, %v691
        %v724 = vsel %vm660, %v570, %v692
        %v725 = vsel %vm661, %v575, %v693
        %v726 = vsel %vm662, %v580, %v694
        %v727 = vsel %vm663, %v585, %v695
        %v728 = vsel %vm664, %v590, %v696
        %v729 = vsel %vm665, %v595, %v697
        %v730 = vsel %vm666, %v600, %v698
        %v731 = vsel %vm667, %v605, %v699
        %v732 = vsel %vm668, %v610, %v700
        %v733 = vsel %vm669, %v615, %v701
        %v734 = vsel %vm670, %v620, %v702
        %v735 = vsel %vm671, %v625, %v703
        %v736 = vsel %vm672, %v630, %v704
        %v737 = vsel %vm673, %v635, %v705
        %v738 = vsel %vm674, %v640, %v706
        %v739 = vld [vmem:[%s3] sm:$0xf]
        %v740 = vld [vmem:[%s4] sm:$0x1]
        %v742 = vlaneseq
        %v743 = vshrl.u32 %v742, 7
        %v744 = vsub.s32 0, %v743
        %v745 = vrot.slane %v740, %v744
        %v748 = vsel %vm317, %v707, 0
        %v751 = vsel %vm317, %v708, 0
        %v754 = vsel %vm317, %v709, 0
        %v757 = vsel %vm317, %v710, 0
        %v760 = vsel %vm317, %v711, 0
        %v763 = vsel %vm317, %v712, 0
        %v766 = vsel %vm317, %v713, 0
        %v769 = vsel %vm317, %v714, 0
        %v772 = vsel %vm317, %v715, 0
        %v775 = vsel %vm317, %v716, 0
        %v778 = vsel %vm317, %v717, 0
        %v781 = vsel %vm317, %v718, 0
        %v784 = vsel %vm317, %v719, 0
        %v787 = vsel %vm317, %v720, 0
        %v790 = vsel %vm317, %v721, 0
        %v793 = vsel %vm317, %v722, 0
        %v796 = vsel %vm317, %v723, 0
        %v799 = vsel %vm317, %v724, 0
        %v802 = vsel %vm317, %v725, 0
        %v805 = vsel %vm317, %v726, 0
        %v808 = vsel %vm317, %v727, 0
        %v811 = vsel %vm317, %v728, 0
        %v814 = vsel %vm317, %v729, 0
        %v817 = vsel %vm317, %v730, 0
        %v820 = vsel %vm317, %v731, 0
        %v823 = vsel %vm317, %v732, 0
        %v826 = vsel %vm317, %v733, 0
        %v829 = vsel %vm317, %v734, 0
        %v832 = vsel %vm317, %v735, 0
        %v835 = vsel %vm317, %v736, 0
        %v838 = vsel %vm317, %v737, 0
        %v841 = vsel %vm317, %v738, 0
        %v844 = vsel %vm414, %v739, 0
        %846 = vmatprep.subr.mxu0 0.0
        %847 = vmatpush1.msra.mxu0 0.0
        %848 = vmatprep.subr.mxu0 0.0
        %849 = vmatpush1.msra.mxu0 0.0
        %850 = vmatprep.subr.mxu0 0.0
        %851 = vmatpush1.msra.mxu0 0.0
        %852 = vmatprep.subr.mxu0 0.0
        %853 = vmatpush1.msra.mxu0 0.0
        %854 = vmatprep.subr.mxu0 0.0
        %855 = vmatpush1.msra.mxu0 0.0
        %856 = vmatprep.subr.mxu0 0.0
        %857 = vmatpush1.msra.mxu0 0.0
        %858 = vmatprep.subr.mxu0 0.0
        %859 = vmatpush1.msra.mxu0 0.0
        %860 = vmatprep.subr.mxu0 0.0
        %861 = vmatpush1.msra.mxu0 0.0
        %862 = vmatprep.subr.mxu0 0.0
        %863 = vmatpush1.msra.mxu0 0.0
        %864 = vmatprep.subr.mxu0 0.0
        %865 = vmatpush1.msra.mxu0 0.0
        %866 = vmatprep.subr.mxu0 0.0
        %867 = vmatpush1.msra.mxu0 0.0
        %868 = vmatprep.subr.mxu0 0.0
        %869 = vmatpush1.msra.mxu0 0.0
        %870 = vmatprep.subr.mxu0 0.0
        %871 = vmatpush1.msra.mxu0 0.0
        %872 = vmatprep.subr.mxu0 0.0
        %873 = vmatpush1.msra.mxu0 0.0
        %874 = vmatprep.subr.mxu0 0.0
        %875 = vmatpush1.msra.mxu0 0.0
        %876 = vmatprep.subr.mxu0 0.0
        %877 = vmatpush1.msra.mxu0 %v844
        %878 = vmatprep.subr.mxu0 0.0
        %879 = vmatpush2.msra.mxu0 0.0
        %880 = vmatprep.subr.mxu0 0.0
        %881 = vmatpush2.msra.mxu0 0.0
        %882 = vmatprep.subr.mxu0 0.0
        %883 = vmatpush2.msra.mxu0 0.0
        %884 = vmatprep.subr.mxu0 0.0
        %885 = vmatpush2.msra.mxu0 0.0
        %886 = vmatprep.subr.mxu0 0.0
        %887 = vmatpush2.msra.mxu0 0.0
        %888 = vmatprep.subr.mxu0 0.0
        %889 = vmatpush2.msra.mxu0 0.0
        %890 = vmatprep.subr.mxu0 0.0
        %891 = vmatpush2.msra.mxu0 0.0
        %892 = vmatprep.subr.mxu0 0.0
        %893 = vmatpush2.msra.mxu0 0.0
        %894 = vmatprep.subr.mxu0 0.0
        %895 = vmatpush2.msra.mxu0 0.0
        %896 = vmatprep.subr.mxu0 0.0
        %897 = vmatpush2.msra.mxu0 0.0
        %898 = vmatprep.subr.mxu0 0.0
        %899 = vmatpush2.msra.mxu0 0.0
        %900 = vmatprep.subr.mxu0 0.0
        %901 = vmatpush2.msra.mxu0 0.0
        %902 = vmatprep.subr.mxu0 0.0
        %903 = vmatpush2.msra.mxu0 0.0
        %904 = vmatprep.subr.mxu0 0.0
        %905 = vmatpush2.msra.mxu0 0.0
        %906 = vmatprep.subr.mxu0 0.0
        %907 = vmatpush2.msra.mxu0 0.0
        %908 = vmatprep.subr.mxu0 0.0
        %909 = vmatpush2.msra.mxu0 0.0
        %910 = vmatprep.mubr.f32.mxu0 0.0
        %911 = vmatmul.mubr.f32.gmra.mxu0 %v748
        %v912 = vpop.f32.mrf.mxu0
        %v913 = vadd.f32 %v745, %v912
        %v914 = vpop.f32.mrf.mxu0
        %915 = vmatprep.mubr.f32.mxu0 0.0
        %916 = vmatmul.mubr.f32.gmra.mxu0 %v751
        %v917 = vpop.f32.mrf.mxu0
        %v918 = vadd.f32 %v745, %v917
        %v919 = vpop.f32.mrf.mxu0
        %920 = vmatprep.mubr.f32.mxu0 0.0
        %921 = vmatmul.mubr.f32.gmra.mxu0 %v754
        %v922 = vpop.f32.mrf.mxu0
        %v923 = vadd.f32 %v745, %v922
        %v924 = vpop.f32.mrf.mxu0
        %925 = vmatprep.mubr.f32.mxu0 0.0
        %926 = vmatmul.mubr.f32.gmra.mxu0 %v757
        %v927 = vpop.f32.mrf.mxu0
        %v928 = vadd.f32 %v745, %v927
        %v929 = vpop.f32.mrf.mxu0
        %930 = vmatprep.mubr.f32.mxu0 0.0
        %931 = vmatmul.mubr.f32.gmra.mxu0 %v760
        %v932 = vpop.f32.mrf.mxu0
        %v933 = vadd.f32 %v745, %v932
        %v934 = vpop.f32.mrf.mxu0
        %935 = vmatprep.mubr.f32.mxu0 0.0
        %936 = vmatmul.mubr.f32.gmra.mxu0 %v763
        %v937 = vpop.f32.mrf.mxu0
        %v938 = vadd.f32 %v745, %v937
        %v939 = vpop.f32.mrf.mxu0
        %940 = vmatprep.mubr.f32.mxu0 0.0
        %941 = vmatmul.mubr.f32.gmra.mxu0 %v766
        %v942 = vpop.f32.mrf.mxu0
        %v943 = vadd.f32 %v745, %v942
        %v944 = vpop.f32.mrf.mxu0
        %945 = vmatprep.mubr.f32.mxu0 0.0
        %946 = vmatmul.mubr.f32.gmra.mxu0 %v769
        %v947 = vpop.f32.mrf.mxu0
        %v948 = vadd.f32 %v745, %v947
        %v949 = vpop.f32.mrf.mxu0
        %950 = vmatprep.mubr.f32.mxu0 0.0
        %951 = vmatmul.mubr.f32.gmra.mxu0 %v772
        %v952 = vpop.f32.mrf.mxu0
        %v953 = vadd.f32 %v745, %v952
        %v954 = vpop.f32.mrf.mxu0
        %955 = vmatprep.mubr.f32.mxu0 0.0
        %956 = vmatmul.mubr.f32.gmra.mxu0 %v775
        %v957 = vpop.f32.mrf.mxu0
        %v958 = vadd.f32 %v745, %v957
        %v959 = vpop.f32.mrf.mxu0
        %960 = vmatprep.mubr.f32.mxu0 0.0
        %961 = vmatmul.mubr.f32.gmra.mxu0 %v778
        %v962 = vpop.f32.mrf.mxu0
        %v963 = vadd.f32 %v745, %v962
        %v964 = vpop.f32.mrf.mxu0
        %965 = vmatprep.mubr.f32.mxu0 0.0
        %966 = vmatmul.mubr.f32.gmra.mxu0 %v781
        %v967 = vpop.f32.mrf.mxu0
        %v968 = vadd.f32 %v745, %v967
        %v969 = vpop.f32.mrf.mxu0
        %970 = vmatprep.mubr.f32.mxu0 0.0
        %971 = vmatmul.mubr.f32.gmra.mxu0 %v784
        %v972 = vpop.f32.mrf.mxu0
        %v973 = vadd.f32 %v745, %v972
        %v974 = vpop.f32.mrf.mxu0
        %975 = vmatprep.mubr.f32.mxu0 0.0
        %976 = vmatmul.mubr.f32.gmra.mxu0 %v787
        %v977 = vpop.f32.mrf.mxu0
        %v978 = vadd.f32 %v745, %v977
        %v979 = vpop.f32.mrf.mxu0
        %980 = vmatprep.mubr.f32.mxu0 0.0
        %981 = vmatmul.mubr.f32.gmra.mxu0 %v790
        %v982 = vpop.f32.mrf.mxu0
        %v983 = vadd.f32 %v745, %v982
        %v984 = vpop.f32.mrf.mxu0
        %985 = vmatprep.mubr.f32.mxu0 0.0
        %986 = vmatmul.mubr.f32.gmra.mxu0 %v793
        %v987 = vpop.f32.mrf.mxu0
        %v988 = vadd.f32 %v745, %v987
        %v989 = vpop.f32.mrf.mxu0
        %990 = vmatprep.mubr.f32.mxu0 0.0
        %991 = vmatmul.mubr.f32.gmra.mxu0 %v796
        %v992 = vpop.f32.mrf.mxu0
        %v993 = vadd.f32 %v745, %v992
        %v994 = vpop.f32.mrf.mxu0
        %995 = vmatprep.mubr.f32.mxu0 0.0
        %996 = vmatmul.mubr.f32.gmra.mxu0 %v799
        %v997 = vpop.f32.mrf.mxu0
        %v998 = vadd.f32 %v745, %v997
        %v999 = vpop.f32.mrf.mxu0
        %1000 = vmatprep.mubr.f32.mxu0 0.0
        %1001 = vmatmul.mubr.f32.gmra.mxu0 %v802
        %v1002 = vpop.f32.mrf.mxu0
        %v1003 = vadd.f32 %v745, %v1002
        %v1004 = vpop.f32.mrf.mxu0
        %1005 = vmatprep.mubr.f32.mxu0 0.0
        %1006 = vmatmul.mubr.f32.gmra.mxu0 %v805
        %v1007 = vpop.f32.mrf.mxu0
        %v1008 = vadd.f32 %v745, %v1007
        %v1009 = vpop.f32.mrf.mxu0
        %1010 = vmatprep.mubr.f32.mxu0 0.0
        %1011 = vmatmul.mubr.f32.gmra.mxu0 %v808
        %v1012 = vpop.f32.mrf.mxu0
        %v1013 = vadd.f32 %v745, %v1012
        %v1014 = vpop.f32.mrf.mxu0
        %1015 = vmatprep.mubr.f32.mxu0 0.0
        %1016 = vmatmul.mubr.f32.gmra.mxu0 %v811
        %v1017 = vpop.f32.mrf.mxu0
        %v1018 = vadd.f32 %v745, %v1017
        %v1019 = vpop.f32.mrf.mxu0
        %1020 = vmatprep.mubr.f32.mxu0 0.0
        %1021 = vmatmul.mubr.f32.gmra.mxu0 %v814
        %v1022 = vpop.f32.mrf.mxu0
        %v1023 = vadd.f32 %v745, %v1022
        %v1024 = vpop.f32.mrf.mxu0
        %1025 = vmatprep.mubr.f32.mxu0 0.0
        %1026 = vmatmul.mubr.f32.gmra.mxu0 %v817
        %v1027 = vpop.f32.mrf.mxu0
        %v1028 = vadd.f32 %v745, %v1027
        %v1029 = vpop.f32.mrf.mxu0
        %1030 = vmatprep.mubr.f32.mxu0 0.0
        %1031 = vmatmul.mubr.f32.gmra.mxu0 %v820
        %v1032 = vpop.f32.mrf.mxu0
        %v1033 = vadd.f32 %v745, %v1032
        %v1034 = vpop.f32.mrf.mxu0
        %1035 = vmatprep.mubr.f32.mxu0 0.0
        %1036 = vmatmul.mubr.f32.gmra.mxu0 %v823
        %v1037 = vpop.f32.mrf.mxu0
        %v1038 = vadd.f32 %v745, %v1037
        %v1039 = vpop.f32.mrf.mxu0
        %1040 = vmatprep.mubr.f32.mxu0 0.0
        %1041 = vmatmul.mubr.f32.gmra.mxu0 %v826
        %v1042 = vpop.f32.mrf.mxu0
        %v1043 = vadd.f32 %v745, %v1042
        %v1044 = vpop.f32.mrf.mxu0
        %1045 = vmatprep.mubr.f32.mxu0 0.0
        %1046 = vmatmul.mubr.f32.gmra.mxu0 %v829
        %v1047 = vpop.f32.mrf.mxu0
        %v1048 = vadd.f32 %v745, %v1047
        %v1049 = vpop.f32.mrf.mxu0
        %1050 = vmatprep.mubr.f32.mxu0 0.0
        %1051 = vmatmul.mubr.f32.gmra.mxu0 %v832
        %v1052 = vpop.f32.mrf.mxu0
        %v1053 = vadd.f32 %v745, %v1052
        %v1054 = vpop.f32.mrf.mxu0
        %1055 = vmatprep.mubr.f32.mxu0 0.0
        %1056 = vmatmul.mubr.f32.gmra.mxu0 %v835
        %v1057 = vpop.f32.mrf.mxu0
        %v1058 = vadd.f32 %v745, %v1057
        %v1059 = vpop.f32.mrf.mxu0
        %1060 = vmatprep.mubr.f32.mxu0 0.0
        %1061 = vmatmul.mubr.f32.gmra.mxu0 %v838
        %v1062 = vpop.f32.mrf.mxu0
        %v1063 = vadd.f32 %v745, %v1062
        %v1064 = vpop.f32.mrf.mxu0
        %1065 = vmatprep.mubr.f32.mxu0 0.0
        %1066 = vmatmul.mubr.f32.gmra.mxu0 %v841
        %v1067 = vpop.f32.mrf.mxu0
        %v1068 = vadd.f32 %v745, %v1067
        %v1069 = vpop.f32.mrf.mxu0
        %1070 = vdwg.mxu0
        %v1071 = vmax.f32 %v913, %v953
        %v1072 = vmax.f32 %v918, %v958
        %v1073 = vmax.f32 %v923, %v963
        %v1074 = vmax.f32 %v928, %v968
        %v1075 = vmax.f32 %v933, %v973
        %v1076 = vmax.f32 %v938, %v978
        %v1077 = vmax.f32 %v943, %v983
        %v1078 = vmax.f32 %v948, %v988
        %v1079 = vmax.f32 %v993, %v1033
        %v1080 = vmax.f32 %v998, %v1038
        %v1081 = vmax.f32 %v1003, %v1043
        %v1082 = vmax.f32 %v1008, %v1048
        %v1083 = vmax.f32 %v1013, %v1053
        %v1084 = vmax.f32 %v1018, %v1058
        %v1085 = vmax.f32 %v1023, %v1063
        %v1086 = vmax.f32 %v1028, %v1068
        %v1087 = vmax.f32 %v1071, %v1079
        %v1088 = vmax.f32 %v1072, %v1080
        %v1089 = vmax.f32 %v1073, %v1081
        %v1090 = vmax.f32 %v1074, %v1082
        %v1091 = vmax.f32 %v1075, %v1083
        %v1092 = vmax.f32 %v1076, %v1084
        %v1093 = vmax.f32 %v1077, %v1085
        %v1094 = vmax.f32 %v1078, %v1086
        %v1095 = vmax.f32 %v1087, 0.0
        %v1096 = vmax.f32 %v1088, 0.0
        %v1097 = vmax.f32 %v1089, 0.0
        %v1098 = vmax.f32 %v1090, 0.0
        %v1099 = vmax.f32 %v1091, 0.0
        %v1100 = vmax.f32 %v1092, 0.0
        %v1101 = vmax.f32 %v1093, 0.0
        %v1102 = vmax.f32 %v1094, 0.0
        %vm1103 = vcmask 64512
        %1104 = vst.msk [vmem:[#allocation2] sm:$0xff] %vm1103, 0.0
        %vm1105 = vcmask 62464
        %1106 = vst.msk [vmem:[#allocation2 + $0x8] sm:$0x3f] %vm1105, 0.0
        %1107 = vst.msk [vmem:[#allocation2 + $0x10] sm:$0xff] %vm1103, 0.0
        %1108 = vst.msk [vmem:[#allocation2 + $0x18] sm:$0x3f] %vm1105, 0.0
        %1109 = vst.msk [vmem:[#allocation2 + $0x20] sm:$0xff] %vm1103, 0.0
        %1110 = vst.msk [vmem:[#allocation2 + $0x28] sm:$0x3f] %vm1105, 0.0
        %s1111 = scalar_lea.vmem [#allocation2], 176
        %1112 = vst.msk [vmem:[%s1111] sm:$0xff] %vm1103, 0.0
        %1113 = vst.msk [vmem:[%s1111 + $0x8] sm:$0x3f] %vm1105, 0.0
        %1114 = vst.msk [vmem:[%s1111 + $0x10] sm:$0xff] %vm1103, 0.0
        %1115 = vst.msk [vmem:[%s1111 + $0x18] sm:$0x3f] %vm1105, 0.0
        %1116 = vst.msk [vmem:[%s1111 + $0x20] sm:$0xff] %vm1103, 0.0
        %1117 = vst.msk [vmem:[%s1111 + $0x28] sm:$0x3f] %vm1105, 0.0
        %vm1118 = vcmask 59392
        %1119 = vst.msk [vmem:[#allocation2] sm:$0x7] %vm1118, 0.0
        %1120 = vst.msk [vmem:[#allocation2 + $0x10] sm:$0x7] %vm1118, 0.0
        %1121 = vst.msk [vmem:[#allocation2 + $0x20] sm:$0x7] %vm1118, 0.0
        %1122 = vst.msk [vmem:[#allocation2 + $0x30] sm:$0x7] %vm1118, 0.0
        %1123 = vst.msk [vmem:[#allocation2 + $0x40] sm:$0x7] %vm1118, 0.0
        %1124 = vst.msk [vmem:[#allocation2 + $0x50] sm:$0x7] %vm1118, 0.0
        %1125 = vst.msk [vmem:[#allocation2 + $0x60] sm:$0x7] %vm1118, 0.0
        %1126 = vst.msk [vmem:[#allocation2 + $0x70] sm:$0x7] %vm1118, 0.0
        %1127 = vst.msk [vmem:[#allocation2 + $0x80] sm:$0x7] %vm1118, 0.0
        %1128 = vst.msk [vmem:[#allocation2 + $0x90] sm:$0x7] %vm1118, 0.0
        %1129 = vst.msk [vmem:[#allocation2 + $0xa0] sm:$0x7] %vm1118, 0.0
        %1130 = vst.msk [vmem:[#allocation2 + $0xb0] sm:$0x7] %vm1118, 0.0
        %1131 = vst.msk [vmem:[#allocation2 + $0xc0] sm:$0x7] %vm1118, 0.0
        %1132 = vst.msk [vmem:[#allocation2 + $0xd0] sm:$0x7] %vm1118, 0.0
        %1133 = vst.msk [vmem:[#allocation2 + $0xb] sm:$0x7] %vm1118, 0.0
        %1134 = vst.msk [vmem:[#allocation2 + $0x1b] sm:$0x7] %vm1118, 0.0
        %1135 = vst.msk [vmem:[#allocation2 + $0x2b] sm:$0x7] %vm1118, 0.0
        %1136 = vst.msk [vmem:[#allocation2 + $0x3b] sm:$0x7] %vm1118, 0.0
        %1137 = vst.msk [vmem:[#allocation2 + $0x4b] sm:$0x7] %vm1118, 0.0
        %1138 = vst.msk [vmem:[#allocation2 + $0x5b] sm:$0x7] %vm1118, 0.0
        %1139 = vst.msk [vmem:[#allocation2 + $0x6b] sm:$0x7] %vm1118, 0.0
        %1140 = vst.msk [vmem:[#allocation2 + $0x7b] sm:$0x7] %vm1118, 0.0
        %1141 = vst.msk [vmem:[#allocation2 + $0x8b] sm:$0x7] %vm1118, 0.0
        %1142 = vst.msk [vmem:[#allocation2 + $0x9b] sm:$0x7] %vm1118, 0.0
        %1143 = vst.msk [vmem:[#allocation2 + $0xab] sm:$0x7] %vm1118, 0.0
        %1144 = vst.msk [vmem:[#allocation2 + $0xbb] sm:$0x7] %vm1118, 0.0
        %1145 = vst.msk [vmem:[#allocation2 + $0xcb] sm:$0x7] %vm1118, 0.0
        %1146 = vst.msk [vmem:[#allocation2 + $0xdb] sm:$0x7] %vm1118, 0.0
        %s1147 = scalar_lea.vmem [#allocation2], 48
        %1148 = vst.msk [vmem:[%s1147 + $0x3] sm:$0xff] %vm1103, %v1095
        %1149 = vst.msk [vmem:[%s1147 + $0x13] sm:$0xff] %vm1103, %v1096
        %1150 = vst.msk [vmem:[%s1147 + $0x23] sm:$0xff] %vm1103, %v1097
        %1151 = vst.msk [vmem:[%s1147 + $0x33] sm:$0xff] %vm1103, %v1098
        %1152 = vst.msk [vmem:[%s1147 + $0x43] sm:$0xff] %vm1103, %v1099
        %1153 = vst.msk [vmem:[%s1147 + $0x53] sm:$0xff] %vm1103, %v1100
        %1154 = vst.msk [vmem:[%s1147 + $0x63] sm:$0xff] %vm1103, %v1101
        %1155 = vst.msk [vmem:[%s1147 + $0x73] sm:$0xff] %vm1103, %v1102
        %v1156 = vld [vmem:[#allocation2] sm:$0xff]
        %v1157 = vld [vmem:[#allocation2 + $0x8] sm:$0x3f]
        %v1158 = vld [vmem:[#allocation2 + $0x10] sm:$0xff]
        %v1159 = vld [vmem:[#allocation2 + $0x18] sm:$0x3f]
        %v1160 = vld [vmem:[#allocation2 + $0x20] sm:$0xff]
        %v1161 = vld [vmem:[#allocation2 + $0x28] sm:$0x3f]
        %v1162 = vld [vmem:[#allocation2 + $0x30] sm:$0xff]
        %v1163 = vld [vmem:[#allocation2 + $0x38] sm:$0x3f]
        %v1164 = vld [vmem:[#allocation2 + $0x40] sm:$0xff]
        %v1165 = vld [vmem:[#allocation2 + $0x48] sm:$0x3f]
        %v1166 = vld [vmem:[#allocation2 + $0x50] sm:$0xff]
        %v1167 = vld [vmem:[#allocation2 + $0x58] sm:$0x3f]
        %v1168 = vld [vmem:[#allocation2 + $0x60] sm:$0xff]
        %v1169 = vld [vmem:[#allocation2 + $0x68] sm:$0x3f]
        %v1170 = vld [vmem:[#allocation2 + $0x70] sm:$0xff]
        %v1171 = vld [vmem:[#allocation2 + $0x78] sm:$0x3f]
        %v1172 = vld [vmem:[#allocation2 + $0x80] sm:$0xff]
        %v1173 = vld [vmem:[#allocation2 + $0x88] sm:$0x3f]
        %v1174 = vld [vmem:[#allocation2 + $0x90] sm:$0xff]
        %v1175 = vld [vmem:[#allocation2 + $0x98] sm:$0x3f]
        %v1176 = vld [vmem:[#allocation2 + $0xa0] sm:$0xff]
        %v1177 = vld [vmem:[#allocation2 + $0xa8] sm:$0x3f]
        %v1178 = vld [vmem:[#allocation2 + $0xb0] sm:$0xff]
        %v1179 = vld [vmem:[#allocation2 + $0xb8] sm:$0x3f]
        %v1180 = vld [vmem:[#allocation2 + $0xc0] sm:$0xff]
        %v1181 = vld [vmem:[#allocation2 + $0xc8] sm:$0x3f]
        %v1182 = vld [vmem:[#allocation2 + $0xd0] sm:$0xff]
        %v1183 = vld [vmem:[#allocation2 + $0xd8] sm:$0x3f]
        %v1184 = vld [vmem:[%s5] sm:$0x1]
        %v1185 = vld [vmem:[%s5 + $0x1] sm:$0x1]
        %v1186 = vld [vmem:[%s5 + $0x2] sm:$0x1]
        %v1187 = vld [vmem:[%s5 + $0x3] sm:$0x1]
        %v1188 = vld [vmem:[%s5 + $0x4] sm:$0x1]
        %v1189 = vld [vmem:[%s5 + $0x5] sm:$0x1]
        %v1190 = vld [vmem:[%s5 + $0x6] sm:$0x1]
        %v1191 = vld [vmem:[%s5 + $0x7] sm:$0x1]
        %v1192 = vld [vmem:[%s5 + $0x8] sm:$0x1]
        %v1193 = vld [vmem:[%s5 + $0x9] sm:$0x1]
        %v1194 = vld [vmem:[%s5 + $0xa] sm:$0x1]
        %v1195 = vld [vmem:[%s5 + $0xb] sm:$0x1]
        %v1196 = vld [vmem:[%s5 + $0xc] sm:$0x1]
        %v1197 = vld [vmem:[%s5 + $0xd] sm:$0x1]
        %v1198 = vld [vmem:[%s5 + $0xe] sm:$0x1]
        %v1199 = vld [vmem:[%s5 + $0xf] sm:$0x1]
        %v1200 = vld [vmem:[%s5 + $0x10] sm:$0x1]
        %v1201 = vld [vmem:[%s5 + $0x11] sm:$0x1]
        %v1202 = vld [vmem:[%s5 + $0x12] sm:$0x1]
        %v1203 = vld [vmem:[%s5 + $0x13] sm:$0x1]
        %v1204 = vld [vmem:[%s5 + $0x14] sm:$0x1]
        %v1205 = vld [vmem:[%s5 + $0x15] sm:$0x1]
        %v1206 = vld [vmem:[%s5 + $0x16] sm:$0x1]
        %v1207 = vld [vmem:[%s5 + $0x17] sm:$0x1]
        %v1208 = vld [vmem:[%s5 + $0x18] sm:$0x1]
        %v1209 = vld [vmem:[%s5 + $0x19] sm:$0x1]
        %v1210 = vld [vmem:[%s5 + $0x1a] sm:$0x1]
        %v1211 = vld [vmem:[%s5 + $0x1b] sm:$0x1]
        %v1212 = vld [vmem:[%s5 + $0x1c] sm:$0x1]
        %v1213 = vld [vmem:[%s5 + $0x1d] sm:$0x1]
        %v1214 = vld [vmem:[%s5 + $0x1e] sm:$0x1]
        %v1215 = vld [vmem:[%s5 + $0x1f] sm:$0x1]
        %v1216 = vld [vmem:[%s5 + $0x20] sm:$0x1]
        %v1217 = vld [vmem:[%s5 + $0x21] sm:$0x1]
        %v1218 = vld [vmem:[%s5 + $0x22] sm:$0x1]
        %v1219 = vld [vmem:[%s5 + $0x23] sm:$0x1]
        %v1220 = vld [vmem:[%s5 + $0x24] sm:$0x1]
        %v1221 = vld [vmem:[%s5 + $0x25] sm:$0x1]
        %v1222 = vld [vmem:[%s5 + $0x26] sm:$0x1]
        %v1223 = vld [vmem:[%s5 + $0x27] sm:$0x1]
        %v1224 = vld [vmem:[%s5 + $0x28] sm:$0x1]
        %v1225 = vld [vmem:[%s5 + $0x29] sm:$0x1]
        %v1226 = vld [vmem:[%s5 + $0x2a] sm:$0x1]
        %v1227 = vld [vmem:[%s5 + $0x2b] sm:$0x1]
        %v1228 = vld [vmem:[%s5 + $0x2c] sm:$0x1]
        %v1229 = vld [vmem:[%s5 + $0x2d] sm:$0x1]
        %v1230 = vld [vmem:[%s5 + $0x2e] sm:$0x1]
        %v1231 = vld [vmem:[%s5 + $0x2f] sm:$0x1]
        %v1232 = vld [vmem:[%s5 + $0x30] sm:$0x1]
        %v1234 = vlaneseq
        %v1235 = vshrl.u32 %v1234, 7
        %v1236 = vsub.s32 0, %v1235
        %v1237 = vrot.slane %v1184, %v1236
        %v1239 = vmul.f32 %v1156, %v1237
        %v1240 = vmul.f32 %v1158, %v1237
        %v1241 = vmul.f32 %v1160, %v1237
        %v1242 = vmul.f32 %v1162, %v1237
        %v1243 = vmul.f32 %v1164, %v1237
        %v1244 = vmul.f32 %v1166, %v1237
        %v1245 = vmul.f32 %v1168, %v1237
        %v1246 = vmul.f32 %v1170, %v1237
        %v1248 = vlaneseq
        %v1249 = vshrl.u32 %v1248, 7
        %v1250 = vsub.s32 0, %v1249
        %v1251 = vrot.slane %v1191, %v1250
        %v1253 = vmul.f32 %v1158, %v1251
        %v1254 = vmul.f32 %v1160, %v1251
        %v1255 = vmul.f32 %v1162, %v1251
        %v1256 = vmul.f32 %v1164, %v1251
        %v1257 = vmul.f32 %v1166, %v1251
        %v1258 = vmul.f32 %v1168, %v1251
        %v1259 = vmul.f32 %v1170, %v1251
        %v1260 = vmul.f32 %v1172, %v1251
        %v1261 = vadd.f32 %v1239, %v1253
        %v1262 = vadd.f32 %v1240, %v1254
        %v1263 = vadd.f32 %v1241, %v1255
        %v1264 = vadd.f32 %v1242, %v1256
        %v1265 = vadd.f32 %v1243, %v1257
        %v1266 = vadd.f32 %v1244, %v1258
        %v1267 = vadd.f32 %v1245, %v1259
        %v1268 = vadd.f32 %v1246, %v1260
        %v1270 = vlaneseq
        %v1271 = vshrl.u32 %v1270, 7
        %v1272 = vsub.s32 0, %v1271
        %v1273 = vrot.slane %v1198, %v1272
        %v1275 = vmul.f32 %v1160, %v1273
        %v1276 = vmul.f32 %v1162, %v1273
        %v1277 = vmul.f32 %v1164, %v1273
        %v1278 = vmul.f32 %v1166, %v1273
        %v1279 = vmul.f32 %v1168, %v1273
        %v1280 = vmul.f32 %v1170, %v1273
        %v1281 = vmul.f32 %v1172, %v1273
        %v1282 = vmul.f32 %v1174, %v1273
        %v1283 = vadd.f32 %v1261, %v1275
        %v1284 = vadd.f32 %v1262, %v1276
        %v1285 = vadd.f32 %v1263, %v1277
        %v1286 = vadd.f32 %v1264, %v1278
        %v1287 = vadd.f32 %v1265, %v1279
        %v1288 = vadd.f32 %v1266, %v1280
        %v1289 = vadd.f32 %v1267, %v1281
        %v1290 = vadd.f32 %v1268, %v1282
        %v1292 = vlaneseq
        %v1293 = vshrl.u32 %v1292, 7
        %v1294 = vsub.s32 0, %v1293
        %v1295 = vrot.slane %v1205, %v1294
        %v1297 = vmul.f32 %v1162, %v1295
        %v1298 = vmul.f32 %v1164, %v1295
        %v1299 = vmul.f32 %v1166, %v1295
        %v1300 = vmul.f32 %v1168, %v1295
        %v1301 = vmul.f32 %v1170, %v1295
        %v1302 = vmul.f32 %v1172, %v1295
        %v1303 = vmul.f32 %v1174, %v1295
        %v1304 = vmul.f32 %v1176, %v1295
        %v1305 = vadd.f32 %v1283, %v1297
        %v1306 = vadd.f32 %v1284, %v1298
        %v1307 = vadd.f32 %v1285, %v1299
        %v1308 = vadd.f32 %v1286, %v1300
        %v1309 = vadd.f32 %v1287, %v1301
        %v1310 = vadd.f32 %v1288, %v1302
        %v1311 = vadd.f32 %v1289, %v1303
        %v1312 = vadd.f32 %v1290, %v1304
        %v1314 = vlaneseq
        %v1315 = vshrl.u32 %v1314, 7
        %v1316 = vsub.s32 0, %v1315
        %v1317 = vrot.slane %v1212, %v1316
        %v1319 = vmul.f32 %v1164, %v1317
        %v1320 = vmul.f32 %v1166, %v1317
        %v1321 = vmul.f32 %v1168, %v1317
        %v1322 = vmul.f32 %v1170, %v1317
        %v1323 = vmul.f32 %v1172, %v1317
        %v1324 = vmul.f32 %v1174, %v1317
        %v1325 = vmul.f32 %v1176, %v1317
        %v1326 = vmul.f32 %v1178, %v1317
        %v1327 = vadd.f32 %v1305, %v1319
        %v1328 = vadd.f32 %v1306, %v1320
        %v1329 = vadd.f32 %v1307, %v1321
        %v1330 = vadd.f32 %v1308, %v1322
        %v1331 = vadd.f32 %v1309, %v1323
        %v1332 = vadd.f32 %v1310, %v1324
        %v1333 = vadd.f32 %v1311, %v1325
        %v1334 = vadd.f32 %v1312, %v1326
        %v1336 = vlaneseq
        %v1337 = vshrl.u32 %v1336, 7
        %v1338 = vsub.s32 0, %v1337
        %v1339 = vrot.slane %v1219, %v1338
        %v1341 = vmul.f32 %v1166, %v1339
        %v1342 = vmul.f32 %v1168, %v1339
        %v1343 = vmul.f32 %v1170, %v1339
        %v1344 = vmul.f32 %v1172, %v1339
        %v1345 = vmul.f32 %v1174, %v1339
        %v1346 = vmul.f32 %v1176, %v1339
        %v1347 = vmul.f32 %v1178, %v1339
        %v1348 = vmul.f32 %v1180, %v1339
        %v1349 = vadd.f32 %v1327, %v1341
        %v1350 = vadd.f32 %v1328, %v1342
        %v1351 = vadd.f32 %v1329, %v1343
        %v1352 = vadd.f32 %v1330, %v1344
        %v1353 = vadd.f32 %v1331, %v1345
        %v1354 = vadd.f32 %v1332, %v1346
        %v1355 = vadd.f32 %v1333, %v1347
        %v1356 = vadd.f32 %v1334, %v1348
        %v1358 = vlaneseq
        %v1359 = vshrl.u32 %v1358, 7
        %v1360 = vsub.s32 0, %v1359
        %v1361 = vrot.slane %v1226, %v1360
        %v1363 = vmul.f32 %v1168, %v1361
        %v1364 = vmul.f32 %v1170, %v1361
        %v1365 = vmul.f32 %v1172, %v1361
        %v1366 = vmul.f32 %v1174, %v1361
        %v1367 = vmul.f32 %v1176, %v1361
        %v1368 = vmul.f32 %v1178, %v1361
        %v1369 = vmul.f32 %v1180, %v1361
        %v1370 = vmul.f32 %v1182, %v1361
        %v1371 = vadd.f32 %v1349, %v1363
        %v1372 = vadd.f32 %v1350, %v1364
        %v1373 = vadd.f32 %v1351, %v1365
        %v1374 = vadd.f32 %v1352, %v1366
        %v1375 = vadd.f32 %v1353, %v1367
        %v1376 = vadd.f32 %v1354, %v1368
        %v1377 = vadd.f32 %v1355, %v1369
        %v1378 = vadd.f32 %v1356, %v1370
        %v1380 = vlaneseq
        %v1381 = vshrl.u32 %v1380, 7
        %v1382 = vsub.s32 0, %v1381
        %v1383 = vrot.slane %v1185, %v1382
        %v1385 = vmul.f32 %v1156, %v1383
        %v1386 = vmul.f32 %v1157, %v1383
        %v1387 = vmul.f32 %v1158, %v1383
        %v1388 = vmul.f32 %v1159, %v1383
        %v1389 = vmul.f32 %v1160, %v1383
        %v1390 = vmul.f32 %v1161, %v1383
        %v1391 = vmul.f32 %v1162, %v1383
        %v1392 = vmul.f32 %v1163, %v1383
        %v1393 = vmul.f32 %v1164, %v1383
        %v1394 = vmul.f32 %v1165, %v1383
        %v1395 = vmul.f32 %v1166, %v1383
        %v1396 = vmul.f32 %v1167, %v1383
        %v1397 = vmul.f32 %v1168, %v1383
        %v1398 = vmul.f32 %v1169, %v1383
        %v1399 = vmul.f32 %v1170, %v1383
        %v1400 = vmul.f32 %v1171, %v1383
        %vm1417 = vcmask 1046528
        %v1418 = vrot.slane %v1385, 1
        %v1419 = vrot.slane %v1386, 1
        %v1420 = vsel %vm1417, %v1418, %v1419
        %v1421 = vrot.slane %v1387, 1
        %v1422 = vrot.slane %v1388, 1
        %v1423 = vsel %vm1417, %v1421, %v1422
        %v1424 = vrot.slane %v1389, 1
        %v1425 = vrot.slane %v1390, 1
        %v1426 = vsel %vm1417, %v1424, %v1425
        %v1427 = vrot.slane %v1391, 1
        %v1428 = vrot.slane %v1392, 1
        %v1429 = vsel %vm1417, %v1427, %v1428
        %v1430 = vrot.slane %v1393, 1
        %v1431 = vrot.slane %v1394, 1
        %v1432 = vsel %vm1417, %v1430, %v1431
        %v1433 = vrot.slane %v1395, 1
        %v1434 = vrot.slane %v1396, 1
        %v1435 = vsel %vm1417, %v1433, %v1434
        %v1436 = vrot.slane %v1397, 1
        %v1437 = vrot.slane %v1398, 1
        %v1438 = vsel %vm1417, %v1436, %v1437
        %v1439 = vrot.slane %v1399, 1
        %v1440 = vrot.slane %v1400, 1
        %v1441 = vsel %vm1417, %v1439, %v1440
        %v1450 = vadd.f32 %v1371, %v1420
        %v1451 = vadd.f32 %v1372, %v1423
        %v1452 = vadd.f32 %v1373, %v1426
        %v1453 = vadd.f32 %v1374, %v1429
        %v1454 = vadd.f32 %v1375, %v1432
        %v1455 = vadd.f32 %v1376, %v1435
        %v1456 = vadd.f32 %v1377, %v1438
        %v1457 = vadd.f32 %v1378, %v1441
        %v1459 = vlaneseq
        %v1460 = vshrl.u32 %v1459, 7
        %v1461 = vsub.s32 0, %v1460
        %v1462 = vrot.slane %v1192, %v1461
        %v1464 = vmul.f32 %v1158, %v1462
        %v1465 = vmul.f32 %v1159, %v1462
        %v1466 = vmul.f32 %v1160, %v1462
        %v1467 = vmul.f32 %v1161, %v1462
        %v1468 = vmul.f32 %v1162, %v1462
        %v1469 = vmul.f32 %v1163, %v1462
        %v1470 = vmul.f32 %v1164, %v1462
        %v1471 = vmul.f32 %v1165, %v1462
        %v1472 = vmul.f32 %v1166, %v1462
        %v1473 = vmul.f32 %v1167, %v1462
        %v1474 = vmul.f32 %v1168, %v1462
        %v1475 = vmul.f32 %v1169, %v1462
        %v1476 = vmul.f32 %v1170, %v1462
        %v1477 = vmul.f32 %v1171, %v1462
        %v1478 = vmul.f32 %v1172, %v1462
        %v1479 = vmul.f32 %v1173, %v1462
        %v1496 = vrot.slane %v1464, 1
        %v1497 = vrot.slane %v1465, 1
        %v1498 = vsel %vm1417, %v1496, %v1497
        %v1499 = vrot.slane %v1466, 1
        %v1500 = vrot.slane %v1467, 1
        %v1501 = vsel %vm1417, %v1499, %v1500
        %v1502 = vrot.slane %v1468, 1
        %v1503 = vrot.slane %v1469, 1
        %v1504 = vsel %vm1417, %v1502, %v1503
        %v1505 = vrot.slane %v1470, 1
        %v1506 = vrot.slane %v1471, 1
        %v1507 = vsel %vm1417, %v1505, %v1506
        %v1508 = vrot.slane %v1472, 1
        %v1509 = vrot.slane %v1473, 1
        %v1510 = vsel %vm1417, %v1508, %v1509
        %v1511 = vrot.slane %v1474, 1
        %v1512 = vrot.slane %v1475, 1
        %v1513 = vsel %vm1417, %v1511, %v1512
        %v1514 = vrot.slane %v1476, 1
        %v1515 = vrot.slane %v1477, 1
        %v1516 = vsel %vm1417, %v1514, %v1515
        %v1517 = vrot.slane %v1478, 1
        %v1518 = vrot.slane %v1479, 1
        %v1519 = vsel %vm1417, %v1517, %v1518
        %v1528 = vadd.f32 %v1450, %v1498
        %v1529 = vadd.f32 %v1451, %v1501
        %v1530 = vadd.f32 %v1452, %v1504
        %v1531 = vadd.f32 %v1453, %v1507
        %v1532 = vadd.f32 %v1454, %v1510
        %v1533 = vadd.f32 %v1455, %v1513
        %v1534 = vadd.f32 %v1456, %v1516
        %v1535 = vadd.f32 %v1457, %v1519
        %v1537 = vlaneseq
        %v1538 = vshrl.u32 %v1537, 7
        %v1539 = vsub.s32 0, %v1538
        %v1540 = vrot.slane %v1199, %v1539
        %v1542 = vmul.f32 %v1160, %v1540
        %v1543 = vmul.f32 %v1161, %v1540
        %v1544 = vmul.f32 %v1162, %v1540
        %v1545 = vmul.f32 %v1163, %v1540
        %v1546 = vmul.f32 %v1164, %v1540
        %v1547 = vmul.f32 %v1165, %v1540
        %v1548 = vmul.f32 %v1166, %v1540
        %v1549 = vmul.f32 %v1167, %v1540
        %v1550 = vmul.f32 %v1168, %v1540
        %v1551 = vmul.f32 %v1169, %v1540
        %v1552 = vmul.f32 %v1170, %v1540
        %v1553 = vmul.f32 %v1171, %v1540
        %v1554 = vmul.f32 %v1172, %v1540
        %v1555 = vmul.f32 %v1173, %v1540
        %v1556 = vmul.f32 %v1174, %v1540
        %v1557 = vmul.f32 %v1175, %v1540
        %v1574 = vrot.slane %v1542, 1
        %v1575 = vrot.slane %v1543, 1
        %v1576 = vsel %vm1417, %v1574, %v1575
        %v1577 = vrot.slane %v1544, 1
        %v1578 = vrot.slane %v1545, 1
        %v1579 = vsel %vm1417, %v1577, %v1578
        %v1580 = vrot.slane %v1546, 1
        %v1581 = vrot.slane %v1547, 1
        %v1582 = vsel %vm1417, %v1580, %v1581
        %v1583 = vrot.slane %v1548, 1
        %v1584 = vrot.slane %v1549, 1
        %v1585 = vsel %vm1417, %v1583, %v1584
        %v1586 = vrot.slane %v1550, 1
        %v1587 = vrot.slane %v1551, 1
        %v1588 = vsel %vm1417, %v1586, %v1587
        %v1589 = vrot.slane %v1552, 1
        %v1590 = vrot.slane %v1553, 1
        %v1591 = vsel %vm1417, %v1589, %v1590
        %v1592 = vrot.slane %v1554, 1
        %v1593 = vrot.slane %v1555, 1
        %v1594 = vsel %vm1417, %v1592, %v1593
        %v1595 = vrot.slane %v1556, 1
        %v1596 = vrot.slane %v1557, 1
        %v1597 = vsel %vm1417, %v1595, %v1596
        %v1606 = vadd.f32 %v1528, %v1576
        %v1607 = vadd.f32 %v1529, %v1579
        %v1608 = vadd.f32 %v1530, %v1582
        %v1609 = vadd.f32 %v1531, %v1585
        %v1610 = vadd.f32 %v1532, %v1588
        %v1611 = vadd.f32 %v1533, %v1591
        %v1612 = vadd.f32 %v1534, %v1594
        %v1613 = vadd.f32 %v1535, %v1597
        %v1615 = vlaneseq
        %v1616 = vshrl.u32 %v1615, 7
        %v1617 = vsub.s32 0, %v1616
        %v1618 = vrot.slane %v1206, %v1617
        %v1620 = vmul.f32 %v1162, %v1618
        %v1621 = vmul.f32 %v1163, %v1618
        %v1622 = vmul.f32 %v1164, %v1618
        %v1623 = vmul.f32 %v1165, %v1618
        %v1624 = vmul.f32 %v1166, %v1618
        %v1625 = vmul.f32 %v1167, %v1618
        %v1626 = vmul.f32 %v1168, %v1618
        %v1627 = vmul.f32 %v1169, %v1618
        %v1628 = vmul.f32 %v1170, %v1618
        %v1629 = vmul.f32 %v1171, %v1618
        %v1630 = vmul.f32 %v1172, %v1618
        %v1631 = vmul.f32 %v1173, %v1618
        %v1632 = vmul.f32 %v1174, %v1618
        %v1633 = vmul.f32 %v1175, %v1618
        %v1634 = vmul.f32 %v1176, %v1618
        %v1635 = vmul.f32 %v1177, %v1618
        %v1652 = vrot.slane %v1620, 1
        %v1653 = vrot.slane %v1621, 1
        %v1654 = vsel %vm1417, %v1652, %v1653
        %v1655 = vrot.slane %v1622, 1
        %v1656 = vrot.slane %v1623, 1
        %v1657 = vsel %vm1417, %v1655, %v1656
        %v1658 = vrot.slane %v1624, 1
        %v1659 = vrot.slane %v1625, 1
        %v1660 = vsel %vm1417, %v1658, %v1659
        %v1661 = vrot.slane %v1626, 1
        %v1662 = vrot.slane %v1627, 1
        %v1663 = vsel %vm1417, %v1661, %v1662
        %v1664 = vrot.slane %v1628, 1
        %v1665 = vrot.slane %v1629, 1
        %v1666 = vsel %vm1417, %v1664, %v1665
        %v1667 = vrot.slane %v1630, 1
        %v1668 = vrot.slane %v1631, 1
        %v1669 = vsel %vm1417, %v1667, %v1668
        %v1670 = vrot.slane %v1632, 1
        %v1671 = vrot.slane %v1633, 1
        %v1672 = vsel %vm1417, %v1670, %v1671
        %v1673 = vrot.slane %v1634, 1
        %v1674 = vrot.slane %v1635, 1
        %v1675 = vsel %vm1417, %v1673, %v1674
        %v1684 = vadd.f32 %v1606, %v1654
        %v1685 = vadd.f32 %v1607, %v1657
        %v1686 = vadd.f32 %v1608, %v1660
        %v1687 = vadd.f32 %v1609, %v1663
        %v1688 = vadd.f32 %v1610, %v1666
        %v1689 = vadd.f32 %v1611, %v1669
        %v1690 = vadd.f32 %v1612, %v1672
        %v1691 = vadd.f32 %v1613, %v1675
        %v1693 = vlaneseq
        %v1694 = vshrl.u32 %v1693, 7
        %v1695 = vsub.s32 0, %v1694
        %v1696 = vrot.slane %v1213, %v1695
        %v1698 = vmul.f32 %v1164, %v1696
        %v1699 = vmul.f32 %v1165, %v1696
        %v1700 = vmul.f32 %v1166, %v1696
        %v1701 = vmul.f32 %v1167, %v1696
        %v1702 = vmul.f32 %v1168, %v1696
        %v1703 = vmul.f32 %v1169, %v1696
        %v1704 = vmul.f32 %v1170, %v1696
        %v1705 = vmul.f32 %v1171, %v1696
        %v1706 = vmul.f32 %v1172, %v1696
        %v1707 = vmul.f32 %v1173, %v1696
        %v1708 = vmul.f32 %v1174, %v1696
        %v1709 = vmul.f32 %v1175, %v1696
        %v1710 = vmul.f32 %v1176, %v1696
        %v1711 = vmul.f32 %v1177, %v1696
        %v1712 = vmul.f32 %v1178, %v1696
        %v1713 = vmul.f32 %v1179, %v1696
        %v1730 = vrot.slane %v1698, 1
        %v1731 = vrot.slane %v1699, 1
        %v1732 = vsel %vm1417, %v1730, %v1731
        %v1733 = vrot.slane %v1700, 1
        %v1734 = vrot.slane %v1701, 1
        %v1735 = vsel %vm1417, %v1733, %v1734
        %v1736 = vrot.slane %v1702, 1
        %v1737 = vrot.slane %v1703, 1
        %v1738 = vsel %vm1417, %v1736, %v1737
        %v1739 = vrot.slane %v1704, 1
        %v1740 = vrot.slane %v1705, 1
        %v1741 = vsel %vm1417, %v1739, %v1740
        %v1742 = vrot.slane %v1706, 1
        %v1743 = vrot.slane %v1707, 1
        %v1744 = vsel %vm1417, %v1742, %v1743
        %v1745 = vrot.slane %v1708, 1
        %v1746 = vrot.slane %v1709, 1
        %v1747 = vsel %vm1417, %v1745, %v1746
        %v1748 = vrot.slane %v1710, 1
        %v1749 = vrot.slane %v1711, 1
        %v1750 = vsel %vm1417, %v1748, %v1749
        %v1751 = vrot.slane %v1712, 1
        %v1752 = vrot.slane %v1713, 1
        %v1753 = vsel %vm1417, %v1751, %v1752
        %v1762 = vadd.f32 %v1684, %v1732
        %v1763 = vadd.f32 %v1685, %v1735
        %v1764 = vadd.f32 %v1686, %v1738
        %v1765 = vadd.f32 %v1687, %v1741
        %v1766 = vadd.f32 %v1688, %v1744
        %v1767 = vadd.f32 %v1689, %v1747
        %v1768 = vadd.f32 %v1690, %v1750
        %v1769 = vadd.f32 %v1691, %v1753
        %v1771 = vlaneseq
        %v1772 = vshrl.u32 %v1771, 7
        %v1773 = vsub.s32 0, %v1772
        %v1774 = vrot.slane %v1220, %v1773
        %v1776 = vmul.f32 %v1166, %v1774
        %v1777 = vmul.f32 %v1167, %v1774
        %v1778 = vmul.f32 %v1168, %v1774
        %v1779 = vmul.f32 %v1169, %v1774
        %v1780 = vmul.f32 %v1170, %v1774
        %v1781 = vmul.f32 %v1171, %v1774
        %v1782 = vmul.f32 %v1172, %v1774
        %v1783 = vmul.f32 %v1173, %v1774
        %v1784 = vmul.f32 %v1174, %v1774
        %v1785 = vmul.f32 %v1175, %v1774
        %v1786 = vmul.f32 %v1176, %v1774
        %v1787 = vmul.f32 %v1177, %v1774
        %v1788 = vmul.f32 %v1178, %v1774
        %v1789 = vmul.f32 %v1179, %v1774
        %v1790 = vmul.f32 %v1180, %v1774
        %v1791 = vmul.f32 %v1181, %v1774
        %v1808 = vrot.slane %v1776, 1
        %v1809 = vrot.slane %v1777, 1
        %v1810 = vsel %vm1417, %v1808, %v1809
        %v1811 = vrot.slane %v1778, 1
        %v1812 = vrot.slane %v1779, 1
        %v1813 = vsel %vm1417, %v1811, %v1812
        %v1814 = vrot.slane %v1780, 1
        %v1815 = vrot.slane %v1781, 1
        %v1816 = vsel %vm1417, %v1814, %v1815
        %v1817 = vrot.slane %v1782, 1
        %v1818 = vrot.slane %v1783, 1
        %v1819 = vsel %vm1417, %v1817, %v1818
        %v1820 = vrot.slane %v1784, 1
        %v1821 = vrot.slane %v1785, 1
        %v1822 = vsel %vm1417, %v1820, %v1821
        %v1823 = vrot.slane %v1786, 1
        %v1824 = vrot.slane %v1787, 1
        %v1825 = vsel %vm1417, %v1823, %v1824
        %v1826 = vrot.slane %v1788, 1
        %v1827 = vrot.slane %v1789, 1
        %v1828 = vsel %vm1417, %v1826, %v1827
        %v1829 = vrot.slane %v1790, 1
        %v1830 = vrot.slane %v1791, 1
        %v1831 = vsel %vm1417, %v1829, %v1830
        %v1840 = vadd.f32 %v1762, %v1810
        %v1841 = vadd.f32 %v1763, %v1813
        %v1842 = vadd.f32 %v1764, %v1816
        %v1843 = vadd.f32 %v1765, %v1819
        %v1844 = vadd.f32 %v1766, %v1822
        %v1845 = vadd.f32 %v1767, %v1825
        %v1846 = vadd.f32 %v1768, %v1828
        %v1847 = vadd.f32 %v1769, %v1831
        %v1849 = vlaneseq
        %v1850 = vshrl.u32 %v1849, 7
        %v1851 = vsub.s32 0, %v1850
        %v1852 = vrot.slane %v1227, %v1851
        %v1854 = vmul.f32 %v1168, %v1852
        %v1855 = vmul.f32 %v1169, %v1852
        %v1856 = vmul.f32 %v1170, %v1852
        %v1857 = vmul.f32 %v1171, %v1852
        %v1858 = vmul.f32 %v1172, %v1852
        %v1859 = vmul.f32 %v1173, %v1852
        %v1860 = vmul.f32 %v1174, %v1852
        %v1861 = vmul.f32 %v1175, %v1852
        %v1862 = vmul.f32 %v1176, %v1852
        %v1863 = vmul.f32 %v1177, %v1852
        %v1864 = vmul.f32 %v1178, %v1852
        %v1865 = vmul.f32 %v1179, %v1852
        %v1866 = vmul.f32 %v1180, %v1852
        %v1867 = vmul.f32 %v1181, %v1852
        %v1868 = vmul.f32 %v1182, %v1852
        %v1869 = vmul.f32 %v1183, %v1852
        %v1886 = vrot.slane %v1854, 1
        %v1887 = vrot.slane %v1855, 1
        %v1888 = vsel %vm1417, %v1886, %v1887
        %v1889 = vrot.slane %v1856, 1
        %v1890 = vrot.slane %v1857, 1
        %v1891 = vsel %vm1417, %v1889, %v1890
        %v1892 = vrot.slane %v1858, 1
        %v1893 = vrot.slane %v1859, 1
        %v1894 = vsel %vm1417, %v1892, %v1893
        %v1895 = vrot.slane %v1860, 1
        %v1896 = vrot.slane %v1861, 1
        %v1897 = vsel %vm1417, %v1895, %v1896
        %v1898 = vrot.slane %v1862, 1
        %v1899 = vrot.slane %v1863, 1
        %v1900 = vsel %vm1417, %v1898, %v1899
        %v1901 = vrot.slane %v1864, 1
        %v1902 = vrot.slane %v1865, 1
        %v1903 = vsel %vm1417, %v1901, %v1902
        %v1904 = vrot.slane %v1866, 1
        %v1905 = vrot.slane %v1867, 1
        %v1906 = vsel %vm1417, %v1904, %v1905
        %v1907 = vrot.slane %v1868, 1
        %v1908 = vrot.slane %v1869, 1
        %v1909 = vsel %vm1417, %v1907, %v1908
        %v1918 = vadd.f32 %v1840, %v1888
        %v1919 = vadd.f32 %v1841, %v1891
        %v1920 = vadd.f32 %v1842, %v1894
        %v1921 = vadd.f32 %v1843, %v1897
        %v1922 = vadd.f32 %v1844, %v1900
        %v1923 = vadd.f32 %v1845, %v1903
        %v1924 = vadd.f32 %v1846, %v1906
        %v1925 = vadd.f32 %v1847, %v1909
        %v1927 = vlaneseq
        %v1928 = vshrl.u32 %v1927, 7
        %v1929 = vsub.s32 0, %v1928
        %v1930 = vrot.slane %v1186, %v1929
        %v1932 = vmul.f32 %v1156, %v1930
        %v1933 = vmul.f32 %v1157, %v1930
        %v1934 = vmul.f32 %v1158, %v1930
        %v1935 = vmul.f32 %v1159, %v1930
        %v1936 = vmul.f32 %v1160, %v1930
        %v1937 = vmul.f32 %v1161, %v1930
        %v1938 = vmul.f32 %v1162, %v1930
        %v1939 = vmul.f32 %v1163, %v1930
        %v1940 = vmul.f32 %v1164, %v1930
        %v1941 = vmul.f32 %v1165, %v1930
        %v1942 = vmul.f32 %v1166, %v1930
        %v1943 = vmul.f32 %v1167, %v1930
        %v1944 = vmul.f32 %v1168, %v1930
        %v1945 = vmul.f32 %v1169, %v1930
        %v1946 = vmul.f32 %v1170, %v1930
        %v1947 = vmul.f32 %v1171, %v1930
        %vm1964 = vcmask 1045504
        %v1965 = vrot.slane %v1932, 2
        %v1966 = vrot.slane %v1933, 2
        %v1967 = vsel %vm1964, %v1965, %v1966
        %v1968 = vrot.slane %v1934, 2
        %v1969 = vrot.slane %v1935, 2
        %v1970 = vsel %vm1964, %v1968, %v1969
        %v1971 = vrot.slane %v1936, 2
        %v1972 = vrot.slane %v1937, 2
        %v1973 = vsel %vm1964, %v1971, %v1972
        %v1974 = vrot.slane %v1938, 2
        %v1975 = vrot.slane %v1939, 2
        %v1976 = vsel %vm1964, %v1974, %v1975
        %v1977 = vrot.slane %v1940, 2
        %v1978 = vrot.slane %v1941, 2
        %v1979 = vsel %vm1964, %v1977, %v1978
        %v1980 = vrot.slane %v1942, 2
        %v1981 = vrot.slane %v1943, 2
        %v1982 = vsel %vm1964, %v1980, %v1981
        %v1983 = vrot.slane %v1944, 2
        %v1984 = vrot.slane %v1945, 2
        %v1985 = vsel %vm1964, %v1983, %v1984
        %v1986 = vrot.slane %v1946, 2
        %v1987 = vrot.slane %v1947, 2
        %v1988 = vsel %vm1964, %v1986, %v1987
        %v1997 = vadd.f32 %v1918, %v1967
        %v1998 = vadd.f32 %v1919, %v1970
        %v1999 = vadd.f32 %v1920, %v1973
        %v2000 = vadd.f32 %v1921, %v1976
        %v2001 = vadd.f32 %v1922, %v1979
        %v2002 = vadd.f32 %v1923, %v1982
        %v2003 = vadd.f32 %v1924, %v1985
        %v2004 = vadd.f32 %v1925, %v1988
        %v2006 = vlaneseq
        %v2007 = vshrl.u32 %v2006, 7
        %v2008 = vsub.s32 0, %v2007
        %v2009 = vrot.slane %v1193, %v2008
        %v2011 = vmul.f32 %v1158, %v2009
        %v2012 = vmul.f32 %v1159, %v2009
        %v2013 = vmul.f32 %v1160, %v2009
        %v2014 = vmul.f32 %v1161, %v2009
        %v2015 = vmul.f32 %v1162, %v2009
        %v2016 = vmul.f32 %v1163, %v2009
        %v2017 = vmul.f32 %v1164, %v2009
        %v2018 = vmul.f32 %v1165, %v2009
        %v2019 = vmul.f32 %v1166, %v2009
        %v2020 = vmul.f32 %v1167, %v2009
        %v2021 = vmul.f32 %v1168, %v2009
        %v2022 = vmul.f32 %v1169, %v2009
        %v2023 = vmul.f32 %v1170, %v2009
        %v2024 = vmul.f32 %v1171, %v2009
        %v2025 = vmul.f32 %v1172, %v2009
        %v2026 = vmul.f32 %v1173, %v2009
        %v2043 = vrot.slane %v2011, 2
        %v2044 = vrot.slane %v2012, 2
        %v2045 = vsel %vm1964, %v2043, %v2044
        %v2046 = vrot.slane %v2013, 2
        %v2047 = vrot.slane %v2014, 2
        %v2048 = vsel %vm1964, %v2046, %v2047
        %v2049 = vrot.slane %v2015, 2
        %v2050 = vrot.slane %v2016, 2
        %v2051 = vsel %vm1964, %v2049, %v2050
        %v2052 = vrot.slane %v2017, 2
        %v2053 = vrot.slane %v2018, 2
        %v2054 = vsel %vm1964, %v2052, %v2053
        %v2055 = vrot.slane %v2019, 2
        %v2056 = vrot.slane %v2020, 2
        %v2057 = vsel %vm1964, %v2055, %v2056
        %v2058 = vrot.slane %v2021, 2
        %v2059 = vrot.slane %v2022, 2
        %v2060 = vsel %vm1964, %v2058, %v2059
        %v2061 = vrot.slane %v2023, 2
        %v2062 = vrot.slane %v2024, 2
        %v2063 = vsel %vm1964, %v2061, %v2062
        %v2064 = vrot.slane %v2025, 2
        %v2065 = vrot.slane %v2026, 2
        %v2066 = vsel %vm1964, %v2064, %v2065
        %v2075 = vadd.f32 %v1997, %v2045
        %v2076 = vadd.f32 %v1998, %v2048
        %v2077 = vadd.f32 %v1999, %v2051
        %v2078 = vadd.f32 %v2000, %v2054
        %v2079 = vadd.f32 %v2001, %v2057
        %v2080 = vadd.f32 %v2002, %v2060
        %v2081 = vadd.f32 %v2003, %v2063
        %v2082 = vadd.f32 %v2004, %v2066
        %v2084 = vlaneseq
        %v2085 = vshrl.u32 %v2084, 7
        %v2086 = vsub.s32 0, %v2085
        %v2087 = vrot.slane %v1200, %v2086
        %v2089 = vmul.f32 %v1160, %v2087
        %v2090 = vmul.f32 %v1161, %v2087
        %v2091 = vmul.f32 %v1162, %v2087
        %v2092 = vmul.f32 %v1163, %v2087
        %v2093 = vmul.f32 %v1164, %v2087
        %v2094 = vmul.f32 %v1165, %v2087
        %v2095 = vmul.f32 %v1166, %v2087
        %v2096 = vmul.f32 %v1167, %v2087
        %v2097 = vmul.f32 %v1168, %v2087
        %v2098 = vmul.f32 %v1169, %v2087
        %v2099 = vmul.f32 %v1170, %v2087
        %v2100 = vmul.f32 %v1171, %v2087
        %v2101 = vmul.f32 %v1172, %v2087
        %v2102 = vmul.f32 %v1173, %v2087
        %v2103 = vmul.f32 %v1174, %v2087
        %v2104 = vmul.f32 %v1175, %v2087
        %v2121 = vrot.slane %v2089, 2
        %v2122 = vrot.slane %v2090, 2
        %v2123 = vsel %vm1964, %v2121, %v2122
        %v2124 = vrot.slane %v2091, 2
        %v2125 = vrot.slane %v2092, 2
        %v2126 = vsel %vm1964, %v2124, %v2125
        %v2127 = vrot.slane %v2093, 2
        %v2128 = vrot.slane %v2094, 2
        %v2129 = vsel %vm1964, %v2127, %v2128
        %v2130 = vrot.slane %v2095, 2
        %v2131 = vrot.slane %v2096, 2
        %v2132 = vsel %vm1964, %v2130, %v2131
        %v2133 = vrot.slane %v2097, 2
        %v2134 = vrot.slane %v2098, 2
        %v2135 = vsel %vm1964, %v2133, %v2134
        %v2136 = vrot.slane %v2099, 2
        %v2137 = vrot.slane %v2100, 2
        %v2138 = vsel %vm1964, %v2136, %v2137
        %v2139 = vrot.slane %v2101, 2
        %v2140 = vrot.slane %v2102, 2
        %v2141 = vsel %vm1964, %v2139, %v2140
        %v2142 = vrot.slane %v2103, 2
        %v2143 = vrot.slane %v2104, 2
        %v2144 = vsel %vm1964, %v2142, %v2143
        %v2153 = vadd.f32 %v2075, %v2123
        %v2154 = vadd.f32 %v2076, %v2126
        %v2155 = vadd.f32 %v2077, %v2129
        %v2156 = vadd.f32 %v2078, %v2132
        %v2157 = vadd.f32 %v2079, %v2135
        %v2158 = vadd.f32 %v2080, %v2138
        %v2159 = vadd.f32 %v2081, %v2141
        %v2160 = vadd.f32 %v2082, %v2144
        %v2162 = vlaneseq
        %v2163 = vshrl.u32 %v2162, 7
        %v2164 = vsub.s32 0, %v2163
        %v2165 = vrot.slane %v1207, %v2164
        %v2167 = vmul.f32 %v1162, %v2165
        %v2168 = vmul.f32 %v1163, %v2165
        %v2169 = vmul.f32 %v1164, %v2165
        %v2170 = vmul.f32 %v1165, %v2165
        %v2171 = vmul.f32 %v1166, %v2165
        %v2172 = vmul.f32 %v1167, %v2165
        %v2173 = vmul.f32 %v1168, %v2165
        %v2174 = vmul.f32 %v1169, %v2165
        %v2175 = vmul.f32 %v1170, %v2165
        %v2176 = vmul.f32 %v1171, %v2165
        %v2177 = vmul.f32 %v1172, %v2165
        %v2178 = vmul.f32 %v1173, %v2165
        %v2179 = vmul.f32 %v1174, %v2165
        %v2180 = vmul.f32 %v1175, %v2165
        %v2181 = vmul.f32 %v1176, %v2165
        %v2182 = vmul.f32 %v1177, %v2165
        %v2199 = vrot.slane %v2167, 2
        %v2200 = vrot.slane %v2168, 2
        %v2201 = vsel %vm1964, %v2199, %v2200
        %v2202 = vrot.slane %v2169, 2
        %v2203 = vrot.slane %v2170, 2
        %v2204 = vsel %vm1964, %v2202, %v2203
        %v2205 = vrot.slane %v2171, 2
        %v2206 = vrot.slane %v2172, 2
        %v2207 = vsel %vm1964, %v2205, %v2206
        %v2208 = vrot.slane %v2173, 2
        %v2209 = vrot.slane %v2174, 2
        %v2210 = vsel %vm1964, %v2208, %v2209
        %v2211 = vrot.slane %v2175, 2
        %v2212 = vrot.slane %v2176, 2
        %v2213 = vsel %vm1964, %v2211, %v2212
        %v2214 = vrot.slane %v2177, 2
        %v2215 = vrot.slane %v2178, 2
        %v2216 = vsel %vm1964, %v2214, %v2215
        %v2217 = vrot.slane %v2179, 2
        %v2218 = vrot.slane %v2180, 2
        %v2219 = vsel %vm1964, %v2217, %v2218
        %v2220 = vrot.slane %v2181, 2
        %v2221 = vrot.slane %v2182, 2
        %v2222 = vsel %vm1964, %v2220, %v2221
        %v2231 = vadd.f32 %v2153, %v2201
        %v2232 = vadd.f32 %v2154, %v2204
        %v2233 = vadd.f32 %v2155, %v2207
        %v2234 = vadd.f32 %v2156, %v2210
        %v2235 = vadd.f32 %v2157, %v2213
        %v2236 = vadd.f32 %v2158, %v2216
        %v2237 = vadd.f32 %v2159, %v2219
        %v2238 = vadd.f32 %v2160, %v2222
        %v2240 = vlaneseq
        %v2241 = vshrl.u32 %v2240, 7
        %v2242 = vsub.s32 0, %v2241
        %v2243 = vrot.slane %v1214, %v2242
        %v2245 = vmul.f32 %v1164, %v2243
        %v2246 = vmul.f32 %v1165, %v2243
        %v2247 = vmul.f32 %v1166, %v2243
        %v2248 = vmul.f32 %v1167, %v2243
        %v2249 = vmul.f32 %v1168, %v2243
        %v2250 = vmul.f32 %v1169, %v2243
        %v2251 = vmul.f32 %v1170, %v2243
        %v2252 = vmul.f32 %v1171, %v2243
        %v2253 = vmul.f32 %v1172, %v2243
        %v2254 = vmul.f32 %v1173, %v2243
        %v2255 = vmul.f32 %v1174, %v2243
        %v2256 = vmul.f32 %v1175, %v2243
        %v2257 = vmul.f32 %v1176, %v2243
        %v2258 = vmul.f32 %v1177, %v2243
        %v2259 = vmul.f32 %v1178, %v2243
        %v2260 = vmul.f32 %v1179, %v2243
        %v2277 = vrot.slane %v2245, 2
        %v2278 = vrot.slane %v2246, 2
        %v2279 = vsel %vm1964, %v2277, %v2278
        %v2280 = vrot.slane %v2247, 2
        %v2281 = vrot.slane %v2248, 2
        %v2282 = vsel %vm1964, %v2280, %v2281
        %v2283 = vrot.slane %v2249, 2
        %v2284 = vrot.slane %v2250, 2
        %v2285 = vsel %vm1964, %v2283, %v2284
        %v2286 = vrot.slane %v2251, 2
        %v2287 = vrot.slane %v2252, 2
        %v2288 = vsel %vm1964, %v2286, %v2287
        %v2289 = vrot.slane %v2253, 2
        %v2290 = vrot.slane %v2254, 2
        %v2291 = vsel %vm1964, %v2289, %v2290
        %v2292 = vrot.slane %v2255, 2
        %v2293 = vrot.slane %v2256, 2
        %v2294 = vsel %vm1964, %v2292, %v2293
        %v2295 = vrot.slane %v2257, 2
        %v2296 = vrot.slane %v2258, 2
        %v2297 = vsel %vm1964, %v2295, %v2296
        %v2298 = vrot.slane %v2259, 2
        %v2299 = vrot.slane %v2260, 2
        %v2300 = vsel %vm1964, %v2298, %v2299
        %v2309 = vadd.f32 %v2231, %v2279
        %v2310 = vadd.f32 %v2232, %v2282
        %v2311 = vadd.f32 %v2233, %v2285
        %v2312 = vadd.f32 %v2234, %v2288
        %v2313 = vadd.f32 %v2235, %v2291
        %v2314 = vadd.f32 %v2236, %v2294
        %v2315 = vadd.f32 %v2237, %v2297
        %v2316 = vadd.f32 %v2238, %v2300
        %v2318 = vlaneseq
        %v2319 = vshrl.u32 %v2318, 7
        %v2320 = vsub.s32 0, %v2319
        %v2321 = vrot.slane %v1221, %v2320
        %v2323 = vmul.f32 %v1166, %v2321
        %v2324 = vmul.f32 %v1167, %v2321
        %v2325 = vmul.f32 %v1168, %v2321
        %v2326 = vmul.f32 %v1169, %v2321
        %v2327 = vmul.f32 %v1170, %v2321
        %v2328 = vmul.f32 %v1171, %v2321
        %v2329 = vmul.f32 %v1172, %v2321
        %v2330 = vmul.f32 %v1173, %v2321
        %v2331 = vmul.f32 %v1174, %v2321
        %v2332 = vmul.f32 %v1175, %v2321
        %v2333 = vmul.f32 %v1176, %v2321
        %v2334 = vmul.f32 %v1177, %v2321
        %v2335 = vmul.f32 %v1178, %v2321
        %v2336 = vmul.f32 %v1179, %v2321
        %v2337 = vmul.f32 %v1180, %v2321
        %v2338 = vmul.f32 %v1181, %v2321
        %v2355 = vrot.slane %v2323, 2
        %v2356 = vrot.slane %v2324, 2
        %v2357 = vsel %vm1964, %v2355, %v2356
        %v2358 = vrot.slane %v2325, 2
        %v2359 = vrot.slane %v2326, 2
        %v2360 = vsel %vm1964, %v2358, %v2359
        %v2361 = vrot.slane %v2327, 2
        %v2362 = vrot.slane %v2328, 2
        %v2363 = vsel %vm1964, %v2361, %v2362
        %v2364 = vrot.slane %v2329, 2
        %v2365 = vrot.slane %v2330, 2
        %v2366 = vsel %vm1964, %v2364, %v2365
        %v2367 = vrot.slane %v2331, 2
        %v2368 = vrot.slane %v2332, 2
        %v2369 = vsel %vm1964, %v2367, %v2368
        %v2370 = vrot.slane %v2333, 2
        %v2371 = vrot.slane %v2334, 2
        %v2372 = vsel %vm1964, %v2370, %v2371
        %v2373 = vrot.slane %v2335, 2
        %v2374 = vrot.slane %v2336, 2
        %v2375 = vsel %vm1964, %v2373, %v2374
        %v2376 = vrot.slane %v2337, 2
        %v2377 = vrot.slane %v2338, 2
        %v2378 = vsel %vm1964, %v2376, %v2377
        %v2387 = vadd.f32 %v2309, %v2357
        %v2388 = vadd.f32 %v2310, %v2360
        %v2389 = vadd.f32 %v2311, %v2363
        %v2390 = vadd.f32 %v2312, %v2366
        %v2391 = vadd.f32 %v2313, %v2369
        %v2392 = vadd.f32 %v2314, %v2372
        %v2393 = vadd.f32 %v2315, %v2375
        %v2394 = vadd.f32 %v2316, %v2378
        %v2396 = vlaneseq
        %v2397 = vshrl.u32 %v2396, 7
        %v2398 = vsub.s32 0, %v2397
        %v2399 = vrot.slane %v1228, %v2398
        %v2401 = vmul.f32 %v1168, %v2399
        %v2402 = vmul.f32 %v1169, %v2399
        %v2403 = vmul.f32 %v1170, %v2399
        %v2404 = vmul.f32 %v1171, %v2399
        %v2405 = vmul.f32 %v1172, %v2399
        %v2406 = vmul.f32 %v1173, %v2399
        %v2407 = vmul.f32 %v1174, %v2399
        %v2408 = vmul.f32 %v1175, %v2399
        %v2409 = vmul.f32 %v1176, %v2399
        %v2410 = vmul.f32 %v1177, %v2399
        %v2411 = vmul.f32 %v1178, %v2399
        %v2412 = vmul.f32 %v1179, %v2399
        %v2413 = vmul.f32 %v1180, %v2399
        %v2414 = vmul.f32 %v1181, %v2399
        %v2415 = vmul.f32 %v1182, %v2399
        %v2416 = vmul.f32 %v1183, %v2399
        %v2433 = vrot.slane %v2401, 2
        %v2434 = vrot.slane %v2402, 2
        %v2435 = vsel %vm1964, %v2433, %v2434
        %v2436 = vrot.slane %v2403, 2
        %v2437 = vrot.slane %v2404, 2
        %v2438 = vsel %vm1964, %v2436, %v2437
        %v2439 = vrot.slane %v2405, 2
        %v2440 = vrot.slane %v2406, 2
        %v2441 = vsel %vm1964, %v2439, %v2440
        %v2442 = vrot.slane %v2407, 2
        %v2443 = vrot.slane %v2408, 2
        %v2444 = vsel %vm1964, %v2442, %v2443
        %v2445 = vrot.slane %v2409, 2
        %v2446 = vrot.slane %v2410, 2
        %v2447 = vsel %vm1964, %v2445, %v2446
        %v2448 = vrot.slane %v2411, 2
        %v2449 = vrot.slane %v2412, 2
        %v2450 = vsel %vm1964, %v2448, %v2449
        %v2451 = vrot.slane %v2413, 2
        %v2452 = vrot.slane %v2414, 2
        %v2453 = vsel %vm1964, %v2451, %v2452
        %v2454 = vrot.slane %v2415, 2
        %v2455 = vrot.slane %v2416, 2
        %v2456 = vsel %vm1964, %v2454, %v2455
        %v2465 = vadd.f32 %v2387, %v2435
        %v2466 = vadd.f32 %v2388, %v2438
        %v2467 = vadd.f32 %v2389, %v2441
        %v2468 = vadd.f32 %v2390, %v2444
        %v2469 = vadd.f32 %v2391, %v2447
        %v2470 = vadd.f32 %v2392, %v2450
        %v2471 = vadd.f32 %v2393, %v2453
        %v2472 = vadd.f32 %v2394, %v2456
        %v2474 = vlaneseq
        %v2475 = vshrl.u32 %v2474, 7
        %v2476 = vsub.s32 0, %v2475
        %v2477 = vrot.slane %v1187, %v2476
        %v2479 = vmul.f32 %v1156, %v2477
        %v2480 = vmul.f32 %v1157, %v2477
        %v2481 = vmul.f32 %v1158, %v2477
        %v2482 = vmul.f32 %v1159, %v2477
        %v2483 = vmul.f32 %v1160, %v2477
        %v2484 = vmul.f32 %v1161, %v2477
        %v2485 = vmul.f32 %v1162, %v2477
        %v2486 = vmul.f32 %v1163, %v2477
        %v2487 = vmul.f32 %v1164, %v2477
        %v2488 = vmul.f32 %v1165, %v2477
        %v2489 = vmul.f32 %v1166, %v2477
        %v2490 = vmul.f32 %v1167, %v2477
        %v2491 = vmul.f32 %v1168, %v2477
        %v2492 = vmul.f32 %v1169, %v2477
        %v2493 = vmul.f32 %v1170, %v2477
        %v2494 = vmul.f32 %v1171, %v2477
        %vm2511 = vcmask 1044480
        %v2512 = vrot.slane %v2479, 3
        %v2513 = vrot.slane %v2480, 3
        %v2514 = vsel %vm2511, %v2512, %v2513
        %v2515 = vrot.slane %v2481, 3
        %v2516 = vrot.slane %v2482, 3
        %v2517 = vsel %vm2511, %v2515, %v2516
        %v2518 = vrot.slane %v2483, 3
        %v2519 = vrot.slane %v2484, 3
        %v2520 = vsel %vm2511, %v2518, %v2519
        %v2521 = vrot.slane %v2485, 3
        %v2522 = vrot.slane %v2486, 3
        %v2523 = vsel %vm2511, %v2521, %v2522
        %v2524 = vrot.slane %v2487, 3
        %v2525 = vrot.slane %v2488, 3
        %v2526 = vsel %vm2511, %v2524, %v2525
        %v2527 = vrot.slane %v2489, 3
        %v2528 = vrot.slane %v2490, 3
        %v2529 = vsel %vm2511, %v2527, %v2528
        %v2530 = vrot.slane %v2491, 3
        %v2531 = vrot.slane %v2492, 3
        %v2532 = vsel %vm2511, %v2530, %v2531
        %v2533 = vrot.slane %v2493, 3
        %v2534 = vrot.slane %v2494, 3
        %v2535 = vsel %vm2511, %v2533, %v2534
        %v2544 = vadd.f32 %v2465, %v2514
        %v2545 = vadd.f32 %v2466, %v2517
        %v2546 = vadd.f32 %v2467, %v2520
        %v2547 = vadd.f32 %v2468, %v2523
        %v2548 = vadd.f32 %v2469, %v2526
        %v2549 = vadd.f32 %v2470, %v2529
        %v2550 = vadd.f32 %v2471, %v2532
        %v2551 = vadd.f32 %v2472, %v2535
        %v2553 = vlaneseq
        %v2554 = vshrl.u32 %v2553, 7
        %v2555 = vsub.s32 0, %v2554
        %v2556 = vrot.slane %v1194, %v2555
        %v2558 = vmul.f32 %v1158, %v2556
        %v2559 = vmul.f32 %v1159, %v2556
        %v2560 = vmul.f32 %v1160, %v2556
        %v2561 = vmul.f32 %v1161, %v2556
        %v2562 = vmul.f32 %v1162, %v2556
        %v2563 = vmul.f32 %v1163, %v2556
        %v2564 = vmul.f32 %v1164, %v2556
        %v2565 = vmul.f32 %v1165, %v2556
        %v2566 = vmul.f32 %v1166, %v2556
        %v2567 = vmul.f32 %v1167, %v2556
        %v2568 = vmul.f32 %v1168, %v2556
        %v2569 = vmul.f32 %v1169, %v2556
        %v2570 = vmul.f32 %v1170, %v2556
        %v2571 = vmul.f32 %v1171, %v2556
        %v2572 = vmul.f32 %v1172, %v2556
        %v2573 = vmul.f32 %v1173, %v2556
        %v2590 = vrot.slane %v2558, 3
        %v2591 = vrot.slane %v2559, 3
        %v2592 = vsel %vm2511, %v2590, %v2591
        %v2593 = vrot.slane %v2560, 3
        %v2594 = vrot.slane %v2561, 3
        %v2595 = vsel %vm2511, %v2593, %v2594
        %v2596 = vrot.slane %v2562, 3
        %v2597 = vrot.slane %v2563, 3
        %v2598 = vsel %vm2511, %v2596, %v2597
        %v2599 = vrot.slane %v2564, 3
        %v2600 = vrot.slane %v2565, 3
        %v2601 = vsel %vm2511, %v2599, %v2600
        %v2602 = vrot.slane %v2566, 3
        %v2603 = vrot.slane %v2567, 3
        %v2604 = vsel %vm2511, %v2602, %v2603
        %v2605 = vrot.slane %v2568, 3
        %v2606 = vrot.slane %v2569, 3
        %v2607 = vsel %vm2511, %v2605, %v2606
        %v2608 = vrot.slane %v2570, 3
        %v2609 = vrot.slane %v2571, 3
        %v2610 = vsel %vm2511, %v2608, %v2609
        %v2611 = vrot.slane %v2572, 3
        %v2612 = vrot.slane %v2573, 3
        %v2613 = vsel %vm2511, %v2611, %v2612
        %v2622 = vadd.f32 %v2544, %v2592
        %v2623 = vadd.f32 %v2545, %v2595
        %v2624 = vadd.f32 %v2546, %v2598
        %v2625 = vadd.f32 %v2547, %v2601
        %v2626 = vadd.f32 %v2548, %v2604
        %v2627 = vadd.f32 %v2549, %v2607
        %v2628 = vadd.f32 %v2550, %v2610
        %v2629 = vadd.f32 %v2551, %v2613
        %v2631 = vlaneseq
        %v2632 = vshrl.u32 %v2631, 7
        %v2633 = vsub.s32 0, %v2632
        %v2634 = vrot.slane %v1201, %v2633
        %v2636 = vmul.f32 %v1160, %v2634
        %v2637 = vmul.f32 %v1161, %v2634
        %v2638 = vmul.f32 %v1162, %v2634
        %v2639 = vmul.f32 %v1163, %v2634
        %v2640 = vmul.f32 %v1164, %v2634
        %v2641 = vmul.f32 %v1165, %v2634
        %v2642 = vmul.f32 %v1166, %v2634
        %v2643 = vmul.f32 %v1167, %v2634
        %v2644 = vmul.f32 %v1168, %v2634
        %v2645 = vmul.f32 %v1169, %v2634
        %v2646 = vmul.f32 %v1170, %v2634
        %v2647 = vmul.f32 %v1171, %v2634
        %v2648 = vmul.f32 %v1172, %v2634
        %v2649 = vmul.f32 %v1173, %v2634
        %v2650 = vmul.f32 %v1174, %v2634
        %v2651 = vmul.f32 %v1175, %v2634
        %v2668 = vrot.slane %v2636, 3
        %v2669 = vrot.slane %v2637, 3
        %v2670 = vsel %vm2511, %v2668, %v2669
        %v2671 = vrot.slane %v2638, 3
        %v2672 = vrot.slane %v2639, 3
        %v2673 = vsel %vm2511, %v2671, %v2672
        %v2674 = vrot.slane %v2640, 3
        %v2675 = vrot.slane %v2641, 3
        %v2676 = vsel %vm2511, %v2674, %v2675
        %v2677 = vrot.slane %v2642, 3
        %v2678 = vrot.slane %v2643, 3
        %v2679 = vsel %vm2511, %v2677, %v2678
        %v2680 = vrot.slane %v2644, 3
        %v2681 = vrot.slane %v2645, 3
        %v2682 = vsel %vm2511, %v2680, %v2681
        %v2683 = vrot.slane %v2646, 3
        %v2684 = vrot.slane %v2647, 3
        %v2685 = vsel %vm2511, %v2683, %v2684
        %v2686 = vrot.slane %v2648, 3
        %v2687 = vrot.slane %v2649, 3
        %v2688 = vsel %vm2511, %v2686, %v2687
        %v2689 = vrot.slane %v2650, 3
        %v2690 = vrot.slane %v2651, 3
        %v2691 = vsel %vm2511, %v2689, %v2690
        %v2700 = vadd.f32 %v2622, %v2670
        %v2701 = vadd.f32 %v2623, %v2673
        %v2702 = vadd.f32 %v2624, %v2676
        %v2703 = vadd.f32 %v2625, %v2679
        %v2704 = vadd.f32 %v2626, %v2682
        %v2705 = vadd.f32 %v2627, %v2685
        %v2706 = vadd.f32 %v2628, %v2688
        %v2707 = vadd.f32 %v2629, %v2691
        %v2709 = vlaneseq
        %v2710 = vshrl.u32 %v2709, 7
        %v2711 = vsub.s32 0, %v2710
        %v2712 = vrot.slane %v1208, %v2711
        %v2714 = vmul.f32 %v1162, %v2712
        %v2715 = vmul.f32 %v1163, %v2712
        %v2716 = vmul.f32 %v1164, %v2712
        %v2717 = vmul.f32 %v1165, %v2712
        %v2718 = vmul.f32 %v1166, %v2712
        %v2719 = vmul.f32 %v1167, %v2712
        %v2720 = vmul.f32 %v1168, %v2712
        %v2721 = vmul.f32 %v1169, %v2712
        %v2722 = vmul.f32 %v1170, %v2712
        %v2723 = vmul.f32 %v1171, %v2712
        %v2724 = vmul.f32 %v1172, %v2712
        %v2725 = vmul.f32 %v1173, %v2712
        %v2726 = vmul.f32 %v1174, %v2712
        %v2727 = vmul.f32 %v1175, %v2712
        %v2728 = vmul.f32 %v1176, %v2712
        %v2729 = vmul.f32 %v1177, %v2712
        %v2746 = vrot.slane %v2714, 3
        %v2747 = vrot.slane %v2715, 3
        %v2748 = vsel %vm2511, %v2746, %v2747
        %v2749 = vrot.slane %v2716, 3
        %v2750 = vrot.slane %v2717, 3
        %v2751 = vsel %vm2511, %v2749, %v2750
        %v2752 = vrot.slane %v2718, 3
        %v2753 = vrot.slane %v2719, 3
        %v2754 = vsel %vm2511, %v2752, %v2753
        %v2755 = vrot.slane %v2720, 3
        %v2756 = vrot.slane %v2721, 3
        %v2757 = vsel %vm2511, %v2755, %v2756
        %v2758 = vrot.slane %v2722, 3
        %v2759 = vrot.slane %v2723, 3
        %v2760 = vsel %vm2511, %v2758, %v2759
        %v2761 = vrot.slane %v2724, 3
        %v2762 = vrot.slane %v2725, 3
        %v2763 = vsel %vm2511, %v2761, %v2762
        %v2764 = vrot.slane %v2726, 3
        %v2765 = vrot.slane %v2727, 3
        %v2766 = vsel %vm2511, %v2764, %v2765
        %v2767 = vrot.slane %v2728, 3
        %v2768 = vrot.slane %v2729, 3
        %v2769 = vsel %vm2511, %v2767, %v2768
        %v2778 = vadd.f32 %v2700, %v2748
        %v2779 = vadd.f32 %v2701, %v2751
        %v2780 = vadd.f32 %v2702, %v2754
        %v2781 = vadd.f32 %v2703, %v2757
        %v2782 = vadd.f32 %v2704, %v2760
        %v2783 = vadd.f32 %v2705, %v2763
        %v2784 = vadd.f32 %v2706, %v2766
        %v2785 = vadd.f32 %v2707, %v2769
        %v2787 = vlaneseq
        %v2788 = vshrl.u32 %v2787, 7
        %v2789 = vsub.s32 0, %v2788
        %v2790 = vrot.slane %v1215, %v2789
        %v2792 = vmul.f32 %v1164, %v2790
        %v2793 = vmul.f32 %v1165, %v2790
        %v2794 = vmul.f32 %v1166, %v2790
        %v2795 = vmul.f32 %v1167, %v2790
        %v2796 = vmul.f32 %v1168, %v2790
        %v2797 = vmul.f32 %v1169, %v2790
        %v2798 = vmul.f32 %v1170, %v2790
        %v2799 = vmul.f32 %v1171, %v2790
        %v2800 = vmul.f32 %v1172, %v2790
        %v2801 = vmul.f32 %v1173, %v2790
        %v2802 = vmul.f32 %v1174, %v2790
        %v2803 = vmul.f32 %v1175, %v2790
        %v2804 = vmul.f32 %v1176, %v2790
        %v2805 = vmul.f32 %v1177, %v2790
        %v2806 = vmul.f32 %v1178, %v2790
        %v2807 = vmul.f32 %v1179, %v2790
        %v2824 = vrot.slane %v2792, 3
        %v2825 = vrot.slane %v2793, 3
        %v2826 = vsel %vm2511, %v2824, %v2825
        %v2827 = vrot.slane %v2794, 3
        %v2828 = vrot.slane %v2795, 3
        %v2829 = vsel %vm2511, %v2827, %v2828
        %v2830 = vrot.slane %v2796, 3
        %v2831 = vrot.slane %v2797, 3
        %v2832 = vsel %vm2511, %v2830, %v2831
        %v2833 = vrot.slane %v2798, 3
        %v2834 = vrot.slane %v2799, 3
        %v2835 = vsel %vm2511, %v2833, %v2834
        %v2836 = vrot.slane %v2800, 3
        %v2837 = vrot.slane %v2801, 3
        %v2838 = vsel %vm2511, %v2836, %v2837
        %v2839 = vrot.slane %v2802, 3
        %v2840 = vrot.slane %v2803, 3
        %v2841 = vsel %vm2511, %v2839, %v2840
        %v2842 = vrot.slane %v2804, 3
        %v2843 = vrot.slane %v2805, 3
        %v2844 = vsel %vm2511, %v2842, %v2843
        %v2845 = vrot.slane %v2806, 3
        %v2846 = vrot.slane %v2807, 3
        %v2847 = vsel %vm2511, %v2845, %v2846
        %v2856 = vadd.f32 %v2778, %v2826
        %v2857 = vadd.f32 %v2779, %v2829
        %v2858 = vadd.f32 %v2780, %v2832
        %v2859 = vadd.f32 %v2781, %v2835
        %v2860 = vadd.f32 %v2782, %v2838
        %v2861 = vadd.f32 %v2783, %v2841
        %v2862 = vadd.f32 %v2784, %v2844
        %v2863 = vadd.f32 %v2785, %v2847
        %v2865 = vlaneseq
        %v2866 = vshrl.u32 %v2865, 7
        %v2867 = vsub.s32 0, %v2866
        %v2868 = vrot.slane %v1222, %v2867
        %v2870 = vmul.f32 %v1166, %v2868
        %v2871 = vmul.f32 %v1167, %v2868
        %v2872 = vmul.f32 %v1168, %v2868
        %v2873 = vmul.f32 %v1169, %v2868
        %v2874 = vmul.f32 %v1170, %v2868
        %v2875 = vmul.f32 %v1171, %v2868
        %v2876 = vmul.f32 %v1172, %v2868
        %v2877 = vmul.f32 %v1173, %v2868
        %v2878 = vmul.f32 %v1174, %v2868
        %v2879 = vmul.f32 %v1175, %v2868
        %v2880 = vmul.f32 %v1176, %v2868
        %v2881 = vmul.f32 %v1177, %v2868
        %v2882 = vmul.f32 %v1178, %v2868
        %v2883 = vmul.f32 %v1179, %v2868
        %v2884 = vmul.f32 %v1180, %v2868
        %v2885 = vmul.f32 %v1181, %v2868
        %v2902 = vrot.slane %v2870, 3
        %v2903 = vrot.slane %v2871, 3
        %v2904 = vsel %vm2511, %v2902, %v2903
        %v2905 = vrot.slane %v2872, 3
        %v2906 = vrot.slane %v2873, 3
        %v2907 = vsel %vm2511, %v2905, %v2906
        %v2908 = vrot.slane %v2874, 3
        %v2909 = vrot.slane %v2875, 3
        %v2910 = vsel %vm2511, %v2908, %v2909
        %v2911 = vrot.slane %v2876, 3
        %v2912 = vrot.slane %v2877, 3
        %v2913 = vsel %vm2511, %v2911, %v2912
        %v2914 = vrot.slane %v2878, 3
        %v2915 = vrot.slane %v2879, 3
        %v2916 = vsel %vm2511, %v2914, %v2915
        %v2917 = vrot.slane %v2880, 3
        %v2918 = vrot.slane %v2881, 3
        %v2919 = vsel %vm2511, %v2917, %v2918
        %v2920 = vrot.slane %v2882, 3
        %v2921 = vrot.slane %v2883, 3
        %v2922 = vsel %vm2511, %v2920, %v2921
        %v2923 = vrot.slane %v2884, 3
        %v2924 = vrot.slane %v2885, 3
        %v2925 = vsel %vm2511, %v2923, %v2924
        %v2934 = vadd.f32 %v2856, %v2904
        %v2935 = vadd.f32 %v2857, %v2907
        %v2936 = vadd.f32 %v2858, %v2910
        %v2937 = vadd.f32 %v2859, %v2913
        %v2938 = vadd.f32 %v2860, %v2916
        %v2939 = vadd.f32 %v2861, %v2919
        %v2940 = vadd.f32 %v2862, %v2922
        %v2941 = vadd.f32 %v2863, %v2925
        %v2943 = vlaneseq
        %v2944 = vshrl.u32 %v2943, 7
        %v2945 = vsub.s32 0, %v2944
        %v2946 = vrot.slane %v1229, %v2945
        %v2948 = vmul.f32 %v1168, %v2946
        %v2949 = vmul.f32 %v1169, %v2946
        %v2950 = vmul.f32 %v1170, %v2946
        %v2951 = vmul.f32 %v1171, %v2946
        %v2952 = vmul.f32 %v1172, %v2946
        %v2953 = vmul.f32 %v1173, %v2946
        %v2954 = vmul.f32 %v1174, %v2946
        %v2955 = vmul.f32 %v1175, %v2946
        %v2956 = vmul.f32 %v1176, %v2946
        %v2957 = vmul.f32 %v1177, %v2946
        %v2958 = vmul.f32 %v1178, %v2946
        %v2959 = vmul.f32 %v1179, %v2946
        %v2960 = vmul.f32 %v1180, %v2946
        %v2961 = vmul.f32 %v1181, %v2946
        %v2962 = vmul.f32 %v1182, %v2946
        %v2963 = vmul.f32 %v1183, %v2946
        %v2980 = vrot.slane %v2948, 3
        %v2981 = vrot.slane %v2949, 3
        %v2982 = vsel %vm2511, %v2980, %v2981
        %v2983 = vrot.slane %v2950, 3
        %v2984 = vrot.slane %v2951, 3
        %v2985 = vsel %vm2511, %v2983, %v2984
        %v2986 = vrot.slane %v2952, 3
        %v2987 = vrot.slane %v2953, 3
        %v2988 = vsel %vm2511, %v2986, %v2987
        %v2989 = vrot.slane %v2954, 3
        %v2990 = vrot.slane %v2955, 3
        %v2991 = vsel %vm2511, %v2989, %v2990
        %v2992 = vrot.slane %v2956, 3
        %v2993 = vrot.slane %v2957, 3
        %v2994 = vsel %vm2511, %v2992, %v2993
        %v2995 = vrot.slane %v2958, 3
        %v2996 = vrot.slane %v2959, 3
        %v2997 = vsel %vm2511, %v2995, %v2996
        %v2998 = vrot.slane %v2960, 3
        %v2999 = vrot.slane %v2961, 3
        %v3000 = vsel %vm2511, %v2998, %v2999
        %v3001 = vrot.slane %v2962, 3
        %v3002 = vrot.slane %v2963, 3
        %v3003 = vsel %vm2511, %v3001, %v3002
        %v3012 = vadd.f32 %v2934, %v2982
        %v3013 = vadd.f32 %v2935, %v2985
        %v3014 = vadd.f32 %v2936, %v2988
        %v3015 = vadd.f32 %v2937, %v2991
        %v3016 = vadd.f32 %v2938, %v2994
        %v3017 = vadd.f32 %v2939, %v2997
        %v3018 = vadd.f32 %v2940, %v3000
        %v3019 = vadd.f32 %v2941, %v3003
        %v3021 = vlaneseq
        %v3022 = vshrl.u32 %v3021, 7
        %v3023 = vsub.s32 0, %v3022
        %v3024 = vrot.slane %v1188, %v3023
        %v3026 = vmul.f32 %v1156, %v3024
        %v3027 = vmul.f32 %v1157, %v3024
        %v3028 = vmul.f32 %v1158, %v3024
        %v3029 = vmul.f32 %v1159, %v3024
        %v3030 = vmul.f32 %v1160, %v3024
        %v3031 = vmul.f32 %v1161, %v3024
        %v3032 = vmul.f32 %v1162, %v3024
        %v3033 = vmul.f32 %v1163, %v3024
        %v3034 = vmul.f32 %v1164, %v3024
        %v3035 = vmul.f32 %v1165, %v3024
        %v3036 = vmul.f32 %v1166, %v3024
        %v3037 = vmul.f32 %v1167, %v3024
        %v3038 = vmul.f32 %v1168, %v3024
        %v3039 = vmul.f32 %v1169, %v3024
        %v3040 = vmul.f32 %v1170, %v3024
        %v3041 = vmul.f32 %v1171, %v3024
        %v3058 = vrot.slane %v3026, 4
        %v3059 = vrot.slane %v3027, 4
        %v3060 = vsel %vm414, %v3058, %v3059
        %v3061 = vrot.slane %v3028, 4
        %v3062 = vrot.slane %v3029, 4
        %v3063 = vsel %vm414, %v3061, %v3062
        %v3064 = vrot.slane %v3030, 4
        %v3065 = vrot.slane %v3031, 4
        %v3066 = vsel %vm414, %v3064, %v3065
        %v3067 = vrot.slane %v3032, 4
        %v3068 = vrot.slane %v3033, 4
        %v3069 = vsel %vm414, %v3067, %v3068
        %v3070 = vrot.slane %v3034, 4
        %v3071 = vrot.slane %v3035, 4
        %v3072 = vsel %vm414, %v3070, %v3071
        %v3073 = vrot.slane %v3036, 4
        %v3074 = vrot.slane %v3037, 4
        %v3075 = vsel %vm414, %v3073, %v3074
        %v3076 = vrot.slane %v3038, 4
        %v3077 = vrot.slane %v3039, 4
        %v3078 = vsel %vm414, %v3076, %v3077
        %v3079 = vrot.slane %v3040, 4
        %v3080 = vrot.slane %v3041, 4
        %v3081 = vsel %vm414, %v3079, %v3080
        %v3090 = vadd.f32 %v3012, %v3060
        %v3091 = vadd.f32 %v3013, %v3063
        %v3092 = vadd.f32 %v3014, %v3066
        %v3093 = vadd.f32 %v3015, %v3069
        %v3094 = vadd.f32 %v3016, %v3072
        %v3095 = vadd.f32 %v3017, %v3075
        %v3096 = vadd.f32 %v3018, %v3078
        %v3097 = vadd.f32 %v3019, %v3081
        %v3099 = vlaneseq
        %v3100 = vshrl.u32 %v3099, 7
        %v3101 = vsub.s32 0, %v3100
        %v3102 = vrot.slane %v1195, %v3101
        %v3104 = vmul.f32 %v1158, %v3102
        %v3105 = vmul.f32 %v1159, %v3102
        %v3106 = vmul.f32 %v1160, %v3102
        %v3107 = vmul.f32 %v1161, %v3102
        %v3108 = vmul.f32 %v1162, %v3102
        %v3109 = vmul.f32 %v1163, %v3102
        %v3110 = vmul.f32 %v1164, %v3102
        %v3111 = vmul.f32 %v1165, %v3102
        %v3112 = vmul.f32 %v1166, %v3102
        %v3113 = vmul.f32 %v1167, %v3102
        %v3114 = vmul.f32 %v1168, %v3102
        %v3115 = vmul.f32 %v1169, %v3102
        %v3116 = vmul.f32 %v1170, %v3102
        %v3117 = vmul.f32 %v1171, %v3102
        %v3118 = vmul.f32 %v1172, %v3102
        %v3119 = vmul.f32 %v1173, %v3102
        %v3136 = vrot.slane %v3104, 4
        %v3137 = vrot.slane %v3105, 4
        %v3138 = vsel %vm414, %v3136, %v3137
        %v3139 = vrot.slane %v3106, 4
        %v3140 = vrot.slane %v3107, 4
        %v3141 = vsel %vm414, %v3139, %v3140
        %v3142 = vrot.slane %v3108, 4
        %v3143 = vrot.slane %v3109, 4
        %v3144 = vsel %vm414, %v3142, %v3143
        %v3145 = vrot.slane %v3110, 4
        %v3146 = vrot.slane %v3111, 4
        %v3147 = vsel %vm414, %v3145, %v3146
        %v3148 = vrot.slane %v3112, 4
        %v3149 = vrot.slane %v3113, 4
        %v3150 = vsel %vm414, %v3148, %v3149
        %v3151 = vrot.slane %v3114, 4
        %v3152 = vrot.slane %v3115, 4
        %v3153 = vsel %vm414, %v3151, %v3152
        %v3154 = vrot.slane %v3116, 4
        %v3155 = vrot.slane %v3117, 4
        %v3156 = vsel %vm414, %v3154, %v3155
        %v3157 = vrot.slane %v3118, 4
        %v3158 = vrot.slane %v3119, 4
        %v3159 = vsel %vm414, %v3157, %v3158
        %v3168 = vadd.f32 %v3090, %v3138
        %v3169 = vadd.f32 %v3091, %v3141
        %v3170 = vadd.f32 %v3092, %v3144
        %v3171 = vadd.f32 %v3093, %v3147
        %v3172 = vadd.f32 %v3094, %v3150
        %v3173 = vadd.f32 %v3095, %v3153
        %v3174 = vadd.f32 %v3096, %v3156
        %v3175 = vadd.f32 %v3097, %v3159
        %v3177 = vlaneseq
        %v3178 = vshrl.u32 %v3177, 7
        %v3179 = vsub.s32 0, %v3178
        %v3180 = vrot.slane %v1202, %v3179
        %v3182 = vmul.f32 %v1160, %v3180
        %v3183 = vmul.f32 %v1161, %v3180
        %v3184 = vmul.f32 %v1162, %v3180
        %v3185 = vmul.f32 %v1163, %v3180
        %v3186 = vmul.f32 %v1164, %v3180
        %v3187 = vmul.f32 %v1165, %v3180
        %v3188 = vmul.f32 %v1166, %v3180
        %v3189 = vmul.f32 %v1167, %v3180
        %v3190 = vmul.f32 %v1168, %v3180
        %v3191 = vmul.f32 %v1169, %v3180
        %v3192 = vmul.f32 %v1170, %v3180
        %v3193 = vmul.f32 %v1171, %v3180
        %v3194 = vmul.f32 %v1172, %v3180
        %v3195 = vmul.f32 %v1173, %v3180
        %v3196 = vmul.f32 %v1174, %v3180
        %v3197 = vmul.f32 %v1175, %v3180
        %v3214 = vrot.slane %v3182, 4
        %v3215 = vrot.slane %v3183, 4
        %v3216 = vsel %vm414, %v3214, %v3215
        %v3217 = vrot.slane %v3184, 4
        %v3218 = vrot.slane %v3185, 4
        %v3219 = vsel %vm414, %v3217, %v3218
        %v3220 = vrot.slane %v3186, 4
        %v3221 = vrot.slane %v3187, 4
        %v3222 = vsel %vm414, %v3220, %v3221
        %v3223 = vrot.slane %v3188, 4
        %v3224 = vrot.slane %v3189, 4
        %v3225 = vsel %vm414, %v3223, %v3224
        %v3226 = vrot.slane %v3190, 4
        %v3227 = vrot.slane %v3191, 4
        %v3228 = vsel %vm414, %v3226, %v3227
        %v3229 = vrot.slane %v3192, 4
        %v3230 = vrot.slane %v3193, 4
        %v3231 = vsel %vm414, %v3229, %v3230
        %v3232 = vrot.slane %v3194, 4
        %v3233 = vrot.slane %v3195, 4
        %v3234 = vsel %vm414, %v3232, %v3233
        %v3235 = vrot.slane %v3196, 4
        %v3236 = vrot.slane %v3197, 4
        %v3237 = vsel %vm414, %v3235, %v3236
        %v3246 = vadd.f32 %v3168, %v3216
        %v3247 = vadd.f32 %v3169, %v3219
        %v3248 = vadd.f32 %v3170, %v3222
        %v3249 = vadd.f32 %v3171, %v3225
        %v3250 = vadd.f32 %v3172, %v3228
        %v3251 = vadd.f32 %v3173, %v3231
        %v3252 = vadd.f32 %v3174, %v3234
        %v3253 = vadd.f32 %v3175, %v3237
        %v3255 = vlaneseq
        %v3256 = vshrl.u32 %v3255, 7
        %v3257 = vsub.s32 0, %v3256
        %v3258 = vrot.slane %v1209, %v3257
        %v3260 = vmul.f32 %v1162, %v3258
        %v3261 = vmul.f32 %v1163, %v3258
        %v3262 = vmul.f32 %v1164, %v3258
        %v3263 = vmul.f32 %v1165, %v3258
        %v3264 = vmul.f32 %v1166, %v3258
        %v3265 = vmul.f32 %v1167, %v3258
        %v3266 = vmul.f32 %v1168, %v3258
        %v3267 = vmul.f32 %v1169, %v3258
        %v3268 = vmul.f32 %v1170, %v3258
        %v3269 = vmul.f32 %v1171, %v3258
        %v3270 = vmul.f32 %v1172, %v3258
        %v3271 = vmul.f32 %v1173, %v3258
        %v3272 = vmul.f32 %v1174, %v3258
        %v3273 = vmul.f32 %v1175, %v3258
        %v3274 = vmul.f32 %v1176, %v3258
        %v3275 = vmul.f32 %v1177, %v3258
        %v3292 = vrot.slane %v3260, 4
        %v3293 = vrot.slane %v3261, 4
        %v3294 = vsel %vm414, %v3292, %v3293
        %v3295 = vrot.slane %v3262, 4
        %v3296 = vrot.slane %v3263, 4
        %v3297 = vsel %vm414, %v3295, %v3296
        %v3298 = vrot.slane %v3264, 4
        %v3299 = vrot.slane %v3265, 4
        %v3300 = vsel %vm414, %v3298, %v3299
        %v3301 = vrot.slane %v3266, 4
        %v3302 = vrot.slane %v3267, 4
        %v3303 = vsel %vm414, %v3301, %v3302
        %v3304 = vrot.slane %v3268, 4
        %v3305 = vrot.slane %v3269, 4
        %v3306 = vsel %vm414, %v3304, %v3305
        %v3307 = vrot.slane %v3270, 4
        %v3308 = vrot.slane %v3271, 4
        %v3309 = vsel %vm414, %v3307, %v3308
        %v3310 = vrot.slane %v3272, 4
        %v3311 = vrot.slane %v3273, 4
        %v3312 = vsel %vm414, %v3310, %v3311
        %v3313 = vrot.slane %v3274, 4
        %v3314 = vrot.slane %v3275, 4
        %v3315 = vsel %vm414, %v3313, %v3314
        %v3324 = vadd.f32 %v3246, %v3294
        %v3325 = vadd.f32 %v3247, %v3297
        %v3326 = vadd.f32 %v3248, %v3300
        %v3327 = vadd.f32 %v3249, %v3303
        %v3328 = vadd.f32 %v3250, %v3306
        %v3329 = vadd.f32 %v3251, %v3309
        %v3330 = vadd.f32 %v3252, %v3312
        %v3331 = vadd.f32 %v3253, %v3315
        %v3333 = vlaneseq
        %v3334 = vshrl.u32 %v3333, 7
        %v3335 = vsub.s32 0, %v3334
        %v3336 = vrot.slane %v1216, %v3335
        %v3338 = vmul.f32 %v1164, %v3336
        %v3339 = vmul.f32 %v1165, %v3336
        %v3340 = vmul.f32 %v1166, %v3336
        %v3341 = vmul.f32 %v1167, %v3336
        %v3342 = vmul.f32 %v1168, %v3336
        %v3343 = vmul.f32 %v1169, %v3336
        %v3344 = vmul.f32 %v1170, %v3336
        %v3345 = vmul.f32 %v1171, %v3336
        %v3346 = vmul.f32 %v1172, %v3336
        %v3347 = vmul.f32 %v1173, %v3336
        %v3348 = vmul.f32 %v1174, %v3336
        %v3349 = vmul.f32 %v1175, %v3336
        %v3350 = vmul.f32 %v1176, %v3336
        %v3351 = vmul.f32 %v1177, %v3336
        %v3352 = vmul.f32 %v1178, %v3336
        %v3353 = vmul.f32 %v1179, %v3336
        %v3370 = vrot.slane %v3338, 4
        %v3371 = vrot.slane %v3339, 4
        %v3372 = vsel %vm414, %v3370, %v3371
        %v3373 = vrot.slane %v3340, 4
        %v3374 = vrot.slane %v3341, 4
        %v3375 = vsel %vm414, %v3373, %v3374
        %v3376 = vrot.slane %v3342, 4
        %v3377 = vrot.slane %v3343, 4
        %v3378 = vsel %vm414, %v3376, %v3377
        %v3379 = vrot.slane %v3344, 4
        %v3380 = vrot.slane %v3345, 4
        %v3381 = vsel %vm414, %v3379, %v3380
        %v3382 = vrot.slane %v3346, 4
        %v3383 = vrot.slane %v3347, 4
        %v3384 = vsel %vm414, %v3382, %v3383
        %v3385 = vrot.slane %v3348, 4
        %v3386 = vrot.slane %v3349, 4
        %v3387 = vsel %vm414, %v3385, %v3386
        %v3388 = vrot.slane %v3350, 4
        %v3389 = vrot.slane %v3351, 4
        %v3390 = vsel %vm414, %v3388, %v3389
        %v3391 = vrot.slane %v3352, 4
        %v3392 = vrot.slane %v3353, 4
        %v3393 = vsel %vm414, %v3391, %v3392
        %v3402 = vadd.f32 %v3324, %v3372
        %v3403 = vadd.f32 %v3325, %v3375
        %v3404 = vadd.f32 %v3326, %v3378
        %v3405 = vadd.f32 %v3327, %v3381
        %v3406 = vadd.f32 %v3328, %v3384
        %v3407 = vadd.f32 %v3329, %v3387
        %v3408 = vadd.f32 %v3330, %v3390
        %v3409 = vadd.f32 %v3331, %v3393
        %v3411 = vlaneseq
        %v3412 = vshrl.u32 %v3411, 7
        %v3413 = vsub.s32 0, %v3412
        %v3414 = vrot.slane %v1223, %v3413
        %v3416 = vmul.f32 %v1166, %v3414
        %v3417 = vmul.f32 %v1167, %v3414
        %v3418 = vmul.f32 %v1168, %v3414
        %v3419 = vmul.f32 %v1169, %v3414
        %v3420 = vmul.f32 %v1170, %v3414
        %v3421 = vmul.f32 %v1171, %v3414
        %v3422 = vmul.f32 %v1172, %v3414
        %v3423 = vmul.f32 %v1173, %v3414
        %v3424 = vmul.f32 %v1174, %v3414
        %v3425 = vmul.f32 %v1175, %v3414
        %v3426 = vmul.f32 %v1176, %v3414
        %v3427 = vmul.f32 %v1177, %v3414
        %v3428 = vmul.f32 %v1178, %v3414
        %v3429 = vmul.f32 %v1179, %v3414
        %v3430 = vmul.f32 %v1180, %v3414
        %v3431 = vmul.f32 %v1181, %v3414
        %v3448 = vrot.slane %v3416, 4
        %v3449 = vrot.slane %v3417, 4
        %v3450 = vsel %vm414, %v3448, %v3449
        %v3451 = vrot.slane %v3418, 4
        %v3452 = vrot.slane %v3419, 4
        %v3453 = vsel %vm414, %v3451, %v3452
        %v3454 = vrot.slane %v3420, 4
        %v3455 = vrot.slane %v3421, 4
        %v3456 = vsel %vm414, %v3454, %v3455
        %v3457 = vrot.slane %v3422, 4
        %v3458 = vrot.slane %v3423, 4
        %v3459 = vsel %vm414, %v3457, %v3458
        %v3460 = vrot.slane %v3424, 4
        %v3461 = vrot.slane %v3425, 4
        %v3462 = vsel %vm414, %v3460, %v3461
        %v3463 = vrot.slane %v3426, 4
        %v3464 = vrot.slane %v3427, 4
        %v3465 = vsel %vm414, %v3463, %v3464
        %v3466 = vrot.slane %v3428, 4
        %v3467 = vrot.slane %v3429, 4
        %v3468 = vsel %vm414, %v3466, %v3467
        %v3469 = vrot.slane %v3430, 4
        %v3470 = vrot.slane %v3431, 4
        %v3471 = vsel %vm414, %v3469, %v3470
        %v3480 = vadd.f32 %v3402, %v3450
        %v3481 = vadd.f32 %v3403, %v3453
        %v3482 = vadd.f32 %v3404, %v3456
        %v3483 = vadd.f32 %v3405, %v3459
        %v3484 = vadd.f32 %v3406, %v3462
        %v3485 = vadd.f32 %v3407, %v3465
        %v3486 = vadd.f32 %v3408, %v3468
        %v3487 = vadd.f32 %v3409, %v3471
        %v3489 = vlaneseq
        %v3490 = vshrl.u32 %v3489, 7
        %v3491 = vsub.s32 0, %v3490
        %v3492 = vrot.slane %v1230, %v3491
        %v3494 = vmul.f32 %v1168, %v3492
        %v3495 = vmul.f32 %v1169, %v3492
        %v3496 = vmul.f32 %v1170, %v3492
        %v3497 = vmul.f32 %v1171, %v3492
        %v3498 = vmul.f32 %v1172, %v3492
        %v3499 = vmul.f32 %v1173, %v3492
        %v3500 = vmul.f32 %v1174, %v3492
        %v3501 = vmul.f32 %v1175, %v3492
        %v3502 = vmul.f32 %v1176, %v3492
        %v3503 = vmul.f32 %v1177, %v3492
        %v3504 = vmul.f32 %v1178, %v3492
        %v3505 = vmul.f32 %v1179, %v3492
        %v3506 = vmul.f32 %v1180, %v3492
        %v3507 = vmul.f32 %v1181, %v3492
        %v3508 = vmul.f32 %v1182, %v3492
        %v3509 = vmul.f32 %v1183, %v3492
        %v3526 = vrot.slane %v3494, 4
        %v3527 = vrot.slane %v3495, 4
        %v3528 = vsel %vm414, %v3526, %v3527
        %v3529 = vrot.slane %v3496, 4
        %v3530 = vrot.slane %v3497, 4
        %v3531 = vsel %vm414, %v3529, %v3530
        %v3532 = vrot.slane %v3498, 4
        %v3533 = vrot.slane %v3499, 4
        %v3534 = vsel %vm414, %v3532, %v3533
        %v3535 = vrot.slane %v3500, 4
        %v3536 = vrot.slane %v3501, 4
        %v3537 = vsel %vm414, %v3535, %v3536
        %v3538 = vrot.slane %v3502, 4
        %v3539 = vrot.slane %v3503, 4
        %v3540 = vsel %vm414, %v3538, %v3539
        %v3541 = vrot.slane %v3504, 4
        %v3542 = vrot.slane %v3505, 4
        %v3543 = vsel %vm414, %v3541, %v3542
        %v3544 = vrot.slane %v3506, 4
        %v3545 = vrot.slane %v3507, 4
        %v3546 = vsel %vm414, %v3544, %v3545
        %v3547 = vrot.slane %v3508, 4
        %v3548 = vrot.slane %v3509, 4
        %v3549 = vsel %vm414, %v3547, %v3548
        %v3558 = vadd.f32 %v3480, %v3528
        %v3559 = vadd.f32 %v3481, %v3531
        %v3560 = vadd.f32 %v3482, %v3534
        %v3561 = vadd.f32 %v3483, %v3537
        %v3562 = vadd.f32 %v3484, %v3540
        %v3563 = vadd.f32 %v3485, %v3543
        %v3564 = vadd.f32 %v3486, %v3546
        %v3565 = vadd.f32 %v3487, %v3549
        %v3567 = vlaneseq
        %v3568 = vshrl.u32 %v3567, 7
        %v3569 = vsub.s32 0, %v3568
        %v3570 = vrot.slane %v1189, %v3569
        %v3572 = vmul.f32 %v1156, %v3570
        %v3573 = vmul.f32 %v1157, %v3570
        %v3574 = vmul.f32 %v1158, %v3570
        %v3575 = vmul.f32 %v1159, %v3570
        %v3576 = vmul.f32 %v1160, %v3570
        %v3577 = vmul.f32 %v1161, %v3570
        %v3578 = vmul.f32 %v1162, %v3570
        %v3579 = vmul.f32 %v1163, %v3570
        %v3580 = vmul.f32 %v1164, %v3570
        %v3581 = vmul.f32 %v1165, %v3570
        %v3582 = vmul.f32 %v1166, %v3570
        %v3583 = vmul.f32 %v1167, %v3570
        %v3584 = vmul.f32 %v1168, %v3570
        %v3585 = vmul.f32 %v1169, %v3570
        %v3586 = vmul.f32 %v1170, %v3570
        %v3587 = vmul.f32 %v1171, %v3570
        %vm3604 = vcmask 1042432
        %v3605 = vrot.slane %v3572, 5
        %v3606 = vrot.slane %v3573, 5
        %v3607 = vsel %vm3604, %v3605, %v3606
        %v3608 = vrot.slane %v3574, 5
        %v3609 = vrot.slane %v3575, 5
        %v3610 = vsel %vm3604, %v3608, %v3609
        %v3611 = vrot.slane %v3576, 5
        %v3612 = vrot.slane %v3577, 5
        %v3613 = vsel %vm3604, %v3611, %v3612
        %v3614 = vrot.slane %v3578, 5
        %v3615 = vrot.slane %v3579, 5
        %v3616 = vsel %vm3604, %v3614, %v3615
        %v3617 = vrot.slane %v3580, 5
        %v3618 = vrot.slane %v3581, 5
        %v3619 = vsel %vm3604, %v3617, %v3618
        %v3620 = vrot.slane %v3582, 5
        %v3621 = vrot.slane %v3583, 5
        %v3622 = vsel %vm3604, %v3620, %v3621
        %v3623 = vrot.slane %v3584, 5
        %v3624 = vrot.slane %v3585, 5
        %v3625 = vsel %vm3604, %v3623, %v3624
        %v3626 = vrot.slane %v3586, 5
        %v3627 = vrot.slane %v3587, 5
        %v3628 = vsel %vm3604, %v3626, %v3627
        %v3637 = vadd.f32 %v3558, %v3607
        %v3638 = vadd.f32 %v3559, %v3610
        %v3639 = vadd.f32 %v3560, %v3613
        %v3640 = vadd.f32 %v3561, %v3616
        %v3641 = vadd.f32 %v3562, %v3619
        %v3642 = vadd.f32 %v3563, %v3622
        %v3643 = vadd.f32 %v3564, %v3625
        %v3644 = vadd.f32 %v3565, %v3628
        %v3646 = vlaneseq
        %v3647 = vshrl.u32 %v3646, 7
        %v3648 = vsub.s32 0, %v3647
        %v3649 = vrot.slane %v1196, %v3648
        %v3651 = vmul.f32 %v1158, %v3649
        %v3652 = vmul.f32 %v1159, %v3649
        %v3653 = vmul.f32 %v1160, %v3649
        %v3654 = vmul.f32 %v1161, %v3649
        %v3655 = vmul.f32 %v1162, %v3649
        %v3656 = vmul.f32 %v1163, %v3649
        %v3657 = vmul.f32 %v1164, %v3649
        %v3658 = vmul.f32 %v1165, %v3649
        %v3659 = vmul.f32 %v1166, %v3649
        %v3660 = vmul.f32 %v1167, %v3649
        %v3661 = vmul.f32 %v1168, %v3649
        %v3662 = vmul.f32 %v1169, %v3649
        %v3663 = vmul.f32 %v1170, %v3649
        %v3664 = vmul.f32 %v1171, %v3649
        %v3665 = vmul.f32 %v1172, %v3649
        %v3666 = vmul.f32 %v1173, %v3649
        %v3683 = vrot.slane %v3651, 5
        %v3684 = vrot.slane %v3652, 5
        %v3685 = vsel %vm3604, %v3683, %v3684
        %v3686 = vrot.slane %v3653, 5
        %v3687 = vrot.slane %v3654, 5
        %v3688 = vsel %vm3604, %v3686, %v3687
        %v3689 = vrot.slane %v3655, 5
        %v3690 = vrot.slane %v3656, 5
        %v3691 = vsel %vm3604, %v3689, %v3690
        %v3692 = vrot.slane %v3657, 5
        %v3693 = vrot.slane %v3658, 5
        %v3694 = vsel %vm3604, %v3692, %v3693
        %v3695 = vrot.slane %v3659, 5
        %v3696 = vrot.slane %v3660, 5
        %v3697 = vsel %vm3604, %v3695, %v3696
        %v3698 = vrot.slane %v3661, 5
        %v3699 = vrot.slane %v3662, 5
        %v3700 = vsel %vm3604, %v3698, %v3699
        %v3701 = vrot.slane %v3663, 5
        %v3702 = vrot.slane %v3664, 5
        %v3703 = vsel %vm3604, %v3701, %v3702
        %v3704 = vrot.slane %v3665, 5
        %v3705 = vrot.slane %v3666, 5
        %v3706 = vsel %vm3604, %v3704, %v3705
        %v3715 = vadd.f32 %v3637, %v3685
        %v3716 = vadd.f32 %v3638, %v3688
        %v3717 = vadd.f32 %v3639, %v3691
        %v3718 = vadd.f32 %v3640, %v3694
        %v3719 = vadd.f32 %v3641, %v3697
        %v3720 = vadd.f32 %v3642, %v3700
        %v3721 = vadd.f32 %v3643, %v3703
        %v3722 = vadd.f32 %v3644, %v3706
        %v3724 = vlaneseq
        %v3725 = vshrl.u32 %v3724, 7
        %v3726 = vsub.s32 0, %v3725
        %v3727 = vrot.slane %v1203, %v3726
        %v3729 = vmul.f32 %v1160, %v3727
        %v3730 = vmul.f32 %v1161, %v3727
        %v3731 = vmul.f32 %v1162, %v3727
        %v3732 = vmul.f32 %v1163, %v3727
        %v3733 = vmul.f32 %v1164, %v3727
        %v3734 = vmul.f32 %v1165, %v3727
        %v3735 = vmul.f32 %v1166, %v3727
        %v3736 = vmul.f32 %v1167, %v3727
        %v3737 = vmul.f32 %v1168, %v3727
        %v3738 = vmul.f32 %v1169, %v3727
        %v3739 = vmul.f32 %v1170, %v3727
        %v3740 = vmul.f32 %v1171, %v3727
        %v3741 = vmul.f32 %v1172, %v3727
        %v3742 = vmul.f32 %v1173, %v3727
        %v3743 = vmul.f32 %v1174, %v3727
        %v3744 = vmul.f32 %v1175, %v3727
        %v3761 = vrot.slane %v3729, 5
        %v3762 = vrot.slane %v3730, 5
        %v3763 = vsel %vm3604, %v3761, %v3762
        %v3764 = vrot.slane %v3731, 5
        %v3765 = vrot.slane %v3732, 5
        %v3766 = vsel %vm3604, %v3764, %v3765
        %v3767 = vrot.slane %v3733, 5
        %v3768 = vrot.slane %v3734, 5
        %v3769 = vsel %vm3604, %v3767, %v3768
        %v3770 = vrot.slane %v3735, 5
        %v3771 = vrot.slane %v3736, 5
        %v3772 = vsel %vm3604, %v3770, %v3771
        %v3773 = vrot.slane %v3737, 5
        %v3774 = vrot.slane %v3738, 5
        %v3775 = vsel %vm3604, %v3773, %v3774
        %v3776 = vrot.slane %v3739, 5
        %v3777 = vrot.slane %v3740, 5
        %v3778 = vsel %vm3604, %v3776, %v3777
        %v3779 = vrot.slane %v3741, 5
        %v3780 = vrot.slane %v3742, 5
        %v3781 = vsel %vm3604, %v3779, %v3780
        %v3782 = vrot.slane %v3743, 5
        %v3783 = vrot.slane %v3744, 5
        %v3784 = vsel %vm3604, %v3782, %v3783
        %v3793 = vadd.f32 %v3715, %v3763
        %v3794 = vadd.f32 %v3716, %v3766
        %v3795 = vadd.f32 %v3717, %v3769
        %v3796 = vadd.f32 %v3718, %v3772
        %v3797 = vadd.f32 %v3719, %v3775
        %v3798 = vadd.f32 %v3720, %v3778
        %v3799 = vadd.f32 %v3721, %v3781
        %v3800 = vadd.f32 %v3722, %v3784
        %v3802 = vlaneseq
        %v3803 = vshrl.u32 %v3802, 7
        %v3804 = vsub.s32 0, %v3803
        %v3805 = vrot.slane %v1210, %v3804
        %v3807 = vmul.f32 %v1162, %v3805
        %v3808 = vmul.f32 %v1163, %v3805
        %v3809 = vmul.f32 %v1164, %v3805
        %v3810 = vmul.f32 %v1165, %v3805
        %v3811 = vmul.f32 %v1166, %v3805
        %v3812 = vmul.f32 %v1167, %v3805
        %v3813 = vmul.f32 %v1168, %v3805
        %v3814 = vmul.f32 %v1169, %v3805
        %v3815 = vmul.f32 %v1170, %v3805
        %v3816 = vmul.f32 %v1171, %v3805
        %v3817 = vmul.f32 %v1172, %v3805
        %v3818 = vmul.f32 %v1173, %v3805
        %v3819 = vmul.f32 %v1174, %v3805
        %v3820 = vmul.f32 %v1175, %v3805
        %v3821 = vmul.f32 %v1176, %v3805
        %v3822 = vmul.f32 %v1177, %v3805
        %v3839 = vrot.slane %v3807, 5
        %v3840 = vrot.slane %v3808, 5
        %v3841 = vsel %vm3604, %v3839, %v3840
        %v3842 = vrot.slane %v3809, 5
        %v3843 = vrot.slane %v3810, 5
        %v3844 = vsel %vm3604, %v3842, %v3843
        %v3845 = vrot.slane %v3811, 5
        %v3846 = vrot.slane %v3812, 5
        %v3847 = vsel %vm3604, %v3845, %v3846
        %v3848 = vrot.slane %v3813, 5
        %v3849 = vrot.slane %v3814, 5
        %v3850 = vsel %vm3604, %v3848, %v3849
        %v3851 = vrot.slane %v3815, 5
        %v3852 = vrot.slane %v3816, 5
        %v3853 = vsel %vm3604, %v3851, %v3852
        %v3854 = vrot.slane %v3817, 5
        %v3855 = vrot.slane %v3818, 5
        %v3856 = vsel %vm3604, %v3854, %v3855
        %v3857 = vrot.slane %v3819, 5
        %v3858 = vrot.slane %v3820, 5
        %v3859 = vsel %vm3604, %v3857, %v3858
        %v3860 = vrot.slane %v3821, 5
        %v3861 = vrot.slane %v3822, 5
        %v3862 = vsel %vm3604, %v3860, %v3861
        %v3871 = vadd.f32 %v3793, %v3841
        %v3872 = vadd.f32 %v3794, %v3844
        %v3873 = vadd.f32 %v3795, %v3847
        %v3874 = vadd.f32 %v3796, %v3850
        %v3875 = vadd.f32 %v3797, %v3853
        %v3876 = vadd.f32 %v3798, %v3856
        %v3877 = vadd.f32 %v3799, %v3859
        %v3878 = vadd.f32 %v3800, %v3862
        %v3880 = vlaneseq
        %v3881 = vshrl.u32 %v3880, 7
        %v3882 = vsub.s32 0, %v3881
        %v3883 = vrot.slane %v1217, %v3882
        %v3885 = vmul.f32 %v1164, %v3883
        %v3886 = vmul.f32 %v1165, %v3883
        %v3887 = vmul.f32 %v1166, %v3883
        %v3888 = vmul.f32 %v1167, %v3883
        %v3889 = vmul.f32 %v1168, %v3883
        %v3890 = vmul.f32 %v1169, %v3883
        %v3891 = vmul.f32 %v1170, %v3883
        %v3892 = vmul.f32 %v1171, %v3883
        %v3893 = vmul.f32 %v1172, %v3883
        %v3894 = vmul.f32 %v1173, %v3883
        %v3895 = vmul.f32 %v1174, %v3883
        %v3896 = vmul.f32 %v1175, %v3883
        %v3897 = vmul.f32 %v1176, %v3883
        %v3898 = vmul.f32 %v1177, %v3883
        %v3899 = vmul.f32 %v1178, %v3883
        %v3900 = vmul.f32 %v1179, %v3883
        %v3917 = vrot.slane %v3885, 5
        %v3918 = vrot.slane %v3886, 5
        %v3919 = vsel %vm3604, %v3917, %v3918
        %v3920 = vrot.slane %v3887, 5
        %v3921 = vrot.slane %v3888, 5
        %v3922 = vsel %vm3604, %v3920, %v3921
        %v3923 = vrot.slane %v3889, 5
        %v3924 = vrot.slane %v3890, 5
        %v3925 = vsel %vm3604, %v3923, %v3924
        %v3926 = vrot.slane %v3891, 5
        %v3927 = vrot.slane %v3892, 5
        %v3928 = vsel %vm3604, %v3926, %v3927
        %v3929 = vrot.slane %v3893, 5
        %v3930 = vrot.slane %v3894, 5
        %v3931 = vsel %vm3604, %v3929, %v3930
        %v3932 = vrot.slane %v3895, 5
        %v3933 = vrot.slane %v3896, 5
        %v3934 = vsel %vm3604, %v3932, %v3933
        %v3935 = vrot.slane %v3897, 5
        %v3936 = vrot.slane %v3898, 5
        %v3937 = vsel %vm3604, %v3935, %v3936
        %v3938 = vrot.slane %v3899, 5
        %v3939 = vrot.slane %v3900, 5
        %v3940 = vsel %vm3604, %v3938, %v3939
        %v3949 = vadd.f32 %v3871, %v3919
        %v3950 = vadd.f32 %v3872, %v3922
        %v3951 = vadd.f32 %v3873, %v3925
        %v3952 = vadd.f32 %v3874, %v3928
        %v3953 = vadd.f32 %v3875, %v3931
        %v3954 = vadd.f32 %v3876, %v3934
        %v3955 = vadd.f32 %v3877, %v3937
        %v3956 = vadd.f32 %v3878, %v3940
        %v3958 = vlaneseq
        %v3959 = vshrl.u32 %v3958, 7
        %v3960 = vsub.s32 0, %v3959
        %v3961 = vrot.slane %v1224, %v3960
        %v3963 = vmul.f32 %v1166, %v3961
        %v3964 = vmul.f32 %v1167, %v3961
        %v3965 = vmul.f32 %v1168, %v3961
        %v3966 = vmul.f32 %v1169, %v3961
        %v3967 = vmul.f32 %v1170, %v3961
        %v3968 = vmul.f32 %v1171, %v3961
        %v3969 = vmul.f32 %v1172, %v3961
        %v3970 = vmul.f32 %v1173, %v3961
        %v3971 = vmul.f32 %v1174, %v3961
        %v3972 = vmul.f32 %v1175, %v3961
        %v3973 = vmul.f32 %v1176, %v3961
        %v3974 = vmul.f32 %v1177, %v3961
        %v3975 = vmul.f32 %v1178, %v3961
        %v3976 = vmul.f32 %v1179, %v3961
        %v3977 = vmul.f32 %v1180, %v3961
        %v3978 = vmul.f32 %v1181, %v3961
        %v3995 = vrot.slane %v3963, 5
        %v3996 = vrot.slane %v3964, 5
        %v3997 = vsel %vm3604, %v3995, %v3996
        %v3998 = vrot.slane %v3965, 5
        %v3999 = vrot.slane %v3966, 5
        %v4000 = vsel %vm3604, %v3998, %v3999
        %v4001 = vrot.slane %v3967, 5
        %v4002 = vrot.slane %v3968, 5
        %v4003 = vsel %vm3604, %v4001, %v4002
        %v4004 = vrot.slane %v3969, 5
        %v4005 = vrot.slane %v3970, 5
        %v4006 = vsel %vm3604, %v4004, %v4005
        %v4007 = vrot.slane %v3971, 5
        %v4008 = vrot.slane %v3972, 5
        %v4009 = vsel %vm3604, %v4007, %v4008
        %v4010 = vrot.slane %v3973, 5
        %v4011 = vrot.slane %v3974, 5
        %v4012 = vsel %vm3604, %v4010, %v4011
        %v4013 = vrot.slane %v3975, 5
        %v4014 = vrot.slane %v3976, 5
        %v4015 = vsel %vm3604, %v4013, %v4014
        %v4016 = vrot.slane %v3977, 5
        %v4017 = vrot.slane %v3978, 5
        %v4018 = vsel %vm3604, %v4016, %v4017
        %v4027 = vadd.f32 %v3949, %v3997
        %v4028 = vadd.f32 %v3950, %v4000
        %v4029 = vadd.f32 %v3951, %v4003
        %v4030 = vadd.f32 %v3952, %v4006
        %v4031 = vadd.f32 %v3953, %v4009
        %v4032 = vadd.f32 %v3954, %v4012
        %v4033 = vadd.f32 %v3955, %v4015
        %v4034 = vadd.f32 %v3956, %v4018
        %v4036 = vlaneseq
        %v4037 = vshrl.u32 %v4036, 7
        %v4038 = vsub.s32 0, %v4037
        %v4039 = vrot.slane %v1231, %v4038
        %v4041 = vmul.f32 %v1168, %v4039
        %v4042 = vmul.f32 %v1169, %v4039
        %v4043 = vmul.f32 %v1170, %v4039
        %v4044 = vmul.f32 %v1171, %v4039
        %v4045 = vmul.f32 %v1172, %v4039
        %v4046 = vmul.f32 %v1173, %v4039
        %v4047 = vmul.f32 %v1174, %v4039
        %v4048 = vmul.f32 %v1175, %v4039
        %v4049 = vmul.f32 %v1176, %v4039
        %v4050 = vmul.f32 %v1177, %v4039
        %v4051 = vmul.f32 %v1178, %v4039
        %v4052 = vmul.f32 %v1179, %v4039
        %v4053 = vmul.f32 %v1180, %v4039
        %v4054 = vmul.f32 %v1181, %v4039
        %v4055 = vmul.f32 %v1182, %v4039
        %v4056 = vmul.f32 %v1183, %v4039
        %v4073 = vrot.slane %v4041, 5
        %v4074 = vrot.slane %v4042, 5
        %v4075 = vsel %vm3604, %v4073, %v4074
        %v4076 = vrot.slane %v4043, 5
        %v4077 = vrot.slane %v4044, 5
        %v4078 = vsel %vm3604, %v4076, %v4077
        %v4079 = vrot.slane %v4045, 5
        %v4080 = vrot.slane %v4046, 5
        %v4081 = vsel %vm3604, %v4079, %v4080
        %v4082 = vrot.slane %v4047, 5
        %v4083 = vrot.slane %v4048, 5
        %v4084 = vsel %vm3604, %v4082, %v4083
        %v4085 = vrot.slane %v4049, 5
        %v4086 = vrot.slane %v4050, 5
        %v4087 = vsel %vm3604, %v4085, %v4086
        %v4088 = vrot.slane %v4051, 5
        %v4089 = vrot.slane %v4052, 5
        %v4090 = vsel %vm3604, %v4088, %v4089
        %v4091 = vrot.slane %v4053, 5
        %v4092 = vrot.slane %v4054, 5
        %v4093 = vsel %vm3604, %v4091, %v4092
        %v4094 = vrot.slane %v4055, 5
        %v4095 = vrot.slane %v4056, 5
        %v4096 = vsel %vm3604, %v4094, %v4095
        %v4105 = vadd.f32 %v4027, %v4075
        %v4106 = vadd.f32 %v4028, %v4078
        %v4107 = vadd.f32 %v4029, %v4081
        %v4108 = vadd.f32 %v4030, %v4084
        %v4109 = vadd.f32 %v4031, %v4087
        %v4110 = vadd.f32 %v4032, %v4090
        %v4111 = vadd.f32 %v4033, %v4093
        %v4112 = vadd.f32 %v4034, %v4096
        %v4114 = vlaneseq
        %v4115 = vshrl.u32 %v4114, 7
        %v4116 = vsub.s32 0, %v4115
        %v4117 = vrot.slane %v1190, %v4116
        %v4119 = vmul.f32 %v1156, %v4117
        %v4120 = vmul.f32 %v1157, %v4117
        %v4121 = vmul.f32 %v1158, %v4117
        %v4122 = vmul.f32 %v1159, %v4117
        %v4123 = vmul.f32 %v1160, %v4117
        %v4124 = vmul.f32 %v1161, %v4117
        %v4125 = vmul.f32 %v1162, %v4117
        %v4126 = vmul.f32 %v1163, %v4117
        %v4127 = vmul.f32 %v1164, %v4117
        %v4128 = vmul.f32 %v1165, %v4117
        %v4129 = vmul.f32 %v1166, %v4117
        %v4130 = vmul.f32 %v1167, %v4117
        %v4131 = vmul.f32 %v1168, %v4117
        %v4132 = vmul.f32 %v1169, %v4117
        %v4133 = vmul.f32 %v1170, %v4117
        %v4134 = vmul.f32 %v1171, %v4117
        %vm4151 = vcmask 1041408
        %v4152 = vrot.slane %v4119, 6
        %v4153 = vrot.slane %v4120, 6
        %v4154 = vsel %vm4151, %v4152, %v4153
        %v4155 = vrot.slane %v4121, 6
        %v4156 = vrot.slane %v4122, 6
        %v4157 = vsel %vm4151, %v4155, %v4156
        %v4158 = vrot.slane %v4123, 6
        %v4159 = vrot.slane %v4124, 6
        %v4160 = vsel %vm4151, %v4158, %v4159
        %v4161 = vrot.slane %v4125, 6
        %v4162 = vrot.slane %v4126, 6
        %v4163 = vsel %vm4151, %v4161, %v4162
        %v4164 = vrot.slane %v4127, 6
        %v4165 = vrot.slane %v4128, 6
        %v4166 = vsel %vm4151, %v4164, %v4165
        %v4167 = vrot.slane %v4129, 6
        %v4168 = vrot.slane %v4130, 6
        %v4169 = vsel %vm4151, %v4167, %v4168
        %v4170 = vrot.slane %v4131, 6
        %v4171 = vrot.slane %v4132, 6
        %v4172 = vsel %vm4151, %v4170, %v4171
        %v4173 = vrot.slane %v4133, 6
        %v4174 = vrot.slane %v4134, 6
        %v4175 = vsel %vm4151, %v4173, %v4174
        %v4184 = vadd.f32 %v4105, %v4154
        %v4185 = vadd.f32 %v4106, %v4157
        %v4186 = vadd.f32 %v4107, %v4160
        %v4187 = vadd.f32 %v4108, %v4163
        %v4188 = vadd.f32 %v4109, %v4166
        %v4189 = vadd.f32 %v4110, %v4169
        %v4190 = vadd.f32 %v4111, %v4172
        %v4191 = vadd.f32 %v4112, %v4175
        %v4193 = vlaneseq
        %v4194 = vshrl.u32 %v4193, 7
        %v4195 = vsub.s32 0, %v4194
        %v4196 = vrot.slane %v1197, %v4195
        %v4198 = vmul.f32 %v1158, %v4196
        %v4199 = vmul.f32 %v1159, %v4196
        %v4200 = vmul.f32 %v1160, %v4196
        %v4201 = vmul.f32 %v1161, %v4196
        %v4202 = vmul.f32 %v1162, %v4196
        %v4203 = vmul.f32 %v1163, %v4196
        %v4204 = vmul.f32 %v1164, %v4196
        %v4205 = vmul.f32 %v1165, %v4196
        %v4206 = vmul.f32 %v1166, %v4196
        %v4207 = vmul.f32 %v1167, %v4196
        %v4208 = vmul.f32 %v1168, %v4196
        %v4209 = vmul.f32 %v1169, %v4196
        %v4210 = vmul.f32 %v1170, %v4196
        %v4211 = vmul.f32 %v1171, %v4196
        %v4212 = vmul.f32 %v1172, %v4196
        %v4213 = vmul.f32 %v1173, %v4196
        %v4230 = vrot.slane %v4198, 6
        %v4231 = vrot.slane %v4199, 6
        %v4232 = vsel %vm4151, %v4230, %v4231
        %v4233 = vrot.slane %v4200, 6
        %v4234 = vrot.slane %v4201, 6
        %v4235 = vsel %vm4151, %v4233, %v4234
        %v4236 = vrot.slane %v4202, 6
        %v4237 = vrot.slane %v4203, 6
        %v4238 = vsel %vm4151, %v4236, %v4237
        %v4239 = vrot.slane %v4204, 6
        %v4240 = vrot.slane %v4205, 6
        %v4241 = vsel %vm4151, %v4239, %v4240
        %v4242 = vrot.slane %v4206, 6
        %v4243 = vrot.slane %v4207, 6
        %v4244 = vsel %vm4151, %v4242, %v4243
        %v4245 = vrot.slane %v4208, 6
        %v4246 = vrot.slane %v4209, 6
        %v4247 = vsel %vm4151, %v4245, %v4246
        %v4248 = vrot.slane %v4210, 6
        %v4249 = vrot.slane %v4211, 6
        %v4250 = vsel %vm4151, %v4248, %v4249
        %v4251 = vrot.slane %v4212, 6
        %v4252 = vrot.slane %v4213, 6
        %v4253 = vsel %vm4151, %v4251, %v4252
        %v4262 = vadd.f32 %v4184, %v4232
        %v4263 = vadd.f32 %v4185, %v4235
        %v4264 = vadd.f32 %v4186, %v4238
        %v4265 = vadd.f32 %v4187, %v4241
        %v4266 = vadd.f32 %v4188, %v4244
        %v4267 = vadd.f32 %v4189, %v4247
        %v4268 = vadd.f32 %v4190, %v4250
        %v4269 = vadd.f32 %v4191, %v4253
        %v4271 = vlaneseq
        %v4272 = vshrl.u32 %v4271, 7
        %v4273 = vsub.s32 0, %v4272
        %v4274 = vrot.slane %v1204, %v4273
        %v4276 = vmul.f32 %v1160, %v4274
        %v4277 = vmul.f32 %v1161, %v4274
        %v4278 = vmul.f32 %v1162, %v4274
        %v4279 = vmul.f32 %v1163, %v4274
        %v4280 = vmul.f32 %v1164, %v4274
        %v4281 = vmul.f32 %v1165, %v4274
        %v4282 = vmul.f32 %v1166, %v4274
        %v4283 = vmul.f32 %v1167, %v4274
        %v4284 = vmul.f32 %v1168, %v4274
        %v4285 = vmul.f32 %v1169, %v4274
        %v4286 = vmul.f32 %v1170, %v4274
        %v4287 = vmul.f32 %v1171, %v4274
        %v4288 = vmul.f32 %v1172, %v4274
        %v4289 = vmul.f32 %v1173, %v4274
        %v4290 = vmul.f32 %v1174, %v4274
        %v4291 = vmul.f32 %v1175, %v4274
        %v4308 = vrot.slane %v4276, 6
        %v4309 = vrot.slane %v4277, 6
        %v4310 = vsel %vm4151, %v4308, %v4309
        %v4311 = vrot.slane %v4278, 6
        %v4312 = vrot.slane %v4279, 6
        %v4313 = vsel %vm4151, %v4311, %v4312
        %v4314 = vrot.slane %v4280, 6
        %v4315 = vrot.slane %v4281, 6
        %v4316 = vsel %vm4151, %v4314, %v4315
        %v4317 = vrot.slane %v4282, 6
        %v4318 = vrot.slane %v4283, 6
        %v4319 = vsel %vm4151, %v4317, %v4318
        %v4320 = vrot.slane %v4284, 6
        %v4321 = vrot.slane %v4285, 6
        %v4322 = vsel %vm4151, %v4320, %v4321
        %v4323 = vrot.slane %v4286, 6
        %v4324 = vrot.slane %v4287, 6
        %v4325 = vsel %vm4151, %v4323, %v4324
        %v4326 = vrot.slane %v4288, 6
        %v4327 = vrot.slane %v4289, 6
        %v4328 = vsel %vm4151, %v4326, %v4327
        %v4329 = vrot.slane %v4290, 6
        %v4330 = vrot.slane %v4291, 6
        %v4331 = vsel %vm4151, %v4329, %v4330
        %v4340 = vadd.f32 %v4262, %v4310
        %v4341 = vadd.f32 %v4263, %v4313
        %v4342 = vadd.f32 %v4264, %v4316
        %v4343 = vadd.f32 %v4265, %v4319
        %v4344 = vadd.f32 %v4266, %v4322
        %v4345 = vadd.f32 %v4267, %v4325
        %v4346 = vadd.f32 %v4268, %v4328
        %v4347 = vadd.f32 %v4269, %v4331
        %v4349 = vlaneseq
        %v4350 = vshrl.u32 %v4349, 7
        %v4351 = vsub.s32 0, %v4350
        %v4352 = vrot.slane %v1211, %v4351
        %v4354 = vmul.f32 %v1162, %v4352
        %v4355 = vmul.f32 %v1163, %v4352
        %v4356 = vmul.f32 %v1164, %v4352
        %v4357 = vmul.f32 %v1165, %v4352
        %v4358 = vmul.f32 %v1166, %v4352
        %v4359 = vmul.f32 %v1167, %v4352
        %v4360 = vmul.f32 %v1168, %v4352
        %v4361 = vmul.f32 %v1169, %v4352
        %v4362 = vmul.f32 %v1170, %v4352
        %v4363 = vmul.f32 %v1171, %v4352
        %v4364 = vmul.f32 %v1172, %v4352
        %v4365 = vmul.f32 %v1173, %v4352
        %v4366 = vmul.f32 %v1174, %v4352
        %v4367 = vmul.f32 %v1175, %v4352
        %v4368 = vmul.f32 %v1176, %v4352
        %v4369 = vmul.f32 %v1177, %v4352
        %v4386 = vrot.slane %v4354, 6
        %v4387 = vrot.slane %v4355, 6
        %v4388 = vsel %vm4151, %v4386, %v4387
        %v4389 = vrot.slane %v4356, 6
        %v4390 = vrot.slane %v4357, 6
        %v4391 = vsel %vm4151, %v4389, %v4390
        %v4392 = vrot.slane %v4358, 6
        %v4393 = vrot.slane %v4359, 6
        %v4394 = vsel %vm4151, %v4392, %v4393
        %v4395 = vrot.slane %v4360, 6
        %v4396 = vrot.slane %v4361, 6
        %v4397 = vsel %vm4151, %v4395, %v4396
        %v4398 = vrot.slane %v4362, 6
        %v4399 = vrot.slane %v4363, 6
        %v4400 = vsel %vm4151, %v4398, %v4399
        %v4401 = vrot.slane %v4364, 6
        %v4402 = vrot.slane %v4365, 6
        %v4403 = vsel %vm4151, %v4401, %v4402
        %v4404 = vrot.slane %v4366, 6
        %v4405 = vrot.slane %v4367, 6
        %v4406 = vsel %vm4151, %v4404, %v4405
        %v4407 = vrot.slane %v4368, 6
        %v4408 = vrot.slane %v4369, 6
        %v4409 = vsel %vm4151, %v4407, %v4408
        %v4418 = vadd.f32 %v4340, %v4388
        %v4419 = vadd.f32 %v4341, %v4391
        %v4420 = vadd.f32 %v4342, %v4394
        %v4421 = vadd.f32 %v4343, %v4397
        %v4422 = vadd.f32 %v4344, %v4400
        %v4423 = vadd.f32 %v4345, %v4403
        %v4424 = vadd.f32 %v4346, %v4406
        %v4425 = vadd.f32 %v4347, %v4409
        %v4427 = vlaneseq
        %v4428 = vshrl.u32 %v4427, 7
        %v4429 = vsub.s32 0, %v4428
        %v4430 = vrot.slane %v1218, %v4429
        %v4432 = vmul.f32 %v1164, %v4430
        %v4433 = vmul.f32 %v1165, %v4430
        %v4434 = vmul.f32 %v1166, %v4430
        %v4435 = vmul.f32 %v1167, %v4430
        %v4436 = vmul.f32 %v1168, %v4430
        %v4437 = vmul.f32 %v1169, %v4430
        %v4438 = vmul.f32 %v1170, %v4430
        %v4439 = vmul.f32 %v1171, %v4430
        %v4440 = vmul.f32 %v1172, %v4430
        %v4441 = vmul.f32 %v1173, %v4430
        %v4442 = vmul.f32 %v1174, %v4430
        %v4443 = vmul.f32 %v1175, %v4430
        %v4444 = vmul.f32 %v1176, %v4430
        %v4445 = vmul.f32 %v1177, %v4430
        %v4446 = vmul.f32 %v1178, %v4430
        %v4447 = vmul.f32 %v1179, %v4430
        %v4464 = vrot.slane %v4432, 6
        %v4465 = vrot.slane %v4433, 6
        %v4466 = vsel %vm4151, %v4464, %v4465
        %v4467 = vrot.slane %v4434, 6
        %v4468 = vrot.slane %v4435, 6
        %v4469 = vsel %vm4151, %v4467, %v4468
        %v4470 = vrot.slane %v4436, 6
        %v4471 = vrot.slane %v4437, 6
        %v4472 = vsel %vm4151, %v4470, %v4471
        %v4473 = vrot.slane %v4438, 6
        %v4474 = vrot.slane %v4439, 6
        %v4475 = vsel %vm4151, %v4473, %v4474
        %v4476 = vrot.slane %v4440, 6
        %v4477 = vrot.slane %v4441, 6
        %v4478 = vsel %vm4151, %v4476, %v4477
        %v4479 = vrot.slane %v4442, 6
        %v4480 = vrot.slane %v4443, 6
        %v4481 = vsel %vm4151, %v4479, %v4480
        %v4482 = vrot.slane %v4444, 6
        %v4483 = vrot.slane %v4445, 6
        %v4484 = vsel %vm4151, %v4482, %v4483
        %v4485 = vrot.slane %v4446, 6
        %v4486 = vrot.slane %v4447, 6
        %v4487 = vsel %vm4151, %v4485, %v4486
        %v4496 = vadd.f32 %v4418, %v4466
        %v4497 = vadd.f32 %v4419, %v4469
        %v4498 = vadd.f32 %v4420, %v4472
        %v4499 = vadd.f32 %v4421, %v4475
        %v4500 = vadd.f32 %v4422, %v4478
        %v4501 = vadd.f32 %v4423, %v4481
        %v4502 = vadd.f32 %v4424, %v4484
        %v4503 = vadd.f32 %v4425, %v4487
        %v4505 = vlaneseq
        %v4506 = vshrl.u32 %v4505, 7
        %v4507 = vsub.s32 0, %v4506
        %v4508 = vrot.slane %v1225, %v4507
        %v4510 = vmul.f32 %v1166, %v4508
        %v4511 = vmul.f32 %v1167, %v4508
        %v4512 = vmul.f32 %v1168, %v4508
        %v4513 = vmul.f32 %v1169, %v4508
        %v4514 = vmul.f32 %v1170, %v4508
        %v4515 = vmul.f32 %v1171, %v4508
        %v4516 = vmul.f32 %v1172, %v4508
        %v4517 = vmul.f32 %v1173, %v4508
        %v4518 = vmul.f32 %v1174, %v4508
        %v4519 = vmul.f32 %v1175, %v4508
        %v4520 = vmul.f32 %v1176, %v4508
        %v4521 = vmul.f32 %v1177, %v4508
        %v4522 = vmul.f32 %v1178, %v4508
        %v4523 = vmul.f32 %v1179, %v4508
        %v4524 = vmul.f32 %v1180, %v4508
        %v4525 = vmul.f32 %v1181, %v4508
        %v4542 = vrot.slane %v4510, 6
        %v4543 = vrot.slane %v4511, 6
        %v4544 = vsel %vm4151, %v4542, %v4543
        %v4545 = vrot.slane %v4512, 6
        %v4546 = vrot.slane %v4513, 6
        %v4547 = vsel %vm4151, %v4545, %v4546
        %v4548 = vrot.slane %v4514, 6
        %v4549 = vrot.slane %v4515, 6
        %v4550 = vsel %vm4151, %v4548, %v4549
        %v4551 = vrot.slane %v4516, 6
        %v4552 = vrot.slane %v4517, 6
        %v4553 = vsel %vm4151, %v4551, %v4552
        %v4554 = vrot.slane %v4518, 6
        %v4555 = vrot.slane %v4519, 6
        %v4556 = vsel %vm4151, %v4554, %v4555
        %v4557 = vrot.slane %v4520, 6
        %v4558 = vrot.slane %v4521, 6
        %v4559 = vsel %vm4151, %v4557, %v4558
        %v4560 = vrot.slane %v4522, 6
        %v4561 = vrot.slane %v4523, 6
        %v4562 = vsel %vm4151, %v4560, %v4561
        %v4563 = vrot.slane %v4524, 6
        %v4564 = vrot.slane %v4525, 6
        %v4565 = vsel %vm4151, %v4563, %v4564
        %v4574 = vadd.f32 %v4496, %v4544
        %v4575 = vadd.f32 %v4497, %v4547
        %v4576 = vadd.f32 %v4498, %v4550
        %v4577 = vadd.f32 %v4499, %v4553
        %v4578 = vadd.f32 %v4500, %v4556
        %v4579 = vadd.f32 %v4501, %v4559
        %v4580 = vadd.f32 %v4502, %v4562
        %v4581 = vadd.f32 %v4503, %v4565
        %v4583 = vlaneseq
        %v4584 = vshrl.u32 %v4583, 7
        %v4585 = vsub.s32 0, %v4584
        %v4586 = vrot.slane %v1232, %v4585
        %v4588 = vmul.f32 %v1168, %v4586
        %v4589 = vmul.f32 %v1169, %v4586
        %v4590 = vmul.f32 %v1170, %v4586
        %v4591 = vmul.f32 %v1171, %v4586
        %v4592 = vmul.f32 %v1172, %v4586
        %v4593 = vmul.f32 %v1173, %v4586
        %v4594 = vmul.f32 %v1174, %v4586
        %v4595 = vmul.f32 %v1175, %v4586
        %v4596 = vmul.f32 %v1176, %v4586
        %v4597 = vmul.f32 %v1177, %v4586
        %v4598 = vmul.f32 %v1178, %v4586
        %v4599 = vmul.f32 %v1179, %v4586
        %v4600 = vmul.f32 %v1180, %v4586
        %v4601 = vmul.f32 %v1181, %v4586
        %v4602 = vmul.f32 %v1182, %v4586
        %v4603 = vmul.f32 %v1183, %v4586
        %v4620 = vrot.slane %v4588, 6
        %v4621 = vrot.slane %v4589, 6
        %v4622 = vsel %vm4151, %v4620, %v4621
        %v4623 = vrot.slane %v4590, 6
        %v4624 = vrot.slane %v4591, 6
        %v4625 = vsel %vm4151, %v4623, %v4624
        %v4626 = vrot.slane %v4592, 6
        %v4627 = vrot.slane %v4593, 6
        %v4628 = vsel %vm4151, %v4626, %v4627
        %v4629 = vrot.slane %v4594, 6
        %v4630 = vrot.slane %v4595, 6
        %v4631 = vsel %vm4151, %v4629, %v4630
        %v4632 = vrot.slane %v4596, 6
        %v4633 = vrot.slane %v4597, 6
        %v4634 = vsel %vm4151, %v4632, %v4633
        %v4635 = vrot.slane %v4598, 6
        %v4636 = vrot.slane %v4599, 6
        %v4637 = vsel %vm4151, %v4635, %v4636
        %v4638 = vrot.slane %v4600, 6
        %v4639 = vrot.slane %v4601, 6
        %v4640 = vsel %vm4151, %v4638, %v4639
        %v4641 = vrot.slane %v4602, 6
        %v4642 = vrot.slane %v4603, 6
        %v4643 = vsel %vm4151, %v4641, %v4642
        %v4652 = vadd.f32 %v4574, %v4622
        %v4653 = vadd.f32 %v4575, %v4625
        %v4654 = vadd.f32 %v4576, %v4628
        %v4655 = vadd.f32 %v4577, %v4631
        %v4656 = vadd.f32 %v4578, %v4634
        %v4657 = vadd.f32 %v4579, %v4637
        %v4658 = vadd.f32 %v4580, %v4640
        %v4659 = vadd.f32 %v4581, %v4643
        %v4660 = vld [vmem:[%s6] sm:$0x1]
        %v4662 = vlaneseq
        %v4663 = vshrl.u32 %v4662, 7
        %v4664 = vsub.s32 0, %v4663
        %v4665 = vrot.slane %v4660, %v4664
        %v4667 = vadd.f32 %v4652, %v4665
        %v4668 = vadd.f32 %v4653, %v4665
        %v4669 = vadd.f32 %v4654, %v4665
        %v4670 = vadd.f32 %v4655, %v4665
        %v4671 = vadd.f32 %v4656, %v4665
        %v4672 = vadd.f32 %v4657, %v4665
        %v4673 = vadd.f32 %v4658, %v4665
        %v4674 = vadd.f32 %v4659, %v4665
        %4675 = vst.msk [vmem:[%s271] sm:$0xff] %vm1103, %v4667
        %4676 = vst.msk [vmem:[%s271 + $0x8] sm:$0xff] %vm1103, %v4668
        %4677 = vst.msk [vmem:[%s271 + $0x10] sm:$0xff] %vm1103, %v4669
        %4678 = vst.msk [vmem:[%s271 + $0x18] sm:$0xff] %vm1103, %v4670
        %4679 = vst.msk [vmem:[%s271 + $0x20] sm:$0xff] %vm1103, %v4671
        %4680 = vst.msk [vmem:[%s271 + $0x28] sm:$0xff] %vm1103, %v4672
        %4681 = vst.msk [vmem:[%s271 + $0x30] sm:$0xff] %vm1103, %v4673
        %4682 = vst.msk [vmem:[%s271 + $0x38] sm:$0xff] %vm1103, %v4674
        %s4683 = sand.u32 %s181, 1
        %s4684 = scalar_lea.sflag [#allocation4], %s4683
        %s4685 = sand.u32 %s181, 1
        %s4686 = smul.addr %s4685, 64
        %s4687 = scalar_lea.vmem [#allocation3], %s4686
        // Predicated region
        $region49: #{tpu_custom_call.1} parent=47 // pred_check
          %p4688 = pneg %p191
        $region50: #{tpu_custom_call.1} parent=47 // pred_check_branch
          %4690 = sbr.rel (%p4688) target = $region52
        $region51: #{tpu_custom_call.1} parent=47 // pred_region
          %s4692 = ssub.s32 1024, 1024
          %4693 = vsyncadd %s4684, %s4692
          %s4694 = smul.addr %s21, 8
          %s4695 = smul.addr %s4694, 128
          %s4696 = scalar_lea.hbm %s7, %s4695
          %s4697 = sshll.u32 %s4687, 4
          %s4698 = int_to_ptr.vmem [resolvable:$true] %s4697
          %4703 = dma.vmem_to_hbm [thread:$0]  %s4698, 1024, %s4696, %s4684, 128, 128, 8
        $region52: #{tpu_custom_call.1} parent=47 // pred_fallthru
          _
      $region48: #{tpu_custom_call.1} parent=5 // pred_fallthru
        _
      %p4704 = scmp.le.s32.totalorder 2, %s16
      // Predicated region
      $region53: #{tpu_custom_call.1} parent=5 // pred_check
        %p4705 = pneg %p4704
      $region54: #{tpu_custom_call.1} parent=5 // pred_check_branch
        %4707 = sbr.rel (%p4705) target = $region56
      $region55: #{tpu_custom_call.1} parent=5 // pred_region
        %s4708 = ssub.s32 %s16, 2
        // Predicated region
        $region57: #{tpu_custom_call.1} parent=55 // pred_check
          %p4709 = pneg %p197
        $region58: #{tpu_custom_call.1} parent=55 // pred_check_branch
          %4711 = sbr.rel (%p4709) target = $region60
        $region59: #{tpu_custom_call.1} parent=55 // pred_region
          %s4712 = sand.u32 %s182, 1
          %s4713 = scalar_lea.sflag [#allocation4], %s4712
          %s4714 = sand.u32 %s182, 1
          %s4715 = smul.addr %s4714, 64
          %s4716 = scalar_lea.vmem [#allocation3], %s4715
          %4717 = dma.done %s4713, 1024
        $region60: #{tpu_custom_call.1} parent=55 // pred_fallthru
          _
      $region56: #{tpu_custom_call.1} parent=5 // pred_fallthru
        _
    $region6: #{tpu_custom_call.1} parent=1 // loop_footer
      %s20 = sadd.s32 1, %s16
    $region7: #{tpu_custom_call.1} parent=1 // loop_footer_branch
      %15 = sbr.rel target = $region3
    $region8: #{tpu_custom_call.1} parent=1 // loop_exit
      _
    %4718 = vsyncpa [#allocation4], 1
    %s4719 = scalar_lea.sflag [#allocation4], 1
    %4720 = vsyncpa %s4719, 1

</llo_original>
